<compile_context>
chip_gen: v5e
topology: v5e:2x2
jax: 0.10.0
libtpu: 0.0.40
codegen_flags: <defaults>
</compile_context>

<pallas_src>
import functools
import math

import jax
import jax.numpy as jnp
from jax import lax
from jax.experimental import pallas as pl
from jax.experimental.pallas import tpu as pltpu


# ------------------------------ fused kernel --------------------------------

def _stn_kernel(x_ref, base_ref, t1_ref, b1_ref, sw1_ref, sh1_ref,
                t2_ref, b2_ref, sw2_ref, sh2_ref,
                wfc1_ref, bfc1_ref, wfc2_ref, bfc2_ref,
                out_ref, theta_ref, *, cin):
    f32 = jnp.float32
    dot = functools.partial(jnp.dot, preferred_element_type=f32)

    kw1 = t1_ref.shape[0]          # 7
    ow1 = sw1_ref.shape[1]         # 22
    kw2 = t2_ref.shape[0]          # 5
    ow2 = sw2_ref.shape[1]         # 7
    pw2 = sw2_ref.shape[2]         # 3
    h_img = x_ref.shape[0] // cin  # 28
    w_img = x_ref.shape[1]         # 28
    p = out_ref.shape[1]           # 9

    # ---- conv1: kw1 Toeplitz matmuls (contract (cin, kh) over the H/row axis) ----
    acc1 = dot(t1_ref[0], x_ref[:, 0:ow1])
    for j in range(1, kw1):
        acc1 = acc1 + dot(t1_ref[j], x_ref[:, j:j + ow1])
    y1 = acc1 + b1_ref[...]                                  # (c1*oh1, ow1)

    # ---- maxpool 2x2 stride 2 + ReLU (even/odd selection matmuls) ----
    ye = dot(y1, sw1_ref[0])
    yo = dot(y1, sw1_ref[1])
    p1 = jnp.maximum(
        jnp.maximum(dot(sh1_ref[0], ye), dot(sh1_ref[0], yo)),
        jnp.maximum(dot(sh1_ref[1], ye), dot(sh1_ref[1], yo)))
    p1 = jnp.maximum(p1, 0.0)                                # (c1*ph1, pw1)

    # ---- conv2 ----
    acc2 = dot(t2_ref[0], p1[:, 0:ow2])
    for j in range(1, kw2):
        acc2 = acc2 + dot(t2_ref[j], p1[:, j:j + ow2])
    y2 = acc2 + b2_ref[...]                                  # (c2*oh2, ow2)

    # ---- maxpool 2x2 stride 2 + ReLU ----
    ye2 = dot(y2, sw2_ref[0])
    yo2 = dot(y2, sw2_ref[1])
    p2 = jnp.maximum(
        jnp.maximum(dot(sh2_ref[0], ye2), dot(sh2_ref[0], yo2)),
        jnp.maximum(dot(sh2_ref[1], ye2), dot(sh2_ref[1], yo2)))
    p2 = jnp.maximum(p2, 0.0)                                # (c2*ph2, pw2)

    # ---- fc_loc: Linear(90, 32) + ReLU ----
    hcol = bfc1_ref[...]                                     # (32, 1)
    for w in range(pw2):
        hcol = hcol + dot(wfc1_ref[w], p2[:, w:w + 1])
    hcol = jnp.maximum(hcol, 0.0)

    # ---- fc_loc: Linear(32, 6) -> theta (2, 3), stored column by column ----
    tcols = []
    for c in range(3):
        col = dot(wfc2_ref[c], hcol) + bfc2_ref[:, c:c + 1]  # (2, 1)
        theta_ref[:, c:c + 1] = col
        tcols.append(col)

    # ---- affine_grid + grid_sample (bilinear, zeros, align_corners=False) ----
    bx = base_ref[0:1, :]                                    # (1, p)
    by = base_ref[1:2, :]
    gx = tcols[0][0:1, :] * bx + tcols[1][0:1, :] * by + tcols[2][0:1, :]
    gy = tcols[0][1:2, :] * bx + tcols[1][1:2, :] * by + tcols[2][1:2, :]
    ix = ((gx + 1.0) * w_img - 1.0) * 0.5                    # (1, p)
    iy = ((gy + 1.0) * h_img - 1.0) * 0.5
    iw = lax.broadcasted_iota(jnp.int32, (w_img, p), 0).astype(f32)
    ih = lax.broadcasted_iota(jnp.int32, (h_img, p), 0).astype(f32)
    wx = jnp.maximum(1.0 - jnp.abs(iw - ix), 0.0)            # (w_img, p)
    wy = jnp.maximum(1.0 - jnp.abs(ih - iy), 0.0)            # (h_img, p)
    for c in range(cin):
        xc = x_ref[c * h_img:(c + 1) * h_img, :]             # (h_img, w_img)
        s = dot(xc, wx)                                      # (h_img, p)
        out_ref[c:c + 1, :] = jnp.sum(s * wy, axis=0, keepdims=True)


# ------------------- wrapper: weight-derived constant operands ---------------

def _toeplitz(w_t, oh_out):
    """Conv weight (CO, CI, KH, KW) -> (KW, CO*OH, CI*IH) banded matrices."""
    co, ci, kh, kw = w_t.shape
    ih = oh_out + kh - 1
    r_oh = jnp.arange(oh_out)
    r_h = jnp.arange(ih)
    i_idx = r_h[None, :] - r_oh[:, None]                      # (OH, IH)
    valid = (i_idx >= 0) & (i_idx < kh)
    i_safe = jnp.clip(i_idx, 0, kh - 1)
    t = w_t[:, :, i_safe, :]                                  # (CO, CI, OH, IH, KW)
    t = t * valid[None, None, :, :, None].astype(w_t.dtype)
    t = jnp.transpose(t, (4, 0, 2, 1, 3))                     # (KW, CO, OH, CI, IH)
    return t.reshape(kw, co * oh_out, ci * ih)


def _sel_w(n_in, n_out):
    """(2, n_in, n_out) even/odd column selectors for 2x2 pooling (lane axis)."""
    i = jnp.arange(n_in)[:, None]
    o = jnp.arange(n_out)[None, :]
    e = (i == 2 * o).astype(jnp.float32)
    od = (i == 2 * o + 1).astype(jnp.float32)
    return jnp.stack([e, od], axis=0)


def _sel_h(ch, n_in, n_out):
    """(2, ch*n_out, ch*n_in) even/odd row selectors for 2x2 pooling (row axis)."""
    pidx = jnp.arange(ch * n_out)
    sidx = jnp.arange(ch * n_in)
    pc, po = pidx // n_out, pidx % n_out
    sc, si = sidx // n_in, sidx % n_in
    same = pc[:, None] == sc[None, :]
    e = (same & (si[None, :] == 2 * po[:, None])).astype(jnp.float32)
    o = (same & (si[None, :] == 2 * po[:, None] + 1)).astype(jnp.float32)
    return jnp.stack([e, o], axis=0)


def stn_forward(x, params):
    # layout: x is NCHW float32 (B, C, H, W), matching the PyTorch module.
    B, Cin, H, W = x.shape
    C1 = params["w1"].shape[0]           # 8
    C2 = params["w2"].shape[0]           # 10
    OH1, OW1 = H - 6, W - 6              # 22, 22
    PH1, PW1 = OH1 // 2, OW1 // 2        # 11, 11
    OH2, OW2 = PH1 - 4, PW1 - 4          # 7, 7
    PH2, PW2 = OH2 // 2, OW2 // 2        # 3, 3
    OHg, OWg = H // 8, W // 8            # 3, 3
    P = OHg * OWg

    # Weight-only derived operands (constant-folded by jit when params are baked in).
    t1 = _toeplitz(params["w1"], OH1)                          # (7, C1*OH1, Cin*H)
    t2 = _toeplitz(params["w2"], OH2)                          # (5, C2*OH2, C1*PH1)
    b1r = jnp.repeat(params["b1"], OH1)[:, None]               # (C1*OH1, 1)
    b2r = jnp.repeat(params["b2"], OH2)[:, None]               # (C2*OH2, 1)
    sw1, sh1 = _sel_w(OW1, PW1), _sel_h(C1, OH1, PH1)
    sw2, sh2 = _sel_w(OW2, PW2), _sel_h(C2, OH2, PH2)
    wfc1 = jnp.transpose(params["fc1_w"].reshape(-1, C2 * PH2, PW2), (2, 0, 1))
    bfc1 = params["fc1_b"][:, None]                            # (32, 1)
    wfc2 = jnp.transpose(params["fc2_w"].reshape(2, 3, -1), (1, 0, 2))  # (3, 2, 32)
    bfc2 = params["fc2_b"].reshape(2, 3)

    # affine_grid base coordinates (align_corners=False), row-major (oh, ow).
    oh_g, ow_g = jnp.meshgrid(jnp.arange(OHg, dtype=jnp.float32),
                              jnp.arange(OWg, dtype=jnp.float32), indexing="ij")
    base = jnp.stack([(2.0 * ow_g.ravel() - (OWg - 1)) / OWg,
                      (2.0 * oh_g.ravel() - (OHg - 1)) / OHg], axis=0)  # (2, P)

    x_r = x.reshape(B, Cin * H, W)       # row index = ci*H + h (free reshape)

    kernel = functools.partial(_stn_kernel, cin=Cin)
    out_flat, theta = pl.pallas_call(
        kernel,
        out_shape=(jax.ShapeDtypeStruct((B, Cin, P), jnp.float32),
                   jax.ShapeDtypeStruct((B, 2, 3), jnp.float32)),
        grid=(B,),
        in_specs=[
            pl.BlockSpec((None, Cin * H, W), lambda b: (b, 0, 0)),   # x (per batch)
            pl.BlockSpec(base.shape, lambda b: (0, 0)),              # base grid
            pl.BlockSpec(t1.shape, lambda b: (0, 0, 0)),             # conv1 Toeplitz
            pl.BlockSpec(b1r.shape, lambda b: (0, 0)),
            pl.BlockSpec(sw1.shape, lambda b: (0, 0, 0)),
            pl.BlockSpec(sh1.shape, lambda b: (0, 0, 0)),
            pl.BlockSpec(t2.shape, lambda b: (0, 0, 0)),             # conv2 Toeplitz
            pl.BlockSpec(b2r.shape, lambda b: (0, 0)),
            pl.BlockSpec(sw2.shape, lambda b: (0, 0, 0)),
            pl.BlockSpec(sh2.shape, lambda b: (0, 0, 0)),
            pl.BlockSpec(wfc1.shape, lambda b: (0, 0, 0)),
            pl.BlockSpec(bfc1.shape, lambda b: (0, 0)),
            pl.BlockSpec(wfc2.shape, lambda b: (0, 0, 0)),
            pl.BlockSpec(bfc2.shape, lambda b: (0, 0)),
        ],
        out_specs=(pl.BlockSpec((None, Cin, P), lambda b: (b, 0, 0)),
                   pl.BlockSpec((None, 2, 3), lambda b: (b, 0, 0))),
        compiler_params=pltpu.CompilerParams(
            dimension_semantics=("parallel",)),
    )(x_r, base, t1, b1r, sw1, sh1, t2, b2r, sw2, sh2, wfc1, bfc1, wfc2, bfc2)

    out = out_flat.reshape(B, Cin, OHg, OWg)
    return out, theta


# -------------------------- parameters (torch layouts) -----------------------

def init_params(key):
    ks = jax.random.split(key, 6)

    def uinit(k, shape, fan_in):
        bound = 1.0 / math.sqrt(fan_in)
        return jax.random.uniform(k, shape, jnp.float32, -bound, bound)

    return dict(
        w1=uinit(ks[0], (8, 1, 7, 7), 1 * 7 * 7),      # Conv2d OIHW
        b1=uinit(ks[1], (8,), 1 * 7 * 7),
        w2=uinit(ks[2], (10, 8, 5, 5), 8 * 5 * 5),
        b2=uinit(ks[3], (10,), 8 * 5 * 5),
        fc1_w=uinit(ks[4], (32, 90), 90),              # Linear (out, in)
        fc1_b=uinit(ks[5], (32,), 90),
        fc2_w=jnp.zeros((6, 32), jnp.float32),         # fc_loc[2].weight.zero_()
        fc2_b=jnp.array([1, 0, 0, 0, 1, 0], jnp.float32),
    )


# ----------------------- pure-JAX reference (for checking) -------------------

def _maxpool2_ref(y):
    return lax.reduce_window(y, -jnp.inf, lax.max, (1, 1, 2, 2), (1, 1, 2, 2), "VALID")


def _ref_grid_sample(x, theta, OHg, OWg):
    B, C, H, W = x.shape
    oh, ow = jnp.meshgrid(jnp.arange(OHg, dtype=jnp.float32),
                          jnp.arange(OWg, dtype=jnp.float32), indexing="ij")
    bx = (2.0 * ow - (OWg - 1)) / OWg
    by = (2.0 * oh - (OHg - 1)) / OHg
    gx = (theta[:, 0, 0, None, None] * bx + theta[:, 0, 1, None, None] * by
          + theta[:, 0, 2, None, None])
    gy = (theta[:, 1, 0, None, None] * bx + theta[:, 1, 1, None, None] * by
          + theta[:, 1, 2, None, None])
    ix = ((gx + 1.0) * W - 1.0) / 2.0
    iy = ((gy + 1.0) * H - 1.0) / 2.0
    ix0, iy0 = jnp.floor(ix), jnp.floor(iy)
    b_idx = jnp.arange(B)[:, None, None, None]
    c_idx = jnp.arange(C)[None, :, None, None]
    res = jnp.zeros((B, C, OHg, OWg), jnp.float32)
    for dy in (0.0, 1.0):
        for dx in (0.0, 1.0):
            xi, yi = ix0 + dx, iy0 + dy
            wgt = (1.0 - jnp.abs(ix - xi)) * (1.0 - jnp.abs(iy - yi))
            valid = (xi >= 0) & (xi <= W - 1) & (yi >= 0) & (yi <= H - 1)
            xi_c = jnp.clip(xi, 0, W - 1).astype(jnp.int32)
            yi_c = jnp.clip(yi, 0, H - 1).astype(jnp.int32)
            v = x[b_idx, c_idx, yi_c[:, None, :, :], xi_c[:, None, :, :]]
            res = res + v * (wgt * valid)[:, None, :, :]
    return res


def ref_forward(x, params):
    dn = ("NCHW", "OIHW", "NCHW")
    hp = lax.Precision.HIGHEST
    y1 = lax.conv_general_dilated(x, params["w1"], (1, 1), "VALID",
                                  dimension_numbers=dn, precision=hp)
    y1 = y1 + params["b1"][None, :, None, None]
    p1 = jnp.maximum(_maxpool2_ref(y1), 0.0)
    y2 = lax.conv_general_dilated(p1, params["w2"], (1, 1), "VALID",
                                  dimension_numbers=dn, precision=hp)
    y2 = y2 + params["b2"][None, :, None, None]
    p2 = jnp.maximum(_maxpool2_ref(y2), 0.0)
    xs = p2.reshape(x.shape[0], -1)
    h = jnp.maximum(jnp.dot(xs, params["fc1_w"].T, precision=hp) + params["fc1_b"], 0.0)
    theta = (jnp.dot(h, params["fc2_w"].T, precision=hp) + params["fc2_b"]).reshape(-1, 2, 3)
    out = _ref_grid_sample(x, theta, x.shape[2] // 8, x.shape[3] // 8)
    return out, theta


# ----------------------------------- main ------------------------------------

if __name__ == "__main__":
    key = jax.random.PRNGKey(0)
    pkey, xkey, wkey = jax.random.split(key, 3)
    params = init_params(pkey)
    # MNIST config: input_dims=1, 28x28 spatial (required so 10*3*3 = 90 matches)
    x = jax.random.normal(xkey, (2, 1, 28, 28), jnp.float32)

    out, theta = jax.jit(lambda xx: stn_forward(xx, params))(x)
    jax.block_until_ready((out, theta))

    ref_out, ref_theta = ref_forward(x, params)
    assert out.shape == (2, 1, 3, 3), out.shape
    assert theta.shape == (2, 2, 3), theta.shape
    assert jnp.allclose(theta, ref_theta, atol=1e-4, rtol=1e-4)
    assert jnp.allclose(out, ref_out, atol=1e-3, rtol=1e-3)

    # Second check with non-zero fc2 weights so the whole localization path
    # actually influences theta / the sampled output.
    params2 = dict(params)
    params2["fc2_w"] = 0.05 * jax.random.normal(wkey, (6, 32), jnp.float32)
    out2, theta2 = jax.jit(lambda xx: stn_forward(xx, params2))(x)
    jax.block_until_ready((out2, theta2))
    ref_out2, ref_theta2 = ref_forward(x, params2)
    assert jnp.allclose(theta2, ref_theta2, atol=5e-3, rtol=5e-3)
    assert jnp.allclose(out2, ref_out2, atol=5e-3, rtol=5e-3)

    print("KERNEL_OK")
</pallas_src>

<mosaic_0001>
module attributes {stable_mosaic.version = 11 : i64} {
  func.func @_stn_kernel(%arg0: i32, %arg1: memref<1x28x28xf32, #tpu.memory_space<vmem>>, %arg2: memref<2x9xf32, #tpu.memory_space<vmem>>, %arg3: memref<7x176x28xf32, #tpu.memory_space<vmem>>, %arg4: memref<176x1xf32, #tpu.memory_space<vmem>>, %arg5: memref<2x22x11xf32, #tpu.memory_space<vmem>>, %arg6: memref<2x88x176xf32, #tpu.memory_space<vmem>>, %arg7: memref<5x70x88xf32, #tpu.memory_space<vmem>>, %arg8: memref<70x1xf32, #tpu.memory_space<vmem>>, %arg9: memref<2x7x3xf32, #tpu.memory_space<vmem>>, %arg10: memref<2x30x70xf32, #tpu.memory_space<vmem>>, %arg11: memref<3x32x30xf32, #tpu.memory_space<vmem>>, %arg12: memref<32x1xf32, #tpu.memory_space<vmem>>, %arg13: memref<3x2x32xf32, #tpu.memory_space<vmem>>, %arg14: memref<2x3xf32, #tpu.memory_space<vmem>>, %arg15: memref<1x1x9xf32, #tpu.memory_space<vmem>>, %arg16: memref<1x2x3xf32, #tpu.memory_space<vmem>>) attributes {dimension_semantics = [#tpu.dimension_semantics<parallel>], iteration_bounds = array<i64: 2>, scalar_prefetch = 0 : i64, scratch_operands = 0 : i64, tpu.core_type = #tpu.core_type<tc>, window_params = [{transform_indices = @transform_0, window_bounds = array<i64: 1, 28, 28>}, {pipeline_mode = #tpu.pipeline_mode<synchronous>, transform_indices = @transform_1, window_bounds = array<i64: 2, 9>}, {pipeline_mode = #tpu.pipeline_mode<synchronous>, transform_indices = @transform_2, window_bounds = array<i64: 7, 176, 28>}, {pipeline_mode = #tpu.pipeline_mode<synchronous>, transform_indices = @transform_3, window_bounds = array<i64: 176, 1>}, {pipeline_mode = #tpu.pipeline_mode<synchronous>, transform_indices = @transform_4, window_bounds = array<i64: 2, 22, 11>}, {pipeline_mode = #tpu.pipeline_mode<synchronous>, transform_indices = @transform_5, window_bounds = array<i64: 2, 88, 176>}, {pipeline_mode = #tpu.pipeline_mode<synchronous>, transform_indices = @transform_6, window_bounds = array<i64: 5, 70, 88>}, {pipeline_mode = #tpu.pipeline_mode<synchronous>, transform_indices = @transform_7, window_bounds = array<i64: 70, 1>}, {pipeline_mode = #tpu.pipeline_mode<synchronous>, transform_indices = @transform_8, window_bounds = array<i64: 2, 7, 3>}, {pipeline_mode = #tpu.pipeline_mode<synchronous>, transform_indices = @transform_9, window_bounds = array<i64: 2, 30, 70>}, {pipeline_mode = #tpu.pipeline_mode<synchronous>, transform_indices = @transform_10, window_bounds = array<i64: 3, 32, 30>}, {pipeline_mode = #tpu.pipeline_mode<synchronous>, transform_indices = @transform_11, window_bounds = array<i64: 32, 1>}, {pipeline_mode = #tpu.pipeline_mode<synchronous>, transform_indices = @transform_12, window_bounds = array<i64: 3, 2, 32>}, {pipeline_mode = #tpu.pipeline_mode<synchronous>, transform_indices = @transform_13, window_bounds = array<i64: 2, 3>}, {transform_indices = @transform_14, window_bounds = array<i64: 1, 1, 9>}, {transform_indices = @transform_15, window_bounds = array<i64: 1, 2, 3>}]} {
    %c0 = arith.constant 0 : index
    %c0_0 = arith.constant 0 : index
    %c0_1 = arith.constant 0 : index
    %0 = vector.load %arg3[%c0, %c0_0, %c0_1] : memref<7x176x28xf32, #tpu.memory_space<vmem>>, vector<1x176x28xf32>
    %1 = vector.shape_cast %0 : vector<1x176x28xf32> to vector<176x28xf32>
    %c0_2 = arith.constant 0 : index
    %c0_3 = arith.constant 0 : index
    %c0_4 = arith.constant 0 : index
    %2 = vector.load %arg1[%c0_2, %c0_3, %c0_4] : memref<1x28x28xf32, #tpu.memory_space<vmem>>, vector<1x28x22xf32>
    %3 = vector.shape_cast %2 : vector<1x28x22xf32> to vector<28x22xf32>
    %cst = arith.constant dense<0.000000e+00> : vector<176x22xf32>
    %4 = tpu.matmul %1, %3, %cst {dimension_numbers = #tpu.dot_dimension_numbers<[1], [0], [0], [1], [0, 0, 1, 1], [], []>} : vector<176x28xf32>, vector<28x22xf32>, vector<176x22xf32> -> vector<176x22xf32>
    %c1 = arith.constant 1 : index
    %c0_5 = arith.constant 0 : index
    %c0_6 = arith.constant 0 : index
    %5 = vector.load %arg3[%c1, %c0_5, %c0_6] : memref<7x176x28xf32, #tpu.memory_space<vmem>>, vector<1x176x28xf32>
    %6 = vector.shape_cast %5 : vector<1x176x28xf32> to vector<176x28xf32>
    %c0_7 = arith.constant 0 : index
    %c0_8 = arith.constant 0 : index
    %c1_9 = arith.constant 1 : index
    %7 = vector.load %arg1[%c0_7, %c0_8, %c1_9] : memref<1x28x28xf32, #tpu.memory_space<vmem>>, vector<1x28x22xf32>
    %8 = vector.shape_cast %7 : vector<1x28x22xf32> to vector<28x22xf32>
    %cst_10 = arith.constant dense<0.000000e+00> : vector<176x22xf32>
    %9 = tpu.matmul %6, %8, %cst_10 {dimension_numbers = #tpu.dot_dimension_numbers<[1], [0], [0], [1], [0, 0, 1, 1], [], []>} : vector<176x28xf32>, vector<28x22xf32>, vector<176x22xf32> -> vector<176x22xf32>
    %10 = arith.addf %4, %9 : vector<176x22xf32>
    %c2 = arith.constant 2 : index
    %c0_11 = arith.constant 0 : index
    %c0_12 = arith.constant 0 : index
    %11 = vector.load %arg3[%c2, %c0_11, %c0_12] : memref<7x176x28xf32, #tpu.memory_space<vmem>>, vector<1x176x28xf32>
    %12 = vector.shape_cast %11 : vector<1x176x28xf32> to vector<176x28xf32>
    %c0_13 = arith.constant 0 : index
    %c0_14 = arith.constant 0 : index
    %c2_15 = arith.constant 2 : index
    %13 = vector.load %arg1[%c0_13, %c0_14, %c2_15] : memref<1x28x28xf32, #tpu.memory_space<vmem>>, vector<1x28x22xf32>
    %14 = vector.shape_cast %13 : vector<1x28x22xf32> to vector<28x22xf32>
    %cst_16 = arith.constant dense<0.000000e+00> : vector<176x22xf32>
    %15 = tpu.matmul %12, %14, %cst_16 {dimension_numbers = #tpu.dot_dimension_numbers<[1], [0], [0], [1], [0, 0, 1, 1], [], []>} : vector<176x28xf32>, vector<28x22xf32>, vector<176x22xf32> -> vector<176x22xf32>
    %16 = arith.addf %10, %15 : vector<176x22xf32>
    %c3 = arith.constant 3 : index
    %c0_17 = arith.constant 0 : index
    %c0_18 = arith.constant 0 : index
    %17 = vector.load %arg3[%c3, %c0_17, %c0_18] : memref<7x176x28xf32, #tpu.memory_space<vmem>>, vector<1x176x28xf32>
    %18 = vector.shape_cast %17 : vector<1x176x28xf32> to vector<176x28xf32>
    %c0_19 = arith.constant 0 : index
    %c0_20 = arith.constant 0 : index
    %c3_21 = arith.constant 3 : index
    %19 = vector.load %arg1[%c0_19, %c0_20, %c3_21] : memref<1x28x28xf32, #tpu.memory_space<vmem>>, vector<1x28x22xf32>
    %20 = vector.shape_cast %19 : vector<1x28x22xf32> to vector<28x22xf32>
    %cst_22 = arith.constant dense<0.000000e+00> : vector<176x22xf32>
    %21 = tpu.matmul %18, %20, %cst_22 {dimension_numbers = #tpu.dot_dimension_numbers<[1], [0], [0], [1], [0, 0, 1, 1], [], []>} : vector<176x28xf32>, vector<28x22xf32>, vector<176x22xf32> -> vector<176x22xf32>
    %22 = arith.addf %16, %21 : vector<176x22xf32>
    %c4 = arith.constant 4 : index
    %c0_23 = arith.constant 0 : index
    %c0_24 = arith.constant 0 : index
    %23 = vector.load %arg3[%c4, %c0_23, %c0_24] : memref<7x176x28xf32, #tpu.memory_space<vmem>>, vector<1x176x28xf32>
    %24 = vector.shape_cast %23 : vector<1x176x28xf32> to vector<176x28xf32>
    %c0_25 = arith.constant 0 : index
    %c0_26 = arith.constant 0 : index
    %c4_27 = arith.constant 4 : index
    %25 = vector.load %arg1[%c0_25, %c0_26, %c4_27] : memref<1x28x28xf32, #tpu.memory_space<vmem>>, vector<1x28x22xf32>
    %26 = vector.shape_cast %25 : vector<1x28x22xf32> to vector<28x22xf32>
    %cst_28 = arith.constant dense<0.000000e+00> : vector<176x22xf32>
    %27 = tpu.matmul %24, %26, %cst_28 {dimension_numbers = #tpu.dot_dimension_numbers<[1], [0], [0], [1], [0, 0, 1, 1], [], []>} : vector<176x28xf32>, vector<28x22xf32>, vector<176x22xf32> -> vector<176x22xf32>
    %28 = arith.addf %22, %27 : vector<176x22xf32>
    %c5 = arith.constant 5 : index
    %c0_29 = arith.constant 0 : index
    %c0_30 = arith.constant 0 : index
    %29 = vector.load %arg3[%c5, %c0_29, %c0_30] : memref<7x176x28xf32, #tpu.memory_space<vmem>>, vector<1x176x28xf32>
    %30 = vector.shape_cast %29 : vector<1x176x28xf32> to vector<176x28xf32>
    %c0_31 = arith.constant 0 : index
    %c0_32 = arith.constant 0 : index
    %c5_33 = arith.constant 5 : index
    %31 = vector.load %arg1[%c0_31, %c0_32, %c5_33] : memref<1x28x28xf32, #tpu.memory_space<vmem>>, vector<1x28x22xf32>
    %32 = vector.shape_cast %31 : vector<1x28x22xf32> to vector<28x22xf32>
    %cst_34 = arith.constant dense<0.000000e+00> : vector<176x22xf32>
    %33 = tpu.matmul %30, %32, %cst_34 {dimension_numbers = #tpu.dot_dimension_numbers<[1], [0], [0], [1], [0, 0, 1, 1], [], []>} : vector<176x28xf32>, vector<28x22xf32>, vector<176x22xf32> -> vector<176x22xf32>
    %34 = arith.addf %28, %33 : vector<176x22xf32>
    %c6 = arith.constant 6 : index
    %c0_35 = arith.constant 0 : index
    %c0_36 = arith.constant 0 : index
    %35 = vector.load %arg3[%c6, %c0_35, %c0_36] : memref<7x176x28xf32, #tpu.memory_space<vmem>>, vector<1x176x28xf32>
    %36 = vector.shape_cast %35 : vector<1x176x28xf32> to vector<176x28xf32>
    %c0_37 = arith.constant 0 : index
    %c0_38 = arith.constant 0 : index
    %c6_39 = arith.constant 6 : index
    %37 = vector.load %arg1[%c0_37, %c0_38, %c6_39] : memref<1x28x28xf32, #tpu.memory_space<vmem>>, vector<1x28x22xf32>
    %38 = vector.shape_cast %37 : vector<1x28x22xf32> to vector<28x22xf32>
    %cst_40 = arith.constant dense<0.000000e+00> : vector<176x22xf32>
    %39 = tpu.matmul %36, %38, %cst_40 {dimension_numbers = #tpu.dot_dimension_numbers<[1], [0], [0], [1], [0, 0, 1, 1], [], []>} : vector<176x28xf32>, vector<28x22xf32>, vector<176x22xf32> -> vector<176x22xf32>
    %40 = arith.addf %34, %39 : vector<176x22xf32>
    %c0_41 = arith.constant 0 : index
    %c0_42 = arith.constant 0 : index
    %41 = vector.load %arg4[%c0_41, %c0_42] : memref<176x1xf32, #tpu.memory_space<vmem>>, vector<176x1xf32>
    %42 = vector.broadcast %41 : vector<176x1xf32> to vector<176x22xf32>
    %43 = arith.addf %40, %42 : vector<176x22xf32>
    %c0_43 = arith.constant 0 : index
    %c0_44 = arith.constant 0 : index
    %c0_45 = arith.constant 0 : index
    %44 = vector.load %arg5[%c0_43, %c0_44, %c0_45] : memref<2x22x11xf32, #tpu.memory_space<vmem>>, vector<1x22x11xf32>
    %45 = vector.shape_cast %44 : vector<1x22x11xf32> to vector<22x11xf32>
    %cst_46 = arith.constant dense<0.000000e+00> : vector<176x11xf32>
    %46 = tpu.matmul %43, %45, %cst_46 {dimension_numbers = #tpu.dot_dimension_numbers<[1], [0], [0], [1], [0, 0, 1, 1], [], []>} : vector<176x22xf32>, vector<22x11xf32>, vector<176x11xf32> -> vector<176x11xf32>
    %c1_47 = arith.constant 1 : index
    %c0_48 = arith.constant 0 : index
    %c0_49 = arith.constant 0 : index
    %47 = vector.load %arg5[%c1_47, %c0_48, %c0_49] : memref<2x22x11xf32, #tpu.memory_space<vmem>>, vector<1x22x11xf32>
    %48 = vector.shape_cast %47 : vector<1x22x11xf32> to vector<22x11xf32>
    %cst_50 = arith.constant dense<0.000000e+00> : vector<176x11xf32>
    %49 = tpu.matmul %43, %48, %cst_50 {dimension_numbers = #tpu.dot_dimension_numbers<[1], [0], [0], [1], [0, 0, 1, 1], [], []>} : vector<176x22xf32>, vector<22x11xf32>, vector<176x11xf32> -> vector<176x11xf32>
    %c0_51 = arith.constant 0 : index
    %c0_52 = arith.constant 0 : index
    %c0_53 = arith.constant 0 : index
    %50 = vector.load %arg6[%c0_51, %c0_52, %c0_53] : memref<2x88x176xf32, #tpu.memory_space<vmem>>, vector<1x88x176xf32>
    %51 = vector.shape_cast %50 : vector<1x88x176xf32> to vector<88x176xf32>
    %cst_54 = arith.constant dense<0.000000e+00> : vector<88x11xf32>
    %52 = tpu.matmul %51, %46, %cst_54 {dimension_numbers = #tpu.dot_dimension_numbers<[1], [0], [0], [1], [0, 0, 1, 1], [], []>} : vector<88x176xf32>, vector<176x11xf32>, vector<88x11xf32> -> vector<88x11xf32>
    %c0_55 = arith.constant 0 : index
    %c0_56 = arith.constant 0 : index
    %c0_57 = arith.constant 0 : index
    %53 = vector.load %arg6[%c0_55, %c0_56, %c0_57] : memref<2x88x176xf32, #tpu.memory_space<vmem>>, vector<1x88x176xf32>
    %54 = vector.shape_cast %53 : vector<1x88x176xf32> to vector<88x176xf32>
    %cst_58 = arith.constant dense<0.000000e+00> : vector<88x11xf32>
    %55 = tpu.matmul %54, %49, %cst_58 {dimension_numbers = #tpu.dot_dimension_numbers<[1], [0], [0], [1], [0, 0, 1, 1], [], []>} : vector<88x176xf32>, vector<176x11xf32>, vector<88x11xf32> -> vector<88x11xf32>
    %56 = arith.maximumf %52, %55 : vector<88x11xf32>
    %c1_59 = arith.constant 1 : index
    %c0_60 = arith.constant 0 : index
    %c0_61 = arith.constant 0 : index
    %57 = vector.load %arg6[%c1_59, %c0_60, %c0_61] : memref<2x88x176xf32, #tpu.memory_space<vmem>>, vector<1x88x176xf32>
    %58 = vector.shape_cast %57 : vector<1x88x176xf32> to vector<88x176xf32>
    %cst_62 = arith.constant dense<0.000000e+00> : vector<88x11xf32>
    %59 = tpu.matmul %58, %46, %cst_62 {dimension_numbers = #tpu.dot_dimension_numbers<[1], [0], [0], [1], [0, 0, 1, 1], [], []>} : vector<88x176xf32>, vector<176x11xf32>, vector<88x11xf32> -> vector<88x11xf32>
    %c1_63 = arith.constant 1 : index
    %c0_64 = arith.constant 0 : index
    %c0_65 = arith.constant 0 : index
    %60 = vector.load %arg6[%c1_63, %c0_64, %c0_65] : memref<2x88x176xf32, #tpu.memory_space<vmem>>, vector<1x88x176xf32>
    %61 = vector.shape_cast %60 : vector<1x88x176xf32> to vector<88x176xf32>
    %cst_66 = arith.constant dense<0.000000e+00> : vector<88x11xf32>
    %62 = tpu.matmul %61, %49, %cst_66 {dimension_numbers = #tpu.dot_dimension_numbers<[1], [0], [0], [1], [0, 0, 1, 1], [], []>} : vector<88x176xf32>, vector<176x11xf32>, vector<88x11xf32> -> vector<88x11xf32>
    %63 = arith.maximumf %59, %62 : vector<88x11xf32>
    %64 = arith.maximumf %56, %63 : vector<88x11xf32>
    %cst_67 = arith.constant 0.000000e+00 : f32
    %65 = vector.broadcast %cst_67 : f32 to vector<88x11xf32>
    %66 = arith.maximumf %64, %65 : vector<88x11xf32>
    %c0_68 = arith.constant 0 : index
    %c0_69 = arith.constant 0 : index
    %c0_70 = arith.constant 0 : index
    %67 = vector.load %arg7[%c0_68, %c0_69, %c0_70] : memref<5x70x88xf32, #tpu.memory_space<vmem>>, vector<1x70x88xf32>
    %68 = vector.shape_cast %67 : vector<1x70x88xf32> to vector<70x88xf32>
    %69 = vector.extract_strided_slice %66 {offsets = [0, 0], sizes = [88, 7], strides = [1, 1]} : vector<88x11xf32> to vector<88x7xf32>
    %cst_71 = arith.constant dense<0.000000e+00> : vector<70x7xf32>
    %70 = tpu.matmul %68, %69, %cst_71 {dimension_numbers = #tpu.dot_dimension_numbers<[1], [0], [0], [1], [0, 0, 1, 1], [], []>} : vector<70x88xf32>, vector<88x7xf32>, vector<70x7xf32> -> vector<70x7xf32>
    %c1_72 = arith.constant 1 : index
    %c0_73 = arith.constant 0 : index
    %c0_74 = arith.constant 0 : index
    %71 = vector.load %arg7[%c1_72, %c0_73, %c0_74] : memref<5x70x88xf32, #tpu.memory_space<vmem>>, vector<1x70x88xf32>
    %72 = vector.shape_cast %71 : vector<1x70x88xf32> to vector<70x88xf32>
    %73 = vector.extract_strided_slice %66 {offsets = [0, 1], sizes = [88, 7], strides = [1, 1]} : vector<88x11xf32> to vector<88x7xf32>
    %cst_75 = arith.constant dense<0.000000e+00> : vector<70x7xf32>
    %74 = tpu.matmul %72, %73, %cst_75 {dimension_numbers = #tpu.dot_dimension_numbers<[1], [0], [0], [1], [0, 0, 1, 1], [], []>} : vector<70x88xf32>, vector<88x7xf32>, vector<70x7xf32> -> vector<70x7xf32>
    %75 = arith.addf %70, %74 : vector<70x7xf32>
    %c2_76 = arith.constant 2 : index
    %c0_77 = arith.constant 0 : index
    %c0_78 = arith.constant 0 : index
    %76 = vector.load %arg7[%c2_76, %c0_77, %c0_78] : memref<5x70x88xf32, #tpu.memory_space<vmem>>, vector<1x70x88xf32>
    %77 = vector.shape_cast %76 : vector<1x70x88xf32> to vector<70x88xf32>
    %78 = vector.extract_strided_slice %66 {offsets = [0, 2], sizes = [88, 7], strides = [1, 1]} : vector<88x11xf32> to vector<88x7xf32>
    %cst_79 = arith.constant dense<0.000000e+00> : vector<70x7xf32>
    %79 = tpu.matmul %77, %78, %cst_79 {dimension_numbers = #tpu.dot_dimension_numbers<[1], [0], [0], [1], [0, 0, 1, 1], [], []>} : vector<70x88xf32>, vector<88x7xf32>, vector<70x7xf32> -> vector<70x7xf32>
    %80 = arith.addf %75, %79 : vector<70x7xf32>
    %c3_80 = arith.constant 3 : index
    %c0_81 = arith.constant 0 : index
    %c0_82 = arith.constant 0 : index
    %81 = vector.load %arg7[%c3_80, %c0_81, %c0_82] : memref<5x70x88xf32, #tpu.memory_space<vmem>>, vector<1x70x88xf32>
    %82 = vector.shape_cast %81 : vector<1x70x88xf32> to vector<70x88xf32>
    %83 = vector.extract_strided_slice %66 {offsets = [0, 3], sizes = [88, 7], strides = [1, 1]} : vector<88x11xf32> to vector<88x7xf32>
    %cst_83 = arith.constant dense<0.000000e+00> : vector<70x7xf32>
    %84 = tpu.matmul %82, %83, %cst_83 {dimension_numbers = #tpu.dot_dimension_numbers<[1], [0], [0], [1], [0, 0, 1, 1], [], []>} : vector<70x88xf32>, vector<88x7xf32>, vector<70x7xf32> -> vector<70x7xf32>
    %85 = arith.addf %80, %84 : vector<70x7xf32>
    %c4_84 = arith.constant 4 : index
    %c0_85 = arith.constant 0 : index
    %c0_86 = arith.constant 0 : index
    %86 = vector.load %arg7[%c4_84, %c0_85, %c0_86] : memref<5x70x88xf32, #tpu.memory_space<vmem>>, vector<1x70x88xf32>
    %87 = vector.shape_cast %86 : vector<1x70x88xf32> to vector<70x88xf32>
    %88 = vector.extract_strided_slice %66 {offsets = [0, 4], sizes = [88, 7], strides = [1, 1]} : vector<88x11xf32> to vector<88x7xf32>
    %cst_87 = arith.constant dense<0.000000e+00> : vector<70x7xf32>
    %89 = tpu.matmul %87, %88, %cst_87 {dimension_numbers = #tpu.dot_dimension_numbers<[1], [0], [0], [1], [0, 0, 1, 1], [], []>} : vector<70x88xf32>, vector<88x7xf32>, vector<70x7xf32> -> vector<70x7xf32>
    %90 = arith.addf %85, %89 : vector<70x7xf32>
    %c0_88 = arith.constant 0 : index
    %c0_89 = arith.constant 0 : index
    %91 = vector.load %arg8[%c0_88, %c0_89] : memref<70x1xf32, #tpu.memory_space<vmem>>, vector<70x1xf32>
    %92 = vector.broadcast %91 : vector<70x1xf32> to vector<70x7xf32>
    %93 = arith.addf %90, %92 : vector<70x7xf32>
    %c0_90 = arith.constant 0 : index
    %c0_91 = arith.constant 0 : index
    %c0_92 = arith.constant 0 : index
    %94 = vector.load %arg9[%c0_90, %c0_91, %c0_92] : memref<2x7x3xf32, #tpu.memory_space<vmem>>, vector<1x7x3xf32>
    %95 = vector.shape_cast %94 : vector<1x7x3xf32> to vector<7x3xf32>
    %cst_93 = arith.constant dense<0.000000e+00> : vector<70x3xf32>
    %96 = tpu.matmul %93, %95, %cst_93 {dimension_numbers = #tpu.dot_dimension_numbers<[1], [0], [0], [1], [0, 0, 1, 1], [], []>} : vector<70x7xf32>, vector<7x3xf32>, vector<70x3xf32> -> vector<70x3xf32>
    %c1_94 = arith.constant 1 : index
    %c0_95 = arith.constant 0 : index
    %c0_96 = arith.constant 0 : index
    %97 = vector.load %arg9[%c1_94, %c0_95, %c0_96] : memref<2x7x3xf32, #tpu.memory_space<vmem>>, vector<1x7x3xf32>
    %98 = vector.shape_cast %97 : vector<1x7x3xf32> to vector<7x3xf32>
    %cst_97 = arith.constant dense<0.000000e+00> : vector<70x3xf32>
    %99 = tpu.matmul %93, %98, %cst_97 {dimension_numbers = #tpu.dot_dimension_numbers<[1], [0], [0], [1], [0, 0, 1, 1], [], []>} : vector<70x7xf32>, vector<7x3xf32>, vector<70x3xf32> -> vector<70x3xf32>
    %c0_98 = arith.constant 0 : index
    %c0_99 = arith.constant 0 : index
    %c0_100 = arith.constant 0 : index
    %100 = vector.load %arg10[%c0_98, %c0_99, %c0_100] : memref<2x30x70xf32, #tpu.memory_space<vmem>>, vector<1x30x70xf32>
    %101 = vector.shape_cast %100 : vector<1x30x70xf32> to vector<30x70xf32>
    %cst_101 = arith.constant dense<0.000000e+00> : vector<30x3xf32>
    %102 = tpu.matmul %101, %96, %cst_101 {dimension_numbers = #tpu.dot_dimension_numbers<[1], [0], [0], [1], [0, 0, 1, 1], [], []>} : vector<30x70xf32>, vector<70x3xf32>, vector<30x3xf32> -> vector<30x3xf32>
    %c0_102 = arith.constant 0 : index
    %c0_103 = arith.constant 0 : index
    %c0_104 = arith.constant 0 : index
    %103 = vector.load %arg10[%c0_102, %c0_103, %c0_104] : memref<2x30x70xf32, #tpu.memory_space<vmem>>, vector<1x30x70xf32>
    %104 = vector.shape_cast %103 : vector<1x30x70xf32> to vector<30x70xf32>
    %cst_105 = arith.constant dense<0.000000e+00> : vector<30x3xf32>
    %105 = tpu.matmul %104, %99, %cst_105 {dimension_numbers = #tpu.dot_dimension_numbers<[1], [0], [0], [1], [0, 0, 1, 1], [], []>} : vector<30x70xf32>, vector<70x3xf32>, vector<30x3xf32> -> vector<30x3xf32>
    %106 = arith.maximumf %102, %105 : vector<30x3xf32>
    %c1_106 = arith.constant 1 : index
    %c0_107 = arith.constant 0 : index
    %c0_108 = arith.constant 0 : index
    %107 = vector.load %arg10[%c1_106, %c0_107, %c0_108] : memref<2x30x70xf32, #tpu.memory_space<vmem>>, vector<1x30x70xf32>
    %108 = vector.shape_cast %107 : vector<1x30x70xf32> to vector<30x70xf32>
    %cst_109 = arith.constant dense<0.000000e+00> : vector<30x3xf32>
    %109 = tpu.matmul %108, %96, %cst_109 {dimension_numbers = #tpu.dot_dimension_numbers<[1], [0], [0], [1], [0, 0, 1, 1], [], []>} : vector<30x70xf32>, vector<70x3xf32>, vector<30x3xf32> -> vector<30x3xf32>
    %c1_110 = arith.constant 1 : index
    %c0_111 = arith.constant 0 : index
    %c0_112 = arith.constant 0 : index
    %110 = vector.load %arg10[%c1_110, %c0_111, %c0_112] : memref<2x30x70xf32, #tpu.memory_space<vmem>>, vector<1x30x70xf32>
    %111 = vector.shape_cast %110 : vector<1x30x70xf32> to vector<30x70xf32>
    %cst_113 = arith.constant dense<0.000000e+00> : vector<30x3xf32>
    %112 = tpu.matmul %111, %99, %cst_113 {dimension_numbers = #tpu.dot_dimension_numbers<[1], [0], [0], [1], [0, 0, 1, 1], [], []>} : vector<30x70xf32>, vector<70x3xf32>, vector<30x3xf32> -> vector<30x3xf32>
    %113 = arith.maximumf %109, %112 : vector<30x3xf32>
    %114 = arith.maximumf %106, %113 : vector<30x3xf32>
    %cst_114 = arith.constant 0.000000e+00 : f32
    %115 = vector.broadcast %cst_114 : f32 to vector<30x3xf32>
    %116 = arith.maximumf %114, %115 : vector<30x3xf32>
    %c0_115 = arith.constant 0 : index
    %c0_116 = arith.constant 0 : index
    %117 = vector.load %arg12[%c0_115, %c0_116] : memref<32x1xf32, #tpu.memory_space<vmem>>, vector<32x1xf32>
    %c0_117 = arith.constant 0 : index
    %c0_118 = arith.constant 0 : index
    %c0_119 = arith.constant 0 : index
    %118 = vector.load %arg11[%c0_117, %c0_118, %c0_119] : memref<3x32x30xf32, #tpu.memory_space<vmem>>, vector<1x32x30xf32>
    %119 = vector.shape_cast %118 : vector<1x32x30xf32> to vector<32x30xf32>
    %120 = vector.extract_strided_slice %116 {offsets = [0, 0], sizes = [30, 1], strides = [1, 1]} : vector<30x3xf32> to vector<30x1xf32>
    %cst_120 = arith.constant dense<0.000000e+00> : vector<32x1xf32>
    %121 = tpu.matmul %119, %120, %cst_120 {dimension_numbers = #tpu.dot_dimension_numbers<[1], [0], [0], [1], [0, 0, 1, 1], [], []>} : vector<32x30xf32>, vector<30x1xf32>, vector<32x1xf32> -> vector<32x1xf32>
    %122 = arith.addf %117, %121 : vector<32x1xf32>
    %c1_121 = arith.constant 1 : index
    %c0_122 = arith.constant 0 : index
    %c0_123 = arith.constant 0 : index
    %123 = vector.load %arg11[%c1_121, %c0_122, %c0_123] : memref<3x32x30xf32, #tpu.memory_space<vmem>>, vector<1x32x30xf32>
    %124 = vector.shape_cast %123 : vector<1x32x30xf32> to vector<32x30xf32>
    %125 = vector.extract_strided_slice %116 {offsets = [0, 1], sizes = [30, 1], strides = [1, 1]} : vector<30x3xf32> to vector<30x1xf32>
    %cst_124 = arith.constant dense<0.000000e+00> : vector<32x1xf32>
    %126 = tpu.matmul %124, %125, %cst_124 {dimension_numbers = #tpu.dot_dimension_numbers<[1], [0], [0], [1], [0, 0, 1, 1], [], []>} : vector<32x30xf32>, vector<30x1xf32>, vector<32x1xf32> -> vector<32x1xf32>
    %127 = arith.addf %122, %126 : vector<32x1xf32>
    %c2_125 = arith.constant 2 : index
    %c0_126 = arith.constant 0 : index
    %c0_127 = arith.constant 0 : index
    %128 = vector.load %arg11[%c2_125, %c0_126, %c0_127] : memref<3x32x30xf32, #tpu.memory_space<vmem>>, vector<1x32x30xf32>
    %129 = vector.shape_cast %128 : vector<1x32x30xf32> to vector<32x30xf32>
    %130 = vector.extract_strided_slice %116 {offsets = [0, 2], sizes = [30, 1], strides = [1, 1]} : vector<30x3xf32> to vector<30x1xf32>
    %cst_128 = arith.constant dense<0.000000e+00> : vector<32x1xf32>
    %131 = tpu.matmul %129, %130, %cst_128 {dimension_numbers = #tpu.dot_dimension_numbers<[1], [0], [0], [1], [0, 0, 1, 1], [], []>} : vector<32x30xf32>, vector<30x1xf32>, vector<32x1xf32> -> vector<32x1xf32>
    %132 = arith.addf %127, %131 : vector<32x1xf32>
    %cst_129 = arith.constant 0.000000e+00 : f32
    %133 = vector.broadcast %cst_129 : f32 to vector<32x1xf32>
    %134 = arith.maximumf %132, %133 : vector<32x1xf32>
    %c0_130 = arith.constant 0 : index
    %c0_131 = arith.constant 0 : index
    %c0_132 = arith.constant 0 : index
    %135 = vector.load %arg13[%c0_130, %c0_131, %c0_132] : memref<3x2x32xf32, #tpu.memory_space<vmem>>, vector<1x2x32xf32>
    %136 = vector.shape_cast %135 : vector<1x2x32xf32> to vector<2x32xf32>
    %cst_133 = arith.constant dense<0.000000e+00> : vector<2x1xf32>
    %137 = tpu.matmul %136, %134, %cst_133 {dimension_numbers = #tpu.dot_dimension_numbers<[1], [0], [0], [1], [0, 0, 1, 1], [], []>} : vector<2x32xf32>, vector<32x1xf32>, vector<2x1xf32> -> vector<2x1xf32>
    %c0_134 = arith.constant 0 : index
    %c0_135 = arith.constant 0 : index
    %138 = vector.load %arg14[%c0_134, %c0_135] : memref<2x3xf32, #tpu.memory_space<vmem>>, vector<2x1xf32>
    %139 = arith.addf %137, %138 : vector<2x1xf32>
    %c0_136 = arith.constant 0 : index
    %c0_137 = arith.constant 0 : index
    %c0_138 = arith.constant 0 : index
    %140 = vector.load %arg16[%c0_136, %c0_137, %c0_138] : memref<1x2x3xf32, #tpu.memory_space<vmem>>, vector<1x2x1xf32>
    %141 = vector.shape_cast %140 : vector<1x2x1xf32> to vector<2x1xf32>
    %142 = vector.shape_cast %139 : vector<2x1xf32> to vector<1x2x1xf32>
    tpu.vector_store %arg16[%c0_136, %c0_137, %c0_138], %142 {strides = array<i32>} : memref<1x2x3xf32, #tpu.memory_space<vmem>>, vector<1x2x1xf32>,
    %c1_139 = arith.constant 1 : index
    %c0_140 = arith.constant 0 : index
    %c0_141 = arith.constant 0 : index
    %143 = vector.load %arg13[%c1_139, %c0_140, %c0_141] : memref<3x2x32xf32, #tpu.memory_space<vmem>>, vector<1x2x32xf32>
    %144 = vector.shape_cast %143 : vector<1x2x32xf32> to vector<2x32xf32>
    %cst_142 = arith.constant dense<0.000000e+00> : vector<2x1xf32>
    %145 = tpu.matmul %144, %134, %cst_142 {dimension_numbers = #tpu.dot_dimension_numbers<[1], [0], [0], [1], [0, 0, 1, 1], [], []>} : vector<2x32xf32>, vector<32x1xf32>, vector<2x1xf32> -> vector<2x1xf32>
    %c0_143 = arith.constant 0 : index
    %c1_144 = arith.constant 1 : index
    %146 = vector.load %arg14[%c0_143, %c1_144] : memref<2x3xf32, #tpu.memory_space<vmem>>, vector<2x1xf32>
    %147 = arith.addf %145, %146 : vector<2x1xf32>
    %c0_145 = arith.constant 0 : index
    %c0_146 = arith.constant 0 : index
    %c1_147 = arith.constant 1 : index
    %148 = vector.load %arg16[%c0_145, %c0_146, %c1_147] : memref<1x2x3xf32, #tpu.memory_space<vmem>>, vector<1x2x1xf32>
    %149 = vector.shape_cast %148 : vector<1x2x1xf32> to vector<2x1xf32>
    %150 = vector.shape_cast %147 : vector<2x1xf32> to vector<1x2x1xf32>
    tpu.vector_store %arg16[%c0_145, %c0_146, %c1_147], %150 {strides = array<i32>} : memref<1x2x3xf32, #tpu.memory_space<vmem>>, vector<1x2x1xf32>,
    %c2_148 = arith.constant 2 : index
    %c0_149 = arith.constant 0 : index
    %c0_150 = arith.constant 0 : index
    %151 = vector.load %arg13[%c2_148, %c0_149, %c0_150] : memref<3x2x32xf32, #tpu.memory_space<vmem>>, vector<1x2x32xf32>
    %152 = vector.shape_cast %151 : vector<1x2x32xf32> to vector<2x32xf32>
    %cst_151 = arith.constant dense<0.000000e+00> : vector<2x1xf32>
    %153 = tpu.matmul %152, %134, %cst_151 {dimension_numbers = #tpu.dot_dimension_numbers<[1], [0], [0], [1], [0, 0, 1, 1], [], []>} : vector<2x32xf32>, vector<32x1xf32>, vector<2x1xf32> -> vector<2x1xf32>
    %c0_152 = arith.constant 0 : index
    %c2_153 = arith.constant 2 : index
    %154 = vector.load %arg14[%c0_152, %c2_153] : memref<2x3xf32, #tpu.memory_space<vmem>>, vector<2x1xf32>
    %155 = arith.addf %153, %154 : vector<2x1xf32>
    %c0_154 = arith.constant 0 : index
    %c0_155 = arith.constant 0 : index
    %c2_156 = arith.constant 2 : index
    %156 = vector.load %arg16[%c0_154, %c0_155, %c2_156] : memref<1x2x3xf32, #tpu.memory_space<vmem>>, vector<1x2x1xf32>
    %157 = vector.shape_cast %156 : vector<1x2x1xf32> to vector<2x1xf32>
    %158 = vector.shape_cast %155 : vector<2x1xf32> to vector<1x2x1xf32>
    tpu.vector_store %arg16[%c0_154, %c0_155, %c2_156], %158 {strides = array<i32>} : memref<1x2x3xf32, #tpu.memory_space<vmem>>, vector<1x2x1xf32>,
    %c0_157 = arith.constant 0 : index
    %c0_158 = arith.constant 0 : index
    %159 = vector.load %arg2[%c0_157, %c0_158] : memref<2x9xf32, #tpu.memory_space<vmem>>, vector<1x9xf32>
    %c1_159 = arith.constant 1 : index
    %c0_160 = arith.constant 0 : index
    %160 = vector.load %arg2[%c1_159, %c0_160] : memref<2x9xf32, #tpu.memory_space<vmem>>, vector<1x9xf32>
    %161 = vector.extract_strided_slice %139 {offsets = [0, 0], sizes = [1, 1], strides = [1, 1]} : vector<2x1xf32> to vector<1x1xf32>
    %162 = vector.broadcast %161 : vector<1x1xf32> to vector<1x9xf32>
    %163 = arith.mulf %162, %159 : vector<1x9xf32>
    %164 = vector.extract_strided_slice %147 {offsets = [0, 0], sizes = [1, 1], strides = [1, 1]} : vector<2x1xf32> to vector<1x1xf32>
    %165 = vector.broadcast %164 : vector<1x1xf32> to vector<1x9xf32>
    %166 = arith.mulf %165, %160 : vector<1x9xf32>
    %167 = arith.addf %163, %166 : vector<1x9xf32>
    %168 = vector.extract_strided_slice %155 {offsets = [0, 0], sizes = [1, 1], strides = [1, 1]} : vector<2x1xf32> to vector<1x1xf32>
    %169 = vector.broadcast %168 : vector<1x1xf32> to vector<1x9xf32>
    %170 = arith.addf %167, %169 : vector<1x9xf32>
    %171 = vector.extract_strided_slice %139 {offsets = [1, 0], sizes = [1, 1], strides = [1, 1]} : vector<2x1xf32> to vector<1x1xf32>
    %172 = vector.broadcast %171 : vector<1x1xf32> to vector<1x9xf32>
    %173 = arith.mulf %172, %159 : vector<1x9xf32>
    %174 = vector.extract_strided_slice %147 {offsets = [1, 0], sizes = [1, 1], strides = [1, 1]} : vector<2x1xf32> to vector<1x1xf32>
    %175 = vector.broadcast %174 : vector<1x1xf32> to vector<1x9xf32>
    %176 = arith.mulf %175, %160 : vector<1x9xf32>
    %177 = arith.addf %173, %176 : vector<1x9xf32>
    %178 = vector.extract_strided_slice %155 {offsets = [1, 0], sizes = [1, 1], strides = [1, 1]} : vector<2x1xf32> to vector<1x1xf32>
    %179 = vector.broadcast %178 : vector<1x1xf32> to vector<1x9xf32>
    %180 = arith.addf %177, %179 : vector<1x9xf32>
    %cst_161 = arith.constant 1.000000e+00 : f32
    %181 = vector.broadcast %cst_161 : f32 to vector<1x9xf32>
    %182 = arith.addf %170, %181 : vector<1x9xf32>
    %cst_162 = arith.constant 2.800000e+01 : f32
    %183 = vector.broadcast %cst_162 : f32 to vector<1x9xf32>
    %184 = arith.mulf %182, %183 : vector<1x9xf32>
    %cst_163 = arith.constant 1.000000e+00 : f32
    %185 = vector.broadcast %cst_163 : f32 to vector<1x9xf32>
    %186 = arith.subf %184, %185 : vector<1x9xf32>
    %cst_164 = arith.constant 5.000000e-01 : f32
    %187 = vector.broadcast %cst_164 : f32 to vector<1x9xf32>
    %188 = arith.mulf %186, %187 : vector<1x9xf32>
    %cst_165 = arith.constant 1.000000e+00 : f32
    %189 = vector.broadcast %cst_165 : f32 to vector<1x9xf32>
    %190 = arith.addf %180, %189 : vector<1x9xf32>
    %cst_166 = arith.constant 2.800000e+01 : f32
    %191 = vector.broadcast %cst_166 : f32 to vector<1x9xf32>
    %192 = arith.mulf %190, %191 : vector<1x9xf32>
    %cst_167 = arith.constant 1.000000e+00 : f32
    %193 = vector.broadcast %cst_167 : f32 to vector<1x9xf32>
    %194 = arith.subf %192, %193 : vector<1x9xf32>
    %cst_168 = arith.constant 5.000000e-01 : f32
    %195 = vector.broadcast %cst_168 : f32 to vector<1x9xf32>
    %196 = arith.mulf %194, %195 : vector<1x9xf32>
    %197 = tpu.iota {dimensions = array<i32: 0>} : vector<28x9xi32>
    %198 = arith.sitofp %197 : vector<28x9xi32> to vector<28x9xf32>
    %199 = tpu.iota {dimensions = array<i32: 0>} : vector<28x9xi32>
    %200 = arith.sitofp %199 : vector<28x9xi32> to vector<28x9xf32>
    %201 = vector.broadcast %188 : vector<1x9xf32> to vector<28x9xf32>
    %202 = arith.subf %198, %201 : vector<28x9xf32>
    %203 = math.absf %202 : vector<28x9xf32>
    %cst_169 = arith.constant 1.000000e+00 : f32
    %204 = vector.broadcast %cst_169 : f32 to vector<28x9xf32>
    %205 = arith.subf %204, %203 : vector<28x9xf32>
    %cst_170 = arith.constant 0.000000e+00 : f32
    %206 = vector.broadcast %cst_170 : f32 to vector<28x9xf32>
    %207 = arith.maximumf %205, %206 : vector<28x9xf32>
    %208 = vector.broadcast %196 : vector<1x9xf32> to vector<28x9xf32>
    %209 = arith.subf %200, %208 : vector<28x9xf32>
    %210 = math.absf %209 : vector<28x9xf32>
    %cst_171 = arith.constant 1.000000e+00 : f32
    %211 = vector.broadcast %cst_171 : f32 to vector<28x9xf32>
    %212 = arith.subf %211, %210 : vector<28x9xf32>
    %cst_172 = arith.constant 0.000000e+00 : f32
    %213 = vector.broadcast %cst_172 : f32 to vector<28x9xf32>
    %214 = arith.maximumf %212, %213 : vector<28x9xf32>
    %c0_173 = arith.constant 0 : index
    %c0_174 = arith.constant 0 : index
    %c0_175 = arith.constant 0 : index
    %215 = vector.load %arg1[%c0_173, %c0_174, %c0_175] : memref<1x28x28xf32, #tpu.memory_space<vmem>>, vector<1x28x28xf32>
    %216 = vector.shape_cast %215 : vector<1x28x28xf32> to vector<28x28xf32>
    %cst_176 = arith.constant dense<0.000000e+00> : vector<28x9xf32>
    %217 = tpu.matmul %216, %207, %cst_176 {dimension_numbers = #tpu.dot_dimension_numbers<[1], [0], [0], [1], [0, 0, 1, 1], [], []>} : vector<28x28xf32>, vector<28x9xf32>, vector<28x9xf32> -> vector<28x9xf32>
    %218 = arith.mulf %217, %214 : vector<28x9xf32>
    %cst_177 = arith.constant dense<0.000000e+00> : vector<9xf32>
    %219 = vector.multi_reduction <add>, %218, %cst_177 [0] : vector<28x9xf32> to vector<9xf32>
    %220 = vector.shape_cast %219 : vector<9xf32> to vector<1x9xf32>
    %c0_178 = arith.constant 0 : index
    %c0_179 = arith.constant 0 : index
    %c0_180 = arith.constant 0 : index
    %221 = vector.load %arg15[%c0_178, %c0_179, %c0_180] : memref<1x1x9xf32, #tpu.memory_space<vmem>>, vector<1x1x9xf32>
    %222 = vector.shape_cast %221 : vector<1x1x9xf32> to vector<1x9xf32>
    %223 = vector.shape_cast %220 : vector<1x9xf32> to vector<1x1x9xf32>
    tpu.vector_store %arg15[%c0_178, %c0_179, %c0_180], %223 {strides = array<i32>} : memref<1x1x9xf32, #tpu.memory_space<vmem>>, vector<1x1x9xf32>,
    return
  }
  func.func @transform_0(%arg0: i32) -> (i32, i32, i32) {
    %c0_i32 = arith.constant 0 : i32
    %c0_i32_0 = arith.constant 0 : i32
    %c0_i32_1 = arith.constant 0 : i32
    return %arg0, %c0_i32, %c0_i32_0 : i32, i32, i32
  }
  func.func @transform_1(%arg0: i32) -> (i32, i32) {
    %c0_i32 = arith.constant 0 : i32
    %c0_i32_0 = arith.constant 0 : i32
    %c0_i32_1 = arith.constant 0 : i32
    return %c0_i32, %c0_i32_0 : i32, i32
  }
  func.func @transform_2(%arg0: i32) -> (i32, i32, i32) {
    %c0_i32 = arith.constant 0 : i32
    %c0_i32_0 = arith.constant 0 : i32
    %c0_i32_1 = arith.constant 0 : i32
    %c0_i32_2 = arith.constant 0 : i32
    return %c0_i32, %c0_i32_0, %c0_i32_1 : i32, i32, i32
  }
  func.func @transform_3(%arg0: i32) -> (i32, i32) {
    %c0_i32 = arith.constant 0 : i32
    %c0_i32_0 = arith.constant 0 : i32
    %c0_i32_1 = arith.constant 0 : i32
    return %c0_i32, %c0_i32_0 : i32, i32
  }
  func.func @transform_4(%arg0: i32) -> (i32, i32, i32) {
    %c0_i32 = arith.constant 0 : i32
    %c0_i32_0 = arith.constant 0 : i32
    %c0_i32_1 = arith.constant 0 : i32
    %c0_i32_2 = arith.constant 0 : i32
    return %c0_i32, %c0_i32_0, %c0_i32_1 : i32, i32, i32
  }
  func.func @transform_5(%arg0: i32) -> (i32, i32, i32) {
    %c0_i32 = arith.constant 0 : i32
    %c0_i32_0 = arith.constant 0 : i32
    %c0_i32_1 = arith.constant 0 : i32
    %c0_i32_2 = arith.constant 0 : i32
    return %c0_i32, %c0_i32_0, %c0_i32_1 : i32, i32, i32
  }
  func.func @transform_6(%arg0: i32) -> (i32, i32, i32) {
    %c0_i32 = arith.constant 0 : i32
    %c0_i32_0 = arith.constant 0 : i32
    %c0_i32_1 = arith.constant 0 : i32
    %c0_i32_2 = arith.constant 0 : i32
    return %c0_i32, %c0_i32_0, %c0_i32_1 : i32, i32, i32
  }
  func.func @transform_7(%arg0: i32) -> (i32, i32) {
    %c0_i32 = arith.constant 0 : i32
    %c0_i32_0 = arith.constant 0 : i32
    %c0_i32_1 = arith.constant 0 : i32
    return %c0_i32, %c0_i32_0 : i32, i32
  }
  func.func @transform_8(%arg0: i32) -> (i32, i32, i32) {
    %c0_i32 = arith.constant 0 : i32
    %c0_i32_0 = arith.constant 0 : i32
    %c0_i32_1 = arith.constant 0 : i32
    %c0_i32_2 = arith.constant 0 : i32
    return %c0_i32, %c0_i32_0, %c0_i32_1 : i32, i32, i32
  }
  func.func @transform_9(%arg0: i32) -> (i32, i32, i32) {
    %c0_i32 = arith.constant 0 : i32
    %c0_i32_0 = arith.constant 0 : i32
    %c0_i32_1 = arith.constant 0 : i32
    %c0_i32_2 = arith.constant 0 : i32
    return %c0_i32, %c0_i32_0, %c0_i32_1 : i32, i32, i32
  }
  func.func @transform_10(%arg0: i32) -> (i32, i32, i32) {
    %c0_i32 = arith.constant 0 : i32
    %c0_i32_0 = arith.constant 0 : i32
    %c0_i32_1 = arith.constant 0 : i32
    %c0_i32_2 = arith.constant 0 : i32
    return %c0_i32, %c0_i32_0, %c0_i32_1 : i32, i32, i32
  }
  func.func @transform_11(%arg0: i32) -> (i32, i32) {
    %c0_i32 = arith.constant 0 : i32
    %c0_i32_0 = arith.constant 0 : i32
    %c0_i32_1 = arith.constant 0 : i32
    return %c0_i32, %c0_i32_0 : i32, i32
  }
  func.func @transform_12(%arg0: i32) -> (i32, i32, i32) {
    %c0_i32 = arith.constant 0 : i32
    %c0_i32_0 = arith.constant 0 : i32
    %c0_i32_1 = arith.constant 0 : i32
    %c0_i32_2 = arith.constant 0 : i32
    return %c0_i32, %c0_i32_0, %c0_i32_1 : i32, i32, i32
  }
  func.func @transform_13(%arg0: i32) -> (i32, i32) {
    %c0_i32 = arith.constant 0 : i32
    %c0_i32_0 = arith.constant 0 : i32
    %c0_i32_1 = arith.constant 0 : i32
    return %c0_i32, %c0_i32_0 : i32, i32
  }
  func.func @transform_14(%arg0: i32) -> (i32, i32, i32) {
    %c0_i32 = arith.constant 0 : i32
    %c0_i32_0 = arith.constant 0 : i32
    %c0_i32_1 = arith.constant 0 : i32
    return %arg0, %c0_i32, %c0_i32_0 : i32, i32, i32
  }
  func.func @transform_15(%arg0: i32) -> (i32, i32, i32) {
    %c0_i32 = arith.constant 0 : i32
    %c0_i32_0 = arith.constant 0 : i32
    %c0_i32_1 = arith.constant 0 : i32
    return %arg0, %c0_i32, %c0_i32_0 : i32, i32, i32
  }
}

</mosaic_0001>

<llo_original>
// kernel: _lambda_.1
$region0: #{_lambda_.1}
  #allocation0 [shape = 'u32[]', space=smem, size = 0x4, offset = 0x4, fixed_abs, tag = 'smem constant byte address 0x4 - core index']
  #allocation1 [shape = 'u32[72,128]{1,0:T(1,128)}', space=vmem, size = 0x9000, scoped, tag = 'internal scratch']
  %s0 = inlined_call_operand.vmem [shape: f32[2,28,28], index: 0, kind: input, shape index: {}]
  %s1 = inlined_call_operand.vmem [shape: f32[2,9], index: 1, kind: input, shape index: {}]
  %s2 = inlined_call_operand.vmem [shape: f32[7,176,28], index: 2, kind: input, shape index: {}]
  %s3 = inlined_call_operand.vmem [shape: f32[176,1], index: 3, kind: input, shape index: {}]
  %s4 = inlined_call_operand.vmem [shape: f32[2,22,11], index: 4, kind: input, shape index: {}]
  %s5 = inlined_call_operand.vmem [shape: f32[2,88,176], index: 5, kind: input, shape index: {}]
  %s6 = inlined_call_operand.vmem [shape: f32[5,70,88], index: 6, kind: input, shape index: {}]
  %s7 = inlined_call_operand.vmem [shape: f32[70,1], index: 7, kind: input, shape index: {}]
  %s8 = inlined_call_operand.vmem [shape: f32[2,7,3], index: 8, kind: input, shape index: {}]
  %s9 = inlined_call_operand.vmem [shape: f32[2,30,70], index: 9, kind: input, shape index: {}]
  %s10 = inlined_call_operand.vmem [shape: f32[3,32,30], index: 10, kind: input, shape index: {}]
  %s11 = inlined_call_operand.vmem [shape: f32[32,1], index: 11, kind: input, shape index: {}]
  %s12 = inlined_call_operand.vmem [shape: f32[3,2,32], index: 12, kind: input, shape index: {}]
  %s13 = inlined_call_operand.vmem [shape: f32[2,3], index: 13, kind: input, shape index: {}]
  %s14 = inlined_call_operand.vmem [shape: f32[2,1,9], index: 14, kind: output, shape index: {0}]
  %s15 = inlined_call_operand.hbm [shape: f32[2,2,3], index: 15, kind: output, shape index: {1}]
  %16 = xla_tuple %s14, %s15
  %s17 = sld [smem:[#allocation0]]
  $region97: #{_lambda_.1} parent=0
    _
  %s19 = ssub.s32 1, %s17
  %s20 = scalar_select 0, %s19, %s17
  $region1: #{_lambda_.1} parent=0
    #allocation2 [shape = 'u8[2048]{0}', space=vmem, size = 0x800, scoped, tag = 'output window, operand 1']
    #allocation3 [shape = 's32[2]{0}', space=sflag, size = 0x8, scoped, tag = 'scoped memory for _lambda_.1']
    %21 = vsyncpa [#allocation3], 0
    %s22 = scalar_lea.sflag [#allocation3], 1
    %23 = vsyncpa %s22, 0
    loop: start=0, step=1, limit=4
    $region2: #{_lambda_.1} parent=1 // loop_pre_header
      _
    $region3: #{_lambda_.1} parent=1 // loop_header
      %s25 = sphi 0, %s29
      %p26 = scmp.ge.s32.totalorder %s25, 4
      %s35 = sphi 0, %s37
      %s38 = sphi 0, %s35
      %s39 = sphi 0, %s38
      %s55 = sphi 0, %s39
      %s59 = sphi 0, %s59
      %s61 = sphi 0, %s59
      %s62 = sphi 0, %s61
      %s76 = sphi 0, %s62
      %s80 = sphi 0, %s80
      %s82 = sphi 0, %s80
      %s83 = sphi 0, %s82
      %s97 = sphi 0, %s83
      %s101 = sphi 0, %s101
      %s103 = sphi 0, %s101
      %s104 = sphi 0, %s103
      %s118 = sphi 0, %s104
      %s122 = sphi 0, %s122
      %s124 = sphi 0, %s122
      %s125 = sphi 0, %s124
      %s139 = sphi 0, %s125
      %s143 = sphi 0, %s143
      %s145 = sphi 0, %s143
      %s146 = sphi 0, %s145
      %s160 = sphi 0, %s146
      %s164 = sphi 0, %s164
      %s166 = sphi 0, %s164
      %s167 = sphi 0, %s166
      %s181 = sphi 0, %s167
      %s185 = sphi 0, %s185
      %s187 = sphi 0, %s185
      %s188 = sphi 0, %s187
      %s202 = sphi 0, %s188
      %s206 = sphi 0, %s206
      %s208 = sphi 0, %s206
      %s209 = sphi 0, %s208
      %s223 = sphi 0, %s209
      %s227 = sphi 0, %s227
      %s229 = sphi 0, %s227
      %s230 = sphi 0, %s229
      %s244 = sphi 0, %s230
      %s248 = sphi 0, %s248
      %s250 = sphi 0, %s248
      %s251 = sphi 0, %s250
      %s265 = sphi 0, %s251
      %s269 = sphi 0, %s269
      %s271 = sphi 0, %s269
      %s272 = sphi 0, %s271
      %s286 = sphi 0, %s272
      %s290 = sphi 0, %s290
      %s292 = sphi 0, %s290
      %s293 = sphi 0, %s292
      %s307 = sphi 0, %s293
      %s311 = sphi 0, %s311
      %s313 = sphi 0, %s311
      %s314 = sphi 0, %s313
      %s328 = sphi 0, %s314
      %s334 = sphi 0, %s336
      %s337 = sphi 0, %s334
      %s338 = sphi 0, %s337
      %s354 = sphi 0, %s338
      %s360 = sphi 0, %s362
      %s363 = sphi 0, %s360
      %s364 = sphi 0, %s363
      %s380 = sphi 0, %s364
    $region4: #{_lambda_.1} parent=1 // loop_header_branch
      %28 = sbr.rel (%p26) target = $region8
    $region5: #{_lambda_.1} parent=1 // loop_body
      %s30 = ssub.s32 %s25, 1
      %s31 = ssub.s32 %s25, 2
      %s32 = sadd.s32 %s25, 1
      %s33 = ssub.s32 %s25, %s32
      %p34 = scmp.eq.s32.totalorder %s33, 0
      %s36 = sadd.s32 %s35, 1
      %s37 = scalar_select %p34, %s35, %s36
      %p40 = pneg %p34
      %p41 = scmp.eq.s32.totalorder %s25, 1
      %p42 = por %p40, %p41
      %p43 = scmp.ne.s32.totalorder %s35, %s38
      %p44 = scmp.eq.s32.totalorder %s25, 0
      %p45 = por %p43, %p44
      %p46 = scmp.ne.s32.totalorder %s35, %s38
      %p47 = scmp.eq.s32.totalorder %s30, 1
      %p48 = por %p46, %p47
      %p49 = scmp.ne.s32.totalorder %s38, %s39
      %p50 = scmp.eq.s32.totalorder %s30, 0
      %p51 = por %p49, %p50
      %p52 = scmp.ne.s32.totalorder %s38, %s39
      %p53 = scmp.eq.s32.totalorder %s31, 1
      %p54 = por %p52, %p53
      %p56 = scmp.ne.s32.totalorder %s39, %s55
      %p57 = scmp.eq.s32.totalorder %s31, 0
      %p58 = por %p56, %p57
      %s60 = sadd.s32 %s59, 1
      %p63 = scmp.eq.s32.totalorder %s25, 1
      %p64 = scmp.ne.s32.totalorder %s59, %s61
      %p65 = scmp.eq.s32.totalorder %s25, 0
      %p66 = por %p64, %p65
      %p67 = scmp.ne.s32.totalorder %s59, %s61
      %p68 = scmp.eq.s32.totalorder %s30, 1
      %p69 = por %p67, %p68
      %p70 = scmp.ne.s32.totalorder %s61, %s62
      %p71 = scmp.eq.s32.totalorder %s30, 0
      %p72 = por %p70, %p71
      %p73 = scmp.ne.s32.totalorder %s61, %s62
      %p74 = scmp.eq.s32.totalorder %s31, 1
      %p75 = por %p73, %p74
      %p77 = scmp.ne.s32.totalorder %s62, %s76
      %p78 = scmp.eq.s32.totalorder %s31, 0
      %p79 = por %p77, %p78
      %s81 = sadd.s32 %s80, 1
      %p84 = scmp.eq.s32.totalorder %s25, 1
      %p85 = scmp.ne.s32.totalorder %s80, %s82
      %p86 = scmp.eq.s32.totalorder %s25, 0
      %p87 = por %p85, %p86
      %p88 = scmp.ne.s32.totalorder %s80, %s82
      %p89 = scmp.eq.s32.totalorder %s30, 1
      %p90 = por %p88, %p89
      %p91 = scmp.ne.s32.totalorder %s82, %s83
      %p92 = scmp.eq.s32.totalorder %s30, 0
      %p93 = por %p91, %p92
      %p94 = scmp.ne.s32.totalorder %s82, %s83
      %p95 = scmp.eq.s32.totalorder %s31, 1
      %p96 = por %p94, %p95
      %p98 = scmp.ne.s32.totalorder %s83, %s97
      %p99 = scmp.eq.s32.totalorder %s31, 0
      %p100 = por %p98, %p99
      %s102 = sadd.s32 %s101, 1
      %p105 = scmp.eq.s32.totalorder %s25, 1
      %p106 = scmp.ne.s32.totalorder %s101, %s103
      %p107 = scmp.eq.s32.totalorder %s25, 0
      %p108 = por %p106, %p107
      %p109 = scmp.ne.s32.totalorder %s101, %s103
      %p110 = scmp.eq.s32.totalorder %s30, 1
      %p111 = por %p109, %p110
      %p112 = scmp.ne.s32.totalorder %s103, %s104
      %p113 = scmp.eq.s32.totalorder %s30, 0
      %p114 = por %p112, %p113
      %p115 = scmp.ne.s32.totalorder %s103, %s104
      %p116 = scmp.eq.s32.totalorder %s31, 1
      %p117 = por %p115, %p116
      %p119 = scmp.ne.s32.totalorder %s104, %s118
      %p120 = scmp.eq.s32.totalorder %s31, 0
      %p121 = por %p119, %p120
      %s123 = sadd.s32 %s122, 1
      %p126 = scmp.eq.s32.totalorder %s25, 1
      %p127 = scmp.ne.s32.totalorder %s122, %s124
      %p128 = scmp.eq.s32.totalorder %s25, 0
      %p129 = por %p127, %p128
      %p130 = scmp.ne.s32.totalorder %s122, %s124
      %p131 = scmp.eq.s32.totalorder %s30, 1
      %p132 = por %p130, %p131
      %p133 = scmp.ne.s32.totalorder %s124, %s125
      %p134 = scmp.eq.s32.totalorder %s30, 0
      %p135 = por %p133, %p134
      %p136 = scmp.ne.s32.totalorder %s124, %s125
      %p137 = scmp.eq.s32.totalorder %s31, 1
      %p138 = por %p136, %p137
      %p140 = scmp.ne.s32.totalorder %s125, %s139
      %p141 = scmp.eq.s32.totalorder %s31, 0
      %p142 = por %p140, %p141
      %s144 = sadd.s32 %s143, 1
      %p147 = scmp.eq.s32.totalorder %s25, 1
      %p148 = scmp.ne.s32.totalorder %s143, %s145
      %p149 = scmp.eq.s32.totalorder %s25, 0
      %p150 = por %p148, %p149
      %p151 = scmp.ne.s32.totalorder %s143, %s145
      %p152 = scmp.eq.s32.totalorder %s30, 1
      %p153 = por %p151, %p152
      %p154 = scmp.ne.s32.totalorder %s145, %s146
      %p155 = scmp.eq.s32.totalorder %s30, 0
      %p156 = por %p154, %p155
      %p157 = scmp.ne.s32.totalorder %s145, %s146
      %p158 = scmp.eq.s32.totalorder %s31, 1
      %p159 = por %p157, %p158
      %p161 = scmp.ne.s32.totalorder %s146, %s160
      %p162 = scmp.eq.s32.totalorder %s31, 0
      %p163 = por %p161, %p162
      %s165 = sadd.s32 %s164, 1
      %p168 = scmp.eq.s32.totalorder %s25, 1
      %p169 = scmp.ne.s32.totalorder %s164, %s166
      %p170 = scmp.eq.s32.totalorder %s25, 0
      %p171 = por %p169, %p170
      %p172 = scmp.ne.s32.totalorder %s164, %s166
      %p173 = scmp.eq.s32.totalorder %s30, 1
      %p174 = por %p172, %p173
      %p175 = scmp.ne.s32.totalorder %s166, %s167
      %p176 = scmp.eq.s32.totalorder %s30, 0
      %p177 = por %p175, %p176
      %p178 = scmp.ne.s32.totalorder %s166, %s167
      %p179 = scmp.eq.s32.totalorder %s31, 1
      %p180 = por %p178, %p179
      %p182 = scmp.ne.s32.totalorder %s167, %s181
      %p183 = scmp.eq.s32.totalorder %s31, 0
      %p184 = por %p182, %p183
      %s186 = sadd.s32 %s185, 1
      %p189 = scmp.eq.s32.totalorder %s25, 1
      %p190 = scmp.ne.s32.totalorder %s185, %s187
      %p191 = scmp.eq.s32.totalorder %s25, 0
      %p192 = por %p190, %p191
      %p193 = scmp.ne.s32.totalorder %s185, %s187
      %p194 = scmp.eq.s32.totalorder %s30, 1
      %p195 = por %p193, %p194
      %p196 = scmp.ne.s32.totalorder %s187, %s188
      %p197 = scmp.eq.s32.totalorder %s30, 0
      %p198 = por %p196, %p197
      %p199 = scmp.ne.s32.totalorder %s187, %s188
      %p200 = scmp.eq.s32.totalorder %s31, 1
      %p201 = por %p199, %p200
      %p203 = scmp.ne.s32.totalorder %s188, %s202
      %p204 = scmp.eq.s32.totalorder %s31, 0
      %p205 = por %p203, %p204
      %s207 = sadd.s32 %s206, 1
      %p210 = scmp.eq.s32.totalorder %s25, 1
      %p211 = scmp.ne.s32.totalorder %s206, %s208
      %p212 = scmp.eq.s32.totalorder %s25, 0
      %p213 = por %p211, %p212
      %p214 = scmp.ne.s32.totalorder %s206, %s208
      %p215 = scmp.eq.s32.totalorder %s30, 1
      %p216 = por %p214, %p215
      %p217 = scmp.ne.s32.totalorder %s208, %s209
      %p218 = scmp.eq.s32.totalorder %s30, 0
      %p219 = por %p217, %p218
      %p220 = scmp.ne.s32.totalorder %s208, %s209
      %p221 = scmp.eq.s32.totalorder %s31, 1
      %p222 = por %p220, %p221
      %p224 = scmp.ne.s32.totalorder %s209, %s223
      %p225 = scmp.eq.s32.totalorder %s31, 0
      %p226 = por %p224, %p225
      %s228 = sadd.s32 %s227, 1
      %p231 = scmp.eq.s32.totalorder %s25, 1
      %p232 = scmp.ne.s32.totalorder %s227, %s229
      %p233 = scmp.eq.s32.totalorder %s25, 0
      %p234 = por %p232, %p233
      %p235 = scmp.ne.s32.totalorder %s227, %s229
      %p236 = scmp.eq.s32.totalorder %s30, 1
      %p237 = por %p235, %p236
      %p238 = scmp.ne.s32.totalorder %s229, %s230
      %p239 = scmp.eq.s32.totalorder %s30, 0
      %p240 = por %p238, %p239
      %p241 = scmp.ne.s32.totalorder %s229, %s230
      %p242 = scmp.eq.s32.totalorder %s31, 1
      %p243 = por %p241, %p242
      %p245 = scmp.ne.s32.totalorder %s230, %s244
      %p246 = scmp.eq.s32.totalorder %s31, 0
      %p247 = por %p245, %p246
      %s249 = sadd.s32 %s248, 1
      %p252 = scmp.eq.s32.totalorder %s25, 1
      %p253 = scmp.ne.s32.totalorder %s248, %s250
      %p254 = scmp.eq.s32.totalorder %s25, 0
      %p255 = por %p253, %p254
      %p256 = scmp.ne.s32.totalorder %s248, %s250
      %p257 = scmp.eq.s32.totalorder %s30, 1
      %p258 = por %p256, %p257
      %p259 = scmp.ne.s32.totalorder %s250, %s251
      %p260 = scmp.eq.s32.totalorder %s30, 0
      %p261 = por %p259, %p260
      %p262 = scmp.ne.s32.totalorder %s250, %s251
      %p263 = scmp.eq.s32.totalorder %s31, 1
      %p264 = por %p262, %p263
      %p266 = scmp.ne.s32.totalorder %s251, %s265
      %p267 = scmp.eq.s32.totalorder %s31, 0
      %p268 = por %p266, %p267
      %s270 = sadd.s32 %s269, 1
      %p273 = scmp.eq.s32.totalorder %s25, 1
      %p274 = scmp.ne.s32.totalorder %s269, %s271
      %p275 = scmp.eq.s32.totalorder %s25, 0
      %p276 = por %p274, %p275
      %p277 = scmp.ne.s32.totalorder %s269, %s271
      %p278 = scmp.eq.s32.totalorder %s30, 1
      %p279 = por %p277, %p278
      %p280 = scmp.ne.s32.totalorder %s271, %s272
      %p281 = scmp.eq.s32.totalorder %s30, 0
      %p282 = por %p280, %p281
      %p283 = scmp.ne.s32.totalorder %s271, %s272
      %p284 = scmp.eq.s32.totalorder %s31, 1
      %p285 = por %p283, %p284
      %p287 = scmp.ne.s32.totalorder %s272, %s286
      %p288 = scmp.eq.s32.totalorder %s31, 0
      %p289 = por %p287, %p288
      %s291 = sadd.s32 %s290, 1
      %p294 = scmp.eq.s32.totalorder %s25, 1
      %p295 = scmp.ne.s32.totalorder %s290, %s292
      %p296 = scmp.eq.s32.totalorder %s25, 0
      %p297 = por %p295, %p296
      %p298 = scmp.ne.s32.totalorder %s290, %s292
      %p299 = scmp.eq.s32.totalorder %s30, 1
      %p300 = por %p298, %p299
      %p301 = scmp.ne.s32.totalorder %s292, %s293
      %p302 = scmp.eq.s32.totalorder %s30, 0
      %p303 = por %p301, %p302
      %p304 = scmp.ne.s32.totalorder %s292, %s293
      %p305 = scmp.eq.s32.totalorder %s31, 1
      %p306 = por %p304, %p305
      %p308 = scmp.ne.s32.totalorder %s293, %s307
      %p309 = scmp.eq.s32.totalorder %s31, 0
      %p310 = por %p308, %p309
      %s312 = sadd.s32 %s311, 1
      %p315 = scmp.eq.s32.totalorder %s25, 1
      %p316 = scmp.ne.s32.totalorder %s311, %s313
      %p317 = scmp.eq.s32.totalorder %s25, 0
      %p318 = por %p316, %p317
      %p319 = scmp.ne.s32.totalorder %s311, %s313
      %p320 = scmp.eq.s32.totalorder %s30, 1
      %p321 = por %p319, %p320
      %p322 = scmp.ne.s32.totalorder %s313, %s314
      %p323 = scmp.eq.s32.totalorder %s30, 0
      %p324 = por %p322, %p323
      %p325 = scmp.ne.s32.totalorder %s313, %s314
      %p326 = scmp.eq.s32.totalorder %s31, 1
      %p327 = por %p325, %p326
      %p329 = scmp.ne.s32.totalorder %s314, %s328
      %p330 = scmp.eq.s32.totalorder %s31, 0
      %p331 = por %p329, %p330
      %s332 = ssub.s32 %s25, %s32
      %p333 = scmp.eq.s32.totalorder %s332, 0
      %s335 = sadd.s32 %s334, 1
      %s336 = scalar_select %p333, %s334, %s335
      %p339 = pneg %p333
      %p340 = scmp.eq.s32.totalorder %s25, 1
      %p341 = por %p339, %p340
      %p342 = scmp.ne.s32.totalorder %s334, %s337
      %p343 = scmp.eq.s32.totalorder %s25, 0
      %p344 = por %p342, %p343
      %p345 = scmp.ne.s32.totalorder %s334, %s337
      %p346 = scmp.eq.s32.totalorder %s30, 1
      %p347 = por %p345, %p346
      %p348 = scmp.ne.s32.totalorder %s337, %s338
      %p349 = scmp.eq.s32.totalorder %s30, 0
      %p350 = por %p348, %p349
      %p351 = scmp.ne.s32.totalorder %s337, %s338
      %p352 = scmp.eq.s32.totalorder %s31, 1
      %p353 = por %p351, %p352
      %p355 = scmp.ne.s32.totalorder %s338, %s354
      %p356 = scmp.eq.s32.totalorder %s31, 0
      %p357 = por %p355, %p356
      %s358 = ssub.s32 %s25, %s32
      %p359 = scmp.eq.s32.totalorder %s358, 0
      %s361 = sadd.s32 %s360, 1
      %s362 = scalar_select %p359, %s360, %s361
      %p365 = pneg %p359
      %p366 = scmp.eq.s32.totalorder %s25, 1
      %p367 = por %p365, %p366
      %p368 = scmp.ne.s32.totalorder %s360, %s363
      %p369 = scmp.eq.s32.totalorder %s25, 0
      %p370 = por %p368, %p369
      %p371 = scmp.ne.s32.totalorder %s360, %s363
      %p372 = scmp.eq.s32.totalorder %s30, 1
      %p373 = por %p371, %p372
      %p374 = scmp.ne.s32.totalorder %s363, %s364
      %p375 = scmp.eq.s32.totalorder %s30, 0
      %p376 = por %p374, %p375
      %p377 = scmp.ne.s32.totalorder %s363, %s364
      %p378 = scmp.eq.s32.totalorder %s31, 1
      %p379 = por %p377, %p378
      %p381 = scmp.ne.s32.totalorder %s364, %s380
      %p382 = scmp.eq.s32.totalorder %s31, 0
      %p383 = por %p381, %p382
      %p384 = scmp.le.s32.totalorder 1, %s25
      %p385 = scmp.lt.s32.totalorder %s25, 3
      %p386 = pnand %p384, %p385
      %p387 = pneg %p386
      // Predicated region
      $region9: #{_lambda_.1} parent=5 // pred_check
        _
      $region10: #{_lambda_.1} parent=5 // pred_check_branch
        %389 = sbr.rel (%p386) target = $region12
      $region11: #{_lambda_.1} parent=5 // pred_region
        %s390 = ssub.s32 %s25, 1
        // Predicated region
        $region13: #{_lambda_.1} parent=11 // pred_check
          %p391 = pneg %p72
        $region14: #{_lambda_.1} parent=11 // pred_check_branch
          %393 = sbr.rel (%p391) target = $region16
        $region15: #{_lambda_.1} parent=11 // pred_region
          _
        $region16: #{_lambda_.1} parent=11 // pred_fallthru
          _
        // Predicated region
        $region17: #{_lambda_.1} parent=11 // pred_check
          %p394 = pneg %p93
        $region18: #{_lambda_.1} parent=11 // pred_check_branch
          %396 = sbr.rel (%p394) target = $region20
        $region19: #{_lambda_.1} parent=11 // pred_region
          _
        $region20: #{_lambda_.1} parent=11 // pred_fallthru
          _
        // Predicated region
        $region21: #{_lambda_.1} parent=11 // pred_check
          %p397 = pneg %p114
        $region22: #{_lambda_.1} parent=11 // pred_check_branch
          %399 = sbr.rel (%p397) target = $region24
        $region23: #{_lambda_.1} parent=11 // pred_region
          _
        $region24: #{_lambda_.1} parent=11 // pred_fallthru
          _
        // Predicated region
        $region25: #{_lambda_.1} parent=11 // pred_check
          %p400 = pneg %p135
        $region26: #{_lambda_.1} parent=11 // pred_check_branch
          %402 = sbr.rel (%p400) target = $region28
        $region27: #{_lambda_.1} parent=11 // pred_region
          _
        $region28: #{_lambda_.1} parent=11 // pred_fallthru
          _
        // Predicated region
        $region29: #{_lambda_.1} parent=11 // pred_check
          %p403 = pneg %p156
        $region30: #{_lambda_.1} parent=11 // pred_check_branch
          %405 = sbr.rel (%p403) target = $region32
        $region31: #{_lambda_.1} parent=11 // pred_region
          _
        $region32: #{_lambda_.1} parent=11 // pred_fallthru
          _
        // Predicated region
        $region33: #{_lambda_.1} parent=11 // pred_check
          %p406 = pneg %p177
        $region34: #{_lambda_.1} parent=11 // pred_check_branch
          %408 = sbr.rel (%p406) target = $region36
        $region35: #{_lambda_.1} parent=11 // pred_region
          _
        $region36: #{_lambda_.1} parent=11 // pred_fallthru
          _
        // Predicated region
        $region37: #{_lambda_.1} parent=11 // pred_check
          %p409 = pneg %p198
        $region38: #{_lambda_.1} parent=11 // pred_check_branch
          %411 = sbr.rel (%p409) target = $region40
        $region39: #{_lambda_.1} parent=11 // pred_region
          _
        $region40: #{_lambda_.1} parent=11 // pred_fallthru
          _
        // Predicated region
        $region41: #{_lambda_.1} parent=11 // pred_check
          %p412 = pneg %p219
        $region42: #{_lambda_.1} parent=11 // pred_check_branch
          %414 = sbr.rel (%p412) target = $region44
        $region43: #{_lambda_.1} parent=11 // pred_region
          _
        $region44: #{_lambda_.1} parent=11 // pred_fallthru
          _
        // Predicated region
        $region45: #{_lambda_.1} parent=11 // pred_check
          %p415 = pneg %p240
        $region46: #{_lambda_.1} parent=11 // pred_check_branch
          %417 = sbr.rel (%p415) target = $region48
        $region47: #{_lambda_.1} parent=11 // pred_region
          _
        $region48: #{_lambda_.1} parent=11 // pred_fallthru
          _
        // Predicated region
        $region49: #{_lambda_.1} parent=11 // pred_check
          %p418 = pneg %p261
        $region50: #{_lambda_.1} parent=11 // pred_check_branch
          %420 = sbr.rel (%p418) target = $region52
        $region51: #{_lambda_.1} parent=11 // pred_region
          _
        $region52: #{_lambda_.1} parent=11 // pred_fallthru
          _
        // Predicated region
        $region53: #{_lambda_.1} parent=11 // pred_check
          %p421 = pneg %p282
        $region54: #{_lambda_.1} parent=11 // pred_check_branch
          %423 = sbr.rel (%p421) target = $region56
        $region55: #{_lambda_.1} parent=11 // pred_region
          _
        $region56: #{_lambda_.1} parent=11 // pred_fallthru
          _
        // Predicated region
        $region57: #{_lambda_.1} parent=11 // pred_check
          %p424 = pneg %p303
        $region58: #{_lambda_.1} parent=11 // pred_check_branch
          %426 = sbr.rel (%p424) target = $region60
        $region59: #{_lambda_.1} parent=11 // pred_region
          _
        $region60: #{_lambda_.1} parent=11 // pred_fallthru
          _
        // Predicated region
        $region61: #{_lambda_.1} parent=11 // pred_check
          %p427 = pneg %p324
        $region62: #{_lambda_.1} parent=11 // pred_check_branch
          %429 = sbr.rel (%p427) target = $region64
        $region63: #{_lambda_.1} parent=11 // pred_region
          _
        $region64: #{_lambda_.1} parent=11 // pred_fallthru
          _
      $region12: #{_lambda_.1} parent=5 // pred_fallthru
        _
      %p430 = scmp.lt.s32.totalorder %s25, 2
      // Predicated region
      $region65: #{_lambda_.1} parent=5 // pred_check
        %p431 = pneg %p430
      $region66: #{_lambda_.1} parent=5 // pred_check_branch
        %433 = sbr.rel (%p431) target = $region68
      $region67: #{_lambda_.1} parent=5 // pred_region
        // Predicated region
        $region69: #{_lambda_.1} parent=67 // pred_check
          %p434 = pneg %p45
        $region70: #{_lambda_.1} parent=67 // pred_check_branch
          %436 = sbr.rel (%p434) target = $region72
        $region71: #{_lambda_.1} parent=67 // pred_region
          %p437 = scmp.lt.s32.totalorder %s25, 1
          %s438 = scalar_select %p437, %s25, 1
          %s439 = smul.addr %s438, 4
          %s440 = smul.addr %s439, 8
          %s441 = scalar_lea.vmem %s0, %s440
        $region72: #{_lambda_.1} parent=67 // pred_fallthru
          _
      $region68: #{_lambda_.1} parent=5 // pred_fallthru
        _
      %p442 = scmp.le.s32.totalorder 1, %s25
      %p443 = scmp.lt.s32.totalorder %s25, 3
      %p444 = pnand %p442, %p443
      %p445 = pneg %p444
      // Predicated region
      $region73: #{_lambda_.1} parent=5 // pred_check
        _
      $region74: #{_lambda_.1} parent=5 // pred_check_branch
        %447 = sbr.rel (%p444) target = $region76
      $region75: #{_lambda_.1} parent=5 // pred_region
        %s448 = ssub.s32 %s25, 1
        %p449 = scmp.lt.s32.totalorder %s30, 1
        %s450 = scalar_select %p449, %s30, 1
        %s451 = smul.addr %s450, 4
        %s452 = smul.addr %s451, 8
        %s453 = scalar_lea.vmem %s0, %s452
        %p454 = pneg %p51
        %p455 = pneg %p48
        %p456 = pneg %p72
        %p457 = pneg %p69
        %p458 = pneg %p93
        %p459 = pneg %p90
        %p460 = pneg %p114
        %p461 = pneg %p111
        %p462 = pneg %p135
        %p463 = pneg %p132
        %p464 = pneg %p156
        %p465 = pneg %p153
        %p466 = pneg %p177
        %p467 = pneg %p174
        %p468 = pneg %p198
        %p469 = pneg %p195
        %p470 = pneg %p219
        %p471 = pneg %p216
        %p472 = pneg %p240
        %p473 = pneg %p237
        %p474 = pneg %p261
        %p475 = pneg %p258
        %p476 = pneg %p282
        %p477 = pneg %p279
        %p478 = pneg %p303
        %p479 = pneg %p300
        %p480 = pneg %p324
        %p481 = pneg %p321
        %p482 = pneg %p350
        %p483 = pneg %p347
        %p484 = scmp.lt.s32.totalorder %s30, 1
        %s485 = scalar_select %p484, %s30, 1
        %s486 = scalar_lea.vmem %s14, %s485
        %p487 = pneg %p376
        %p488 = pneg %p373
        %s489 = sand.u32 %s363, 1
        %s490 = scalar_lea.sflag [#allocation3], %s489
        %s491 = sand.u32 %s363, 1
        %s492 = smul.addr %s491, 2
        %s493 = scalar_lea.vmem [#allocation2], %s492
        %p494 = scmp.lt.s32.totalorder %s30, 1
        %s495 = scalar_select %p494, %s30, 1
        %s496 = smul.addr %s495, 4
        %s497 = smul.addr %s496, 8
        %s498 = scalar_lea.vmem %s0, %s497
        %p499 = scmp.lt.s32.totalorder %s30, 1
        %s500 = scalar_select %p499, %s30, 1
        %s501 = scalar_lea.vmem %s14, %s500
        %v502 = vld [vmem:[%s2] sm:$0xff]
        %v503 = vld [vmem:[%s2 + $0x8] sm:$0xff]
        %v504 = vld [vmem:[%s2 + $0x10] sm:$0xff]
        %v505 = vld [vmem:[%s2 + $0x18] sm:$0xff]
        %v506 = vld [vmem:[%s2 + $0x20] sm:$0xff]
        %v507 = vld [vmem:[%s2 + $0x28] sm:$0xff]
        %v508 = vld [vmem:[%s2 + $0x30] sm:$0xff]
        %v509 = vld [vmem:[%s2 + $0x38] sm:$0xff]
        %v510 = vld [vmem:[%s2 + $0x40] sm:$0xff]
        %v511 = vld [vmem:[%s2 + $0x48] sm:$0xff]
        %v512 = vld [vmem:[%s2 + $0x50] sm:$0xff]
        %v513 = vld [vmem:[%s2 + $0x58] sm:$0xff]
        %v514 = vld [vmem:[%s2 + $0x60] sm:$0xff]
        %v515 = vld [vmem:[%s2 + $0x68] sm:$0xff]
        %v516 = vld [vmem:[%s2 + $0x70] sm:$0xff]
        %v517 = vld [vmem:[%s2 + $0x78] sm:$0xff]
        %v518 = vld [vmem:[%s2 + $0x80] sm:$0xff]
        %v519 = vld [vmem:[%s2 + $0x88] sm:$0xff]
        %v520 = vld [vmem:[%s2 + $0x90] sm:$0xff]
        %v521 = vld [vmem:[%s2 + $0x98] sm:$0xff]
        %v522 = vld [vmem:[%s2 + $0xa0] sm:$0xff]
        %v523 = vld [vmem:[%s2 + $0xa8] sm:$0xff]
        %v524 = vld [vmem:[%s498] sm:$0xff]
        %v525 = vld [vmem:[%s498 + $0x8] sm:$0xff]
        %v526 = vld [vmem:[%s498 + $0x10] sm:$0xff]
        %v527 = vld [vmem:[%s498 + $0x18] sm:$0xf]
        %s528 = scalar_lea.vmem %s2, 176
        %v529 = vld [vmem:[%s528] sm:$0xff]
        %v530 = vld [vmem:[%s528 + $0x8] sm:$0xff]
        %v531 = vld [vmem:[%s528 + $0x10] sm:$0xff]
        %v532 = vld [vmem:[%s528 + $0x18] sm:$0xff]
        %v533 = vld [vmem:[%s528 + $0x20] sm:$0xff]
        %v534 = vld [vmem:[%s528 + $0x28] sm:$0xff]
        %v535 = vld [vmem:[%s528 + $0x30] sm:$0xff]
        %v536 = vld [vmem:[%s528 + $0x38] sm:$0xff]
        %v537 = vld [vmem:[%s528 + $0x40] sm:$0xff]
        %v538 = vld [vmem:[%s528 + $0x48] sm:$0xff]
        %v539 = vld [vmem:[%s528 + $0x50] sm:$0xff]
        %v540 = vld [vmem:[%s528 + $0x58] sm:$0xff]
        %v541 = vld [vmem:[%s528 + $0x60] sm:$0xff]
        %v542 = vld [vmem:[%s528 + $0x68] sm:$0xff]
        %v543 = vld [vmem:[%s528 + $0x70] sm:$0xff]
        %v544 = vld [vmem:[%s528 + $0x78] sm:$0xff]
        %v545 = vld [vmem:[%s528 + $0x80] sm:$0xff]
        %v546 = vld [vmem:[%s528 + $0x88] sm:$0xff]
        %v547 = vld [vmem:[%s528 + $0x90] sm:$0xff]
        %v548 = vld [vmem:[%s528 + $0x98] sm:$0xff]
        %v549 = vld [vmem:[%s528 + $0xa0] sm:$0xff]
        %v550 = vld [vmem:[%s528 + $0xa8] sm:$0xff]
        %555 = vrot.lane.b32.xlu0 %v524, 127
        %v556 = vpop.permute.xlu0 %555
        %557 = vrot.lane.b32.xlu0 %v525, 127
        %v558 = vpop.permute.xlu0 %557
        %559 = vrot.lane.b32.xlu0 %v526, 127
        %v560 = vpop.permute.xlu0 %559
        %561 = vrot.lane.b32.xlu0 %v527, 127
        %v562 = vpop.permute.xlu0 %561
        %vm566 = vcmask 228352
        %v568 = vsel %vm566, %v529, 0
        %v571 = vsel %vm566, %v530, 0
        %v574 = vsel %vm566, %v531, 0
        %v577 = vsel %vm566, %v532, 0
        %v580 = vsel %vm566, %v533, 0
        %v583 = vsel %vm566, %v534, 0
        %v586 = vsel %vm566, %v535, 0
        %v589 = vsel %vm566, %v536, 0
        %v592 = vsel %vm566, %v537, 0
        %v595 = vsel %vm566, %v538, 0
        %v598 = vsel %vm566, %v539, 0
        %v601 = vsel %vm566, %v540, 0
        %v604 = vsel %vm566, %v541, 0
        %v607 = vsel %vm566, %v542, 0
        %v610 = vsel %vm566, %v543, 0
        %v613 = vsel %vm566, %v544, 0
        %v616 = vsel %vm566, %v545, 0
        %v619 = vsel %vm566, %v546, 0
        %v622 = vsel %vm566, %v547, 0
        %v625 = vsel %vm566, %v548, 0
        %v628 = vsel %vm566, %v549, 0
        %v631 = vsel %vm566, %v550, 0
        %vm633 = vcmask 1043456
        %v634 = vsel %vm633, %v562, 0
        %636 = vmatpush.msra.mxu0 0.0
        %637 = vmatpush.msra.mxu0 0.0
        %638 = vmatpush.msra.mxu0 0.0
        %639 = vmatpush.msra.mxu0 0.0
        %640 = vmatpush.msra.mxu0 0.0
        %641 = vmatpush.msra.mxu0 0.0
        %642 = vmatpush.msra.mxu0 0.0
        %643 = vmatpush.msra.mxu0 0.0
        %644 = vmatpush.msra.mxu0 0.0
        %645 = vmatpush.msra.mxu0 0.0
        %646 = vmatpush.msra.mxu0 0.0
        %647 = vmatpush.msra.mxu0 0.0
        %648 = vmatpush.msra.mxu0 %v634
        %649 = vmatpush.msra.mxu0 %v560
        %650 = vmatpush.msra.mxu0 %v558
        %651 = vmatpush.msra.mxu0 %v556
        %652 = vmatmul.f32.gmra.mxu0 %v568
        %v653 = vpop.f32.mrf.mxu0
        %v654 = vadd.f32 0.0, %v653
        %655 = vmatmul.f32.gmra.mxu0 %v571
        %v656 = vpop.f32.mrf.mxu0
        %v657 = vadd.f32 0.0, %v656
        %658 = vmatmul.f32.gmra.mxu0 %v574
        %v659 = vpop.f32.mrf.mxu0
        %v660 = vadd.f32 0.0, %v659
        %661 = vmatmul.f32.gmra.mxu0 %v577
        %v662 = vpop.f32.mrf.mxu0
        %v663 = vadd.f32 0.0, %v662
        %664 = vmatmul.f32.gmra.mxu0 %v580
        %v665 = vpop.f32.mrf.mxu0
        %v666 = vadd.f32 0.0, %v665
        %667 = vmatmul.f32.gmra.mxu0 %v583
        %v668 = vpop.f32.mrf.mxu0
        %v669 = vadd.f32 0.0, %v668
        %670 = vmatmul.f32.gmra.mxu0 %v586
        %v671 = vpop.f32.mrf.mxu0
        %v672 = vadd.f32 0.0, %v671
        %673 = vmatmul.f32.gmra.mxu0 %v589
        %v674 = vpop.f32.mrf.mxu0
        %v675 = vadd.f32 0.0, %v674
        %676 = vmatmul.f32.gmra.mxu0 %v592
        %v677 = vpop.f32.mrf.mxu0
        %v678 = vadd.f32 0.0, %v677
        %679 = vmatmul.f32.gmra.mxu0 %v595
        %v680 = vpop.f32.mrf.mxu0
        %v681 = vadd.f32 0.0, %v680
        %682 = vmatmul.f32.gmra.mxu0 %v598
        %v683 = vpop.f32.mrf.mxu0
        %v684 = vadd.f32 0.0, %v683
        %685 = vmatmul.f32.gmra.mxu0 %v601
        %v686 = vpop.f32.mrf.mxu0
        %v687 = vadd.f32 0.0, %v686
        %688 = vmatmul.f32.gmra.mxu0 %v604
        %v689 = vpop.f32.mrf.mxu0
        %v690 = vadd.f32 0.0, %v689
        %691 = vmatmul.f32.gmra.mxu0 %v607
        %v692 = vpop.f32.mrf.mxu0
        %v693 = vadd.f32 0.0, %v692
        %694 = vmatmul.f32.gmra.mxu0 %v610
        %v695 = vpop.f32.mrf.mxu0
        %v696 = vadd.f32 0.0, %v695
        %697 = vmatmul.f32.gmra.mxu0 %v613
        %v698 = vpop.f32.mrf.mxu0
        %v699 = vadd.f32 0.0, %v698
        %700 = vmatmul.f32.gmra.mxu0 %v616
        %v701 = vpop.f32.mrf.mxu0
        %v702 = vadd.f32 0.0, %v701
        %703 = vmatmul.f32.gmra.mxu0 %v619
        %v704 = vpop.f32.mrf.mxu0
        %v705 = vadd.f32 0.0, %v704
        %706 = vmatmul.f32.gmra.mxu0 %v622
        %v707 = vpop.f32.mrf.mxu0
        %v708 = vadd.f32 0.0, %v707
        %709 = vmatmul.f32.gmra.mxu0 %v625
        %v710 = vpop.f32.mrf.mxu0
        %v711 = vadd.f32 0.0, %v710
        %712 = vmatmul.f32.gmra.mxu0 %v628
        %v713 = vpop.f32.mrf.mxu0
        %v714 = vadd.f32 0.0, %v713
        %715 = vmatmul.f32.gmra.mxu0 %v631
        %v716 = vpop.f32.mrf.mxu0
        %v717 = vadd.f32 0.0, %v716
        %718 = vdwg.mxu0
        %v720 = vsel %vm566, %v502, 0
        %v723 = vsel %vm566, %v503, 0
        %v726 = vsel %vm566, %v504, 0
        %v729 = vsel %vm566, %v505, 0
        %v732 = vsel %vm566, %v506, 0
        %v735 = vsel %vm566, %v507, 0
        %v738 = vsel %vm566, %v508, 0
        %v741 = vsel %vm566, %v509, 0
        %v744 = vsel %vm566, %v510, 0
        %v747 = vsel %vm566, %v511, 0
        %v750 = vsel %vm566, %v512, 0
        %v753 = vsel %vm566, %v513, 0
        %v756 = vsel %vm566, %v514, 0
        %v759 = vsel %vm566, %v515, 0
        %v762 = vsel %vm566, %v516, 0
        %v765 = vsel %vm566, %v517, 0
        %v768 = vsel %vm566, %v518, 0
        %v771 = vsel %vm566, %v519, 0
        %v774 = vsel %vm566, %v520, 0
        %v777 = vsel %vm566, %v521, 0
        %v780 = vsel %vm566, %v522, 0
        %v783 = vsel %vm566, %v523, 0
        %v785 = vsel %vm633, %v527, 0
        %787 = vmatpush.msra.mxu0 0.0
        %788 = vmatpush.msra.mxu0 0.0
        %789 = vmatpush.msra.mxu0 0.0
        %790 = vmatpush.msra.mxu0 0.0
        %791 = vmatpush.msra.mxu0 0.0
        %792 = vmatpush.msra.mxu0 0.0
        %793 = vmatpush.msra.mxu0 0.0
        %794 = vmatpush.msra.mxu0 0.0
        %795 = vmatpush.msra.mxu0 0.0
        %796 = vmatpush.msra.mxu0 0.0
        %797 = vmatpush.msra.mxu0 0.0
        %798 = vmatpush.msra.mxu0 0.0
        %799 = vmatpush.msra.mxu0 %v785
        %800 = vmatpush.msra.mxu0 %v526
        %801 = vmatpush.msra.mxu0 %v525
        %802 = vmatpush.msra.mxu0 %v524
        %803 = vmatmul.f32.gmra.mxu0 %v720
        %v804 = vpop.f32.mrf.mxu0
        %v805 = vadd.f32 %v654, %v804
        %806 = vmatmul.f32.gmra.mxu0 %v723
        %v807 = vpop.f32.mrf.mxu0
        %v808 = vadd.f32 %v657, %v807
        %809 = vmatmul.f32.gmra.mxu0 %v726
        %v810 = vpop.f32.mrf.mxu0
        %v811 = vadd.f32 %v660, %v810
        %812 = vmatmul.f32.gmra.mxu0 %v729
        %v813 = vpop.f32.mrf.mxu0
        %v814 = vadd.f32 %v663, %v813
        %815 = vmatmul.f32.gmra.mxu0 %v732
        %v816 = vpop.f32.mrf.mxu0
        %v817 = vadd.f32 %v666, %v816
        %818 = vmatmul.f32.gmra.mxu0 %v735
        %v819 = vpop.f32.mrf.mxu0
        %v820 = vadd.f32 %v669, %v819
        %821 = vmatmul.f32.gmra.mxu0 %v738
        %v822 = vpop.f32.mrf.mxu0
        %v823 = vadd.f32 %v672, %v822
        %824 = vmatmul.f32.gmra.mxu0 %v741
        %v825 = vpop.f32.mrf.mxu0
        %v826 = vadd.f32 %v675, %v825
        %827 = vmatmul.f32.gmra.mxu0 %v744
        %v828 = vpop.f32.mrf.mxu0
        %v829 = vadd.f32 %v678, %v828
        %830 = vmatmul.f32.gmra.mxu0 %v747
        %v831 = vpop.f32.mrf.mxu0
        %v832 = vadd.f32 %v681, %v831
        %833 = vmatmul.f32.gmra.mxu0 %v750
        %v834 = vpop.f32.mrf.mxu0
        %v835 = vadd.f32 %v684, %v834
        %836 = vmatmul.f32.gmra.mxu0 %v753
        %v837 = vpop.f32.mrf.mxu0
        %v838 = vadd.f32 %v687, %v837
        %839 = vmatmul.f32.gmra.mxu0 %v756
        %v840 = vpop.f32.mrf.mxu0
        %v841 = vadd.f32 %v690, %v840
        %842 = vmatmul.f32.gmra.mxu0 %v759
        %v843 = vpop.f32.mrf.mxu0
        %v844 = vadd.f32 %v693, %v843
        %845 = vmatmul.f32.gmra.mxu0 %v762
        %v846 = vpop.f32.mrf.mxu0
        %v847 = vadd.f32 %v696, %v846
        %848 = vmatmul.f32.gmra.mxu0 %v765
        %v849 = vpop.f32.mrf.mxu0
        %v850 = vadd.f32 %v699, %v849
        %851 = vmatmul.f32.gmra.mxu0 %v768
        %v852 = vpop.f32.mrf.mxu0
        %v853 = vadd.f32 %v702, %v852
        %854 = vmatmul.f32.gmra.mxu0 %v771
        %v855 = vpop.f32.mrf.mxu0
        %v856 = vadd.f32 %v705, %v855
        %857 = vmatmul.f32.gmra.mxu0 %v774
        %v858 = vpop.f32.mrf.mxu0
        %v859 = vadd.f32 %v708, %v858
        %860 = vmatmul.f32.gmra.mxu0 %v777
        %v861 = vpop.f32.mrf.mxu0
        %v862 = vadd.f32 %v711, %v861
        %863 = vmatmul.f32.gmra.mxu0 %v780
        %v864 = vpop.f32.mrf.mxu0
        %v865 = vadd.f32 %v714, %v864
        %866 = vmatmul.f32.gmra.mxu0 %v783
        %v867 = vpop.f32.mrf.mxu0
        %v868 = vadd.f32 %v717, %v867
        %869 = vdwg.mxu0
        %s870 = scalar_lea.vmem %s2, 352
        %v871 = vld [vmem:[%s870] sm:$0xff]
        %v872 = vld [vmem:[%s870 + $0x8] sm:$0xff]
        %v873 = vld [vmem:[%s870 + $0x10] sm:$0xff]
        %v874 = vld [vmem:[%s870 + $0x18] sm:$0xff]
        %v875 = vld [vmem:[%s870 + $0x20] sm:$0xff]
        %v876 = vld [vmem:[%s870 + $0x28] sm:$0xff]
        %v877 = vld [vmem:[%s870 + $0x30] sm:$0xff]
        %v878 = vld [vmem:[%s870 + $0x38] sm:$0xff]
        %v879 = vld [vmem:[%s870 + $0x40] sm:$0xff]
        %v880 = vld [vmem:[%s870 + $0x48] sm:$0xff]
        %v881 = vld [vmem:[%s870 + $0x50] sm:$0xff]
        %v882 = vld [vmem:[%s870 + $0x58] sm:$0xff]
        %v883 = vld [vmem:[%s870 + $0x60] sm:$0xff]
        %v884 = vld [vmem:[%s870 + $0x68] sm:$0xff]
        %v885 = vld [vmem:[%s870 + $0x70] sm:$0xff]
        %v886 = vld [vmem:[%s870 + $0x78] sm:$0xff]
        %v887 = vld [vmem:[%s870 + $0x80] sm:$0xff]
        %v888 = vld [vmem:[%s870 + $0x88] sm:$0xff]
        %v889 = vld [vmem:[%s870 + $0x90] sm:$0xff]
        %v890 = vld [vmem:[%s870 + $0x98] sm:$0xff]
        %v891 = vld [vmem:[%s870 + $0xa0] sm:$0xff]
        %v892 = vld [vmem:[%s870 + $0xa8] sm:$0xff]
        %893 = vrot.lane.b32.xlu0 %v524, 126
        %v894 = vpop.permute.xlu0 %893
        %895 = vrot.lane.b32.xlu0 %v525, 126
        %v896 = vpop.permute.xlu0 %895
        %897 = vrot.lane.b32.xlu0 %v526, 126
        %v898 = vpop.permute.xlu0 %897
        %899 = vrot.lane.b32.xlu0 %v527, 126
        %v900 = vpop.permute.xlu0 %899
        %v905 = vsel %vm566, %v871, 0
        %v908 = vsel %vm566, %v872, 0
        %v911 = vsel %vm566, %v873, 0
        %v914 = vsel %vm566, %v874, 0
        %v917 = vsel %vm566, %v875, 0
        %v920 = vsel %vm566, %v876, 0
        %v923 = vsel %vm566, %v877, 0
        %v926 = vsel %vm566, %v878, 0
        %v929 = vsel %vm566, %v879, 0
        %v932 = vsel %vm566, %v880, 0
        %v935 = vsel %vm566, %v881, 0
        %v938 = vsel %vm566, %v882, 0
        %v941 = vsel %vm566, %v883, 0
        %v944 = vsel %vm566, %v884, 0
        %v947 = vsel %vm566, %v885, 0
        %v950 = vsel %vm566, %v886, 0
        %v953 = vsel %vm566, %v887, 0
        %v956 = vsel %vm566, %v888, 0
        %v959 = vsel %vm566, %v889, 0
        %v962 = vsel %vm566, %v890, 0
        %v965 = vsel %vm566, %v891, 0
        %v968 = vsel %vm566, %v892, 0
        %v970 = vsel %vm633, %v900, 0
        %972 = vmatpush.msra.mxu0 0.0
        %973 = vmatpush.msra.mxu0 0.0
        %974 = vmatpush.msra.mxu0 0.0
        %975 = vmatpush.msra.mxu0 0.0
        %976 = vmatpush.msra.mxu0 0.0
        %977 = vmatpush.msra.mxu0 0.0
        %978 = vmatpush.msra.mxu0 0.0
        %979 = vmatpush.msra.mxu0 0.0
        %980 = vmatpush.msra.mxu0 0.0
        %981 = vmatpush.msra.mxu0 0.0
        %982 = vmatpush.msra.mxu0 0.0
        %983 = vmatpush.msra.mxu0 0.0
        %984 = vmatpush.msra.mxu0 %v970
        %985 = vmatpush.msra.mxu0 %v898
        %986 = vmatpush.msra.mxu0 %v896
        %987 = vmatpush.msra.mxu0 %v894
        %988 = vmatmul.f32.gmra.mxu0 %v905
        %v989 = vpop.f32.mrf.mxu0
        %v990 = vadd.f32 0.0, %v989
        %991 = vmatmul.f32.gmra.mxu0 %v908
        %v992 = vpop.f32.mrf.mxu0
        %v993 = vadd.f32 0.0, %v992
        %994 = vmatmul.f32.gmra.mxu0 %v911
        %v995 = vpop.f32.mrf.mxu0
        %v996 = vadd.f32 0.0, %v995
        %997 = vmatmul.f32.gmra.mxu0 %v914
        %v998 = vpop.f32.mrf.mxu0
        %v999 = vadd.f32 0.0, %v998
        %1000 = vmatmul.f32.gmra.mxu0 %v917
        %v1001 = vpop.f32.mrf.mxu0
        %v1002 = vadd.f32 0.0, %v1001
        %1003 = vmatmul.f32.gmra.mxu0 %v920
        %v1004 = vpop.f32.mrf.mxu0
        %v1005 = vadd.f32 0.0, %v1004
        %1006 = vmatmul.f32.gmra.mxu0 %v923
        %v1007 = vpop.f32.mrf.mxu0
        %v1008 = vadd.f32 0.0, %v1007
        %1009 = vmatmul.f32.gmra.mxu0 %v926
        %v1010 = vpop.f32.mrf.mxu0
        %v1011 = vadd.f32 0.0, %v1010
        %1012 = vmatmul.f32.gmra.mxu0 %v929
        %v1013 = vpop.f32.mrf.mxu0
        %v1014 = vadd.f32 0.0, %v1013
        %1015 = vmatmul.f32.gmra.mxu0 %v932
        %v1016 = vpop.f32.mrf.mxu0
        %v1017 = vadd.f32 0.0, %v1016
        %1018 = vmatmul.f32.gmra.mxu0 %v935
        %v1019 = vpop.f32.mrf.mxu0
        %v1020 = vadd.f32 0.0, %v1019
        %1021 = vmatmul.f32.gmra.mxu0 %v938
        %v1022 = vpop.f32.mrf.mxu0
        %v1023 = vadd.f32 0.0, %v1022
        %1024 = vmatmul.f32.gmra.mxu0 %v941
        %v1025 = vpop.f32.mrf.mxu0
        %v1026 = vadd.f32 0.0, %v1025
        %1027 = vmatmul.f32.gmra.mxu0 %v944
        %v1028 = vpop.f32.mrf.mxu0
        %v1029 = vadd.f32 0.0, %v1028
        %1030 = vmatmul.f32.gmra.mxu0 %v947
        %v1031 = vpop.f32.mrf.mxu0
        %v1032 = vadd.f32 0.0, %v1031
        %1033 = vmatmul.f32.gmra.mxu0 %v950
        %v1034 = vpop.f32.mrf.mxu0
        %v1035 = vadd.f32 0.0, %v1034
        %1036 = vmatmul.f32.gmra.mxu0 %v953
        %v1037 = vpop.f32.mrf.mxu0
        %v1038 = vadd.f32 0.0, %v1037
        %1039 = vmatmul.f32.gmra.mxu0 %v956
        %v1040 = vpop.f32.mrf.mxu0
        %v1041 = vadd.f32 0.0, %v1040
        %1042 = vmatmul.f32.gmra.mxu0 %v959
        %v1043 = vpop.f32.mrf.mxu0
        %v1044 = vadd.f32 0.0, %v1043
        %1045 = vmatmul.f32.gmra.mxu0 %v962
        %v1046 = vpop.f32.mrf.mxu0
        %v1047 = vadd.f32 0.0, %v1046
        %1048 = vmatmul.f32.gmra.mxu0 %v965
        %v1049 = vpop.f32.mrf.mxu0
        %v1050 = vadd.f32 0.0, %v1049
        %1051 = vmatmul.f32.gmra.mxu0 %v968
        %v1052 = vpop.f32.mrf.mxu0
        %v1053 = vadd.f32 0.0, %v1052
        %1054 = vdwg.mxu0
        %v1055 = vadd.f32 %v805, %v990
        %v1056 = vadd.f32 %v808, %v993
        %v1057 = vadd.f32 %v811, %v996
        %v1058 = vadd.f32 %v814, %v999
        %v1059 = vadd.f32 %v817, %v1002
        %v1060 = vadd.f32 %v820, %v1005
        %v1061 = vadd.f32 %v823, %v1008
        %v1062 = vadd.f32 %v826, %v1011
        %v1063 = vadd.f32 %v829, %v1014
        %v1064 = vadd.f32 %v832, %v1017
        %v1065 = vadd.f32 %v835, %v1020
        %v1066 = vadd.f32 %v838, %v1023
        %v1067 = vadd.f32 %v841, %v1026
        %v1068 = vadd.f32 %v844, %v1029
        %v1069 = vadd.f32 %v847, %v1032
        %v1070 = vadd.f32 %v850, %v1035
        %v1071 = vadd.f32 %v853, %v1038
        %v1072 = vadd.f32 %v856, %v1041
        %v1073 = vadd.f32 %v859, %v1044
        %v1074 = vadd.f32 %v862, %v1047
        %v1075 = vadd.f32 %v865, %v1050
        %v1076 = vadd.f32 %v868, %v1053
        %s1077 = scalar_lea.vmem %s2, 528
        %v1078 = vld [vmem:[%s1077] sm:$0xff]
        %v1079 = vld [vmem:[%s1077 + $0x8] sm:$0xff]
        %v1080 = vld [vmem:[%s1077 + $0x10] sm:$0xff]
        %v1081 = vld [vmem:[%s1077 + $0x18] sm:$0xff]
        %v1082 = vld [vmem:[%s1077 + $0x20] sm:$0xff]
        %v1083 = vld [vmem:[%s1077 + $0x28] sm:$0xff]
        %v1084 = vld [vmem:[%s1077 + $0x30] sm:$0xff]
        %v1085 = vld [vmem:[%s1077 + $0x38] sm:$0xff]
        %v1086 = vld [vmem:[%s1077 + $0x40] sm:$0xff]
        %v1087 = vld [vmem:[%s1077 + $0x48] sm:$0xff]
        %v1088 = vld [vmem:[%s1077 + $0x50] sm:$0xff]
        %v1089 = vld [vmem:[%s1077 + $0x58] sm:$0xff]
        %v1090 = vld [vmem:[%s1077 + $0x60] sm:$0xff]
        %v1091 = vld [vmem:[%s1077 + $0x68] sm:$0xff]
        %v1092 = vld [vmem:[%s1077 + $0x70] sm:$0xff]
        %v1093 = vld [vmem:[%s1077 + $0x78] sm:$0xff]
        %v1094 = vld [vmem:[%s1077 + $0x80] sm:$0xff]
        %v1095 = vld [vmem:[%s1077 + $0x88] sm:$0xff]
        %v1096 = vld [vmem:[%s1077 + $0x90] sm:$0xff]
        %v1097 = vld [vmem:[%s1077 + $0x98] sm:$0xff]
        %v1098 = vld [vmem:[%s1077 + $0xa0] sm:$0xff]
        %v1099 = vld [vmem:[%s1077 + $0xa8] sm:$0xff]
        %1100 = vrot.lane.b32.xlu0 %v524, 125
        %v1101 = vpop.permute.xlu0 %1100
        %1102 = vrot.lane.b32.xlu0 %v525, 125
        %v1103 = vpop.permute.xlu0 %1102
        %1104 = vrot.lane.b32.xlu0 %v526, 125
        %v1105 = vpop.permute.xlu0 %1104
        %1106 = vrot.lane.b32.xlu0 %v527, 125
        %v1107 = vpop.permute.xlu0 %1106
        %v1112 = vsel %vm566, %v1078, 0
        %v1115 = vsel %vm566, %v1079, 0
        %v1118 = vsel %vm566, %v1080, 0
        %v1121 = vsel %vm566, %v1081, 0
        %v1124 = vsel %vm566, %v1082, 0
        %v1127 = vsel %vm566, %v1083, 0
        %v1130 = vsel %vm566, %v1084, 0
        %v1133 = vsel %vm566, %v1085, 0
        %v1136 = vsel %vm566, %v1086, 0
        %v1139 = vsel %vm566, %v1087, 0
        %v1142 = vsel %vm566, %v1088, 0
        %v1145 = vsel %vm566, %v1089, 0
        %v1148 = vsel %vm566, %v1090, 0
        %v1151 = vsel %vm566, %v1091, 0
        %v1154 = vsel %vm566, %v1092, 0
        %v1157 = vsel %vm566, %v1093, 0
        %v1160 = vsel %vm566, %v1094, 0
        %v1163 = vsel %vm566, %v1095, 0
        %v1166 = vsel %vm566, %v1096, 0
        %v1169 = vsel %vm566, %v1097, 0
        %v1172 = vsel %vm566, %v1098, 0
        %v1175 = vsel %vm566, %v1099, 0
        %v1177 = vsel %vm633, %v1107, 0
        %1179 = vmatpush.msra.mxu0 0.0
        %1180 = vmatpush.msra.mxu0 0.0
        %1181 = vmatpush.msra.mxu0 0.0
        %1182 = vmatpush.msra.mxu0 0.0
        %1183 = vmatpush.msra.mxu0 0.0
        %1184 = vmatpush.msra.mxu0 0.0
        %1185 = vmatpush.msra.mxu0 0.0
        %1186 = vmatpush.msra.mxu0 0.0
        %1187 = vmatpush.msra.mxu0 0.0
        %1188 = vmatpush.msra.mxu0 0.0
        %1189 = vmatpush.msra.mxu0 0.0
        %1190 = vmatpush.msra.mxu0 0.0
        %1191 = vmatpush.msra.mxu0 %v1177
        %1192 = vmatpush.msra.mxu0 %v1105
        %1193 = vmatpush.msra.mxu0 %v1103
        %1194 = vmatpush.msra.mxu0 %v1101
        %1195 = vmatmul.f32.gmra.mxu0 %v1112
        %v1196 = vpop.f32.mrf.mxu0
        %v1197 = vadd.f32 0.0, %v1196
        %1198 = vmatmul.f32.gmra.mxu0 %v1115
        %v1199 = vpop.f32.mrf.mxu0
        %v1200 = vadd.f32 0.0, %v1199
        %1201 = vmatmul.f32.gmra.mxu0 %v1118
        %v1202 = vpop.f32.mrf.mxu0
        %v1203 = vadd.f32 0.0, %v1202
        %1204 = vmatmul.f32.gmra.mxu0 %v1121
        %v1205 = vpop.f32.mrf.mxu0
        %v1206 = vadd.f32 0.0, %v1205
        %1207 = vmatmul.f32.gmra.mxu0 %v1124
        %v1208 = vpop.f32.mrf.mxu0
        %v1209 = vadd.f32 0.0, %v1208
        %1210 = vmatmul.f32.gmra.mxu0 %v1127
        %v1211 = vpop.f32.mrf.mxu0
        %v1212 = vadd.f32 0.0, %v1211
        %1213 = vmatmul.f32.gmra.mxu0 %v1130
        %v1214 = vpop.f32.mrf.mxu0
        %v1215 = vadd.f32 0.0, %v1214
        %1216 = vmatmul.f32.gmra.mxu0 %v1133
        %v1217 = vpop.f32.mrf.mxu0
        %v1218 = vadd.f32 0.0, %v1217
        %1219 = vmatmul.f32.gmra.mxu0 %v1136
        %v1220 = vpop.f32.mrf.mxu0
        %v1221 = vadd.f32 0.0, %v1220
        %1222 = vmatmul.f32.gmra.mxu0 %v1139
        %v1223 = vpop.f32.mrf.mxu0
        %v1224 = vadd.f32 0.0, %v1223
        %1225 = vmatmul.f32.gmra.mxu0 %v1142
        %v1226 = vpop.f32.mrf.mxu0
        %v1227 = vadd.f32 0.0, %v1226
        %1228 = vmatmul.f32.gmra.mxu0 %v1145
        %v1229 = vpop.f32.mrf.mxu0
        %v1230 = vadd.f32 0.0, %v1229
        %1231 = vmatmul.f32.gmra.mxu0 %v1148
        %v1232 = vpop.f32.mrf.mxu0
        %v1233 = vadd.f32 0.0, %v1232
        %1234 = vmatmul.f32.gmra.mxu0 %v1151
        %v1235 = vpop.f32.mrf.mxu0
        %v1236 = vadd.f32 0.0, %v1235
        %1237 = vmatmul.f32.gmra.mxu0 %v1154
        %v1238 = vpop.f32.mrf.mxu0
        %v1239 = vadd.f32 0.0, %v1238
        %1240 = vmatmul.f32.gmra.mxu0 %v1157
        %v1241 = vpop.f32.mrf.mxu0
        %v1242 = vadd.f32 0.0, %v1241
        %1243 = vmatmul.f32.gmra.mxu0 %v1160
        %v1244 = vpop.f32.mrf.mxu0
        %v1245 = vadd.f32 0.0, %v1244
        %1246 = vmatmul.f32.gmra.mxu0 %v1163
        %v1247 = vpop.f32.mrf.mxu0
        %v1248 = vadd.f32 0.0, %v1247
        %1249 = vmatmul.f32.gmra.mxu0 %v1166
        %v1250 = vpop.f32.mrf.mxu0
        %v1251 = vadd.f32 0.0, %v1250
        %1252 = vmatmul.f32.gmra.mxu0 %v1169
        %v1253 = vpop.f32.mrf.mxu0
        %v1254 = vadd.f32 0.0, %v1253
        %1255 = vmatmul.f32.gmra.mxu0 %v1172
        %v1256 = vpop.f32.mrf.mxu0
        %v1257 = vadd.f32 0.0, %v1256
        %1258 = vmatmul.f32.gmra.mxu0 %v1175
        %v1259 = vpop.f32.mrf.mxu0
        %v1260 = vadd.f32 0.0, %v1259
        %1261 = vdwg.mxu0
        %v1262 = vadd.f32 %v1055, %v1197
        %v1263 = vadd.f32 %v1056, %v1200
        %v1264 = vadd.f32 %v1057, %v1203
        %v1265 = vadd.f32 %v1058, %v1206
        %v1266 = vadd.f32 %v1059, %v1209
        %v1267 = vadd.f32 %v1060, %v1212
        %v1268 = vadd.f32 %v1061, %v1215
        %v1269 = vadd.f32 %v1062, %v1218
        %v1270 = vadd.f32 %v1063, %v1221
        %v1271 = vadd.f32 %v1064, %v1224
        %v1272 = vadd.f32 %v1065, %v1227
        %v1273 = vadd.f32 %v1066, %v1230
        %v1274 = vadd.f32 %v1067, %v1233
        %v1275 = vadd.f32 %v1068, %v1236
        %v1276 = vadd.f32 %v1069, %v1239
        %v1277 = vadd.f32 %v1070, %v1242
        %v1278 = vadd.f32 %v1071, %v1245
        %v1279 = vadd.f32 %v1072, %v1248
        %v1280 = vadd.f32 %v1073, %v1251
        %v1281 = vadd.f32 %v1074, %v1254
        %v1282 = vadd.f32 %v1075, %v1257
        %v1283 = vadd.f32 %v1076, %v1260
        %s1284 = scalar_lea.vmem %s2, 704
        %v1285 = vld [vmem:[%s1284] sm:$0xff]
        %v1286 = vld [vmem:[%s1284 + $0x8] sm:$0xff]
        %v1287 = vld [vmem:[%s1284 + $0x10] sm:$0xff]
        %v1288 = vld [vmem:[%s1284 + $0x18] sm:$0xff]
        %v1289 = vld [vmem:[%s1284 + $0x20] sm:$0xff]
        %v1290 = vld [vmem:[%s1284 + $0x28] sm:$0xff]
        %v1291 = vld [vmem:[%s1284 + $0x30] sm:$0xff]
        %v1292 = vld [vmem:[%s1284 + $0x38] sm:$0xff]
        %v1293 = vld [vmem:[%s1284 + $0x40] sm:$0xff]
        %v1294 = vld [vmem:[%s1284 + $0x48] sm:$0xff]
        %v1295 = vld [vmem:[%s1284 + $0x50] sm:$0xff]
        %v1296 = vld [vmem:[%s1284 + $0x58] sm:$0xff]
        %v1297 = vld [vmem:[%s1284 + $0x60] sm:$0xff]
        %v1298 = vld [vmem:[%s1284 + $0x68] sm:$0xff]
        %v1299 = vld [vmem:[%s1284 + $0x70] sm:$0xff]
        %v1300 = vld [vmem:[%s1284 + $0x78] sm:$0xff]
        %v1301 = vld [vmem:[%s1284 + $0x80] sm:$0xff]
        %v1302 = vld [vmem:[%s1284 + $0x88] sm:$0xff]
        %v1303 = vld [vmem:[%s1284 + $0x90] sm:$0xff]
        %v1304 = vld [vmem:[%s1284 + $0x98] sm:$0xff]
        %v1305 = vld [vmem:[%s1284 + $0xa0] sm:$0xff]
        %v1306 = vld [vmem:[%s1284 + $0xa8] sm:$0xff]
        %1307 = vrot.lane.b32.xlu0 %v524, 124
        %v1308 = vpop.permute.xlu0 %1307
        %1309 = vrot.lane.b32.xlu0 %v525, 124
        %v1310 = vpop.permute.xlu0 %1309
        %1311 = vrot.lane.b32.xlu0 %v526, 124
        %v1312 = vpop.permute.xlu0 %1311
        %1313 = vrot.lane.b32.xlu0 %v527, 124
        %v1314 = vpop.permute.xlu0 %1313
        %v1319 = vsel %vm566, %v1285, 0
        %v1322 = vsel %vm566, %v1286, 0
        %v1325 = vsel %vm566, %v1287, 0
        %v1328 = vsel %vm566, %v1288, 0
        %v1331 = vsel %vm566, %v1289, 0
        %v1334 = vsel %vm566, %v1290, 0
        %v1337 = vsel %vm566, %v1291, 0
        %v1340 = vsel %vm566, %v1292, 0
        %v1343 = vsel %vm566, %v1293, 0
        %v1346 = vsel %vm566, %v1294, 0
        %v1349 = vsel %vm566, %v1295, 0
        %v1352 = vsel %vm566, %v1296, 0
        %v1355 = vsel %vm566, %v1297, 0
        %v1358 = vsel %vm566, %v1298, 0
        %v1361 = vsel %vm566, %v1299, 0
        %v1364 = vsel %vm566, %v1300, 0
        %v1367 = vsel %vm566, %v1301, 0
        %v1370 = vsel %vm566, %v1302, 0
        %v1373 = vsel %vm566, %v1303, 0
        %v1376 = vsel %vm566, %v1304, 0
        %v1379 = vsel %vm566, %v1305, 0
        %v1382 = vsel %vm566, %v1306, 0
        %v1384 = vsel %vm633, %v1314, 0
        %1386 = vmatpush.msra.mxu0 0.0
        %1387 = vmatpush.msra.mxu0 0.0
        %1388 = vmatpush.msra.mxu0 0.0
        %1389 = vmatpush.msra.mxu0 0.0
        %1390 = vmatpush.msra.mxu0 0.0
        %1391 = vmatpush.msra.mxu0 0.0
        %1392 = vmatpush.msra.mxu0 0.0
        %1393 = vmatpush.msra.mxu0 0.0
        %1394 = vmatpush.msra.mxu0 0.0
        %1395 = vmatpush.msra.mxu0 0.0
        %1396 = vmatpush.msra.mxu0 0.0
        %1397 = vmatpush.msra.mxu0 0.0
        %1398 = vmatpush.msra.mxu0 %v1384
        %1399 = vmatpush.msra.mxu0 %v1312
        %1400 = vmatpush.msra.mxu0 %v1310
        %1401 = vmatpush.msra.mxu0 %v1308
        %1402 = vmatmul.f32.gmra.mxu0 %v1319
        %v1403 = vpop.f32.mrf.mxu0
        %v1404 = vadd.f32 0.0, %v1403
        %1405 = vmatmul.f32.gmra.mxu0 %v1322
        %v1406 = vpop.f32.mrf.mxu0
        %v1407 = vadd.f32 0.0, %v1406
        %1408 = vmatmul.f32.gmra.mxu0 %v1325
        %v1409 = vpop.f32.mrf.mxu0
        %v1410 = vadd.f32 0.0, %v1409
        %1411 = vmatmul.f32.gmra.mxu0 %v1328
        %v1412 = vpop.f32.mrf.mxu0
        %v1413 = vadd.f32 0.0, %v1412
        %1414 = vmatmul.f32.gmra.mxu0 %v1331
        %v1415 = vpop.f32.mrf.mxu0
        %v1416 = vadd.f32 0.0, %v1415
        %1417 = vmatmul.f32.gmra.mxu0 %v1334
        %v1418 = vpop.f32.mrf.mxu0
        %v1419 = vadd.f32 0.0, %v1418
        %1420 = vmatmul.f32.gmra.mxu0 %v1337
        %v1421 = vpop.f32.mrf.mxu0
        %v1422 = vadd.f32 0.0, %v1421
        %1423 = vmatmul.f32.gmra.mxu0 %v1340
        %v1424 = vpop.f32.mrf.mxu0
        %v1425 = vadd.f32 0.0, %v1424
        %1426 = vmatmul.f32.gmra.mxu0 %v1343
        %v1427 = vpop.f32.mrf.mxu0
        %v1428 = vadd.f32 0.0, %v1427
        %1429 = vmatmul.f32.gmra.mxu0 %v1346
        %v1430 = vpop.f32.mrf.mxu0
        %v1431 = vadd.f32 0.0, %v1430
        %1432 = vmatmul.f32.gmra.mxu0 %v1349
        %v1433 = vpop.f32.mrf.mxu0
        %v1434 = vadd.f32 0.0, %v1433
        %1435 = vmatmul.f32.gmra.mxu0 %v1352
        %v1436 = vpop.f32.mrf.mxu0
        %v1437 = vadd.f32 0.0, %v1436
        %1438 = vmatmul.f32.gmra.mxu0 %v1355
        %v1439 = vpop.f32.mrf.mxu0
        %v1440 = vadd.f32 0.0, %v1439
        %1441 = vmatmul.f32.gmra.mxu0 %v1358
        %v1442 = vpop.f32.mrf.mxu0
        %v1443 = vadd.f32 0.0, %v1442
        %1444 = vmatmul.f32.gmra.mxu0 %v1361
        %v1445 = vpop.f32.mrf.mxu0
        %v1446 = vadd.f32 0.0, %v1445
        %1447 = vmatmul.f32.gmra.mxu0 %v1364
        %v1448 = vpop.f32.mrf.mxu0
        %v1449 = vadd.f32 0.0, %v1448
        %1450 = vmatmul.f32.gmra.mxu0 %v1367
        %v1451 = vpop.f32.mrf.mxu0
        %v1452 = vadd.f32 0.0, %v1451
        %1453 = vmatmul.f32.gmra.mxu0 %v1370
        %v1454 = vpop.f32.mrf.mxu0
        %v1455 = vadd.f32 0.0, %v1454
        %1456 = vmatmul.f32.gmra.mxu0 %v1373
        %v1457 = vpop.f32.mrf.mxu0
        %v1458 = vadd.f32 0.0, %v1457
        %1459 = vmatmul.f32.gmra.mxu0 %v1376
        %v1460 = vpop.f32.mrf.mxu0
        %v1461 = vadd.f32 0.0, %v1460
        %1462 = vmatmul.f32.gmra.mxu0 %v1379
        %v1463 = vpop.f32.mrf.mxu0
        %v1464 = vadd.f32 0.0, %v1463
        %1465 = vmatmul.f32.gmra.mxu0 %v1382
        %v1466 = vpop.f32.mrf.mxu0
        %v1467 = vadd.f32 0.0, %v1466
        %1468 = vdwg.mxu0
        %v1469 = vadd.f32 %v1262, %v1404
        %v1470 = vadd.f32 %v1263, %v1407
        %v1471 = vadd.f32 %v1264, %v1410
        %v1472 = vadd.f32 %v1265, %v1413
        %v1473 = vadd.f32 %v1266, %v1416
        %v1474 = vadd.f32 %v1267, %v1419
        %v1475 = vadd.f32 %v1268, %v1422
        %v1476 = vadd.f32 %v1269, %v1425
        %v1477 = vadd.f32 %v1270, %v1428
        %v1478 = vadd.f32 %v1271, %v1431
        %v1479 = vadd.f32 %v1272, %v1434
        %v1480 = vadd.f32 %v1273, %v1437
        %v1481 = vadd.f32 %v1274, %v1440
        %v1482 = vadd.f32 %v1275, %v1443
        %v1483 = vadd.f32 %v1276, %v1446
        %v1484 = vadd.f32 %v1277, %v1449
        %v1485 = vadd.f32 %v1278, %v1452
        %v1486 = vadd.f32 %v1279, %v1455
        %v1487 = vadd.f32 %v1280, %v1458
        %v1488 = vadd.f32 %v1281, %v1461
        %v1489 = vadd.f32 %v1282, %v1464
        %v1490 = vadd.f32 %v1283, %v1467
        %s1491 = scalar_lea.vmem %s2, 880
        %v1492 = vld [vmem:[%s1491] sm:$0xff]
        %v1493 = vld [vmem:[%s1491 + $0x8] sm:$0xff]
        %v1494 = vld [vmem:[%s1491 + $0x10] sm:$0xff]
        %v1495 = vld [vmem:[%s1491 + $0x18] sm:$0xff]
        %v1496 = vld [vmem:[%s1491 + $0x20] sm:$0xff]
        %v1497 = vld [vmem:[%s1491 + $0x28] sm:$0xff]
        %v1498 = vld [vmem:[%s1491 + $0x30] sm:$0xff]
        %v1499 = vld [vmem:[%s1491 + $0x38] sm:$0xff]
        %v1500 = vld [vmem:[%s1491 + $0x40] sm:$0xff]
        %v1501 = vld [vmem:[%s1491 + $0x48] sm:$0xff]
        %v1502 = vld [vmem:[%s1491 + $0x50] sm:$0xff]
        %v1503 = vld [vmem:[%s1491 + $0x58] sm:$0xff]
        %v1504 = vld [vmem:[%s1491 + $0x60] sm:$0xff]
        %v1505 = vld [vmem:[%s1491 + $0x68] sm:$0xff]
        %v1506 = vld [vmem:[%s1491 + $0x70] sm:$0xff]
        %v1507 = vld [vmem:[%s1491 + $0x78] sm:$0xff]
        %v1508 = vld [vmem:[%s1491 + $0x80] sm:$0xff]
        %v1509 = vld [vmem:[%s1491 + $0x88] sm:$0xff]
        %v1510 = vld [vmem:[%s1491 + $0x90] sm:$0xff]
        %v1511 = vld [vmem:[%s1491 + $0x98] sm:$0xff]
        %v1512 = vld [vmem:[%s1491 + $0xa0] sm:$0xff]
        %v1513 = vld [vmem:[%s1491 + $0xa8] sm:$0xff]
        %1514 = vrot.lane.b32.xlu0 %v524, 123
        %v1515 = vpop.permute.xlu0 %1514
        %1516 = vrot.lane.b32.xlu0 %v525, 123
        %v1517 = vpop.permute.xlu0 %1516
        %1518 = vrot.lane.b32.xlu0 %v526, 123
        %v1519 = vpop.permute.xlu0 %1518
        %1520 = vrot.lane.b32.xlu0 %v527, 123
        %v1521 = vpop.permute.xlu0 %1520
        %v1526 = vsel %vm566, %v1492, 0
        %v1529 = vsel %vm566, %v1493, 0
        %v1532 = vsel %vm566, %v1494, 0
        %v1535 = vsel %vm566, %v1495, 0
        %v1538 = vsel %vm566, %v1496, 0
        %v1541 = vsel %vm566, %v1497, 0
        %v1544 = vsel %vm566, %v1498, 0
        %v1547 = vsel %vm566, %v1499, 0
        %v1550 = vsel %vm566, %v1500, 0
        %v1553 = vsel %vm566, %v1501, 0
        %v1556 = vsel %vm566, %v1502, 0
        %v1559 = vsel %vm566, %v1503, 0
        %v1562 = vsel %vm566, %v1504, 0
        %v1565 = vsel %vm566, %v1505, 0
        %v1568 = vsel %vm566, %v1506, 0
        %v1571 = vsel %vm566, %v1507, 0
        %v1574 = vsel %vm566, %v1508, 0
        %v1577 = vsel %vm566, %v1509, 0
        %v1580 = vsel %vm566, %v1510, 0
        %v1583 = vsel %vm566, %v1511, 0
        %v1586 = vsel %vm566, %v1512, 0
        %v1589 = vsel %vm566, %v1513, 0
        %v1591 = vsel %vm633, %v1521, 0
        %1593 = vmatpush.msra.mxu0 0.0
        %1594 = vmatpush.msra.mxu0 0.0
        %1595 = vmatpush.msra.mxu0 0.0
        %1596 = vmatpush.msra.mxu0 0.0
        %1597 = vmatpush.msra.mxu0 0.0
        %1598 = vmatpush.msra.mxu0 0.0
        %1599 = vmatpush.msra.mxu0 0.0
        %1600 = vmatpush.msra.mxu0 0.0
        %1601 = vmatpush.msra.mxu0 0.0
        %1602 = vmatpush.msra.mxu0 0.0
        %1603 = vmatpush.msra.mxu0 0.0
        %1604 = vmatpush.msra.mxu0 0.0
        %1605 = vmatpush.msra.mxu0 %v1591
        %1606 = vmatpush.msra.mxu0 %v1519
        %1607 = vmatpush.msra.mxu0 %v1517
        %1608 = vmatpush.msra.mxu0 %v1515
        %1609 = vmatmul.f32.gmra.mxu0 %v1526
        %v1610 = vpop.f32.mrf.mxu0
        %v1611 = vadd.f32 0.0, %v1610
        %1612 = vmatmul.f32.gmra.mxu0 %v1529
        %v1613 = vpop.f32.mrf.mxu0
        %v1614 = vadd.f32 0.0, %v1613
        %1615 = vmatmul.f32.gmra.mxu0 %v1532
        %v1616 = vpop.f32.mrf.mxu0
        %v1617 = vadd.f32 0.0, %v1616
        %1618 = vmatmul.f32.gmra.mxu0 %v1535
        %v1619 = vpop.f32.mrf.mxu0
        %v1620 = vadd.f32 0.0, %v1619
        %1621 = vmatmul.f32.gmra.mxu0 %v1538
        %v1622 = vpop.f32.mrf.mxu0
        %v1623 = vadd.f32 0.0, %v1622
        %1624 = vmatmul.f32.gmra.mxu0 %v1541
        %v1625 = vpop.f32.mrf.mxu0
        %v1626 = vadd.f32 0.0, %v1625
        %1627 = vmatmul.f32.gmra.mxu0 %v1544
        %v1628 = vpop.f32.mrf.mxu0
        %v1629 = vadd.f32 0.0, %v1628
        %1630 = vmatmul.f32.gmra.mxu0 %v1547
        %v1631 = vpop.f32.mrf.mxu0
        %v1632 = vadd.f32 0.0, %v1631
        %1633 = vmatmul.f32.gmra.mxu0 %v1550
        %v1634 = vpop.f32.mrf.mxu0
        %v1635 = vadd.f32 0.0, %v1634
        %1636 = vmatmul.f32.gmra.mxu0 %v1553
        %v1637 = vpop.f32.mrf.mxu0
        %v1638 = vadd.f32 0.0, %v1637
        %1639 = vmatmul.f32.gmra.mxu0 %v1556
        %v1640 = vpop.f32.mrf.mxu0
        %v1641 = vadd.f32 0.0, %v1640
        %1642 = vmatmul.f32.gmra.mxu0 %v1559
        %v1643 = vpop.f32.mrf.mxu0
        %v1644 = vadd.f32 0.0, %v1643
        %1645 = vmatmul.f32.gmra.mxu0 %v1562
        %v1646 = vpop.f32.mrf.mxu0
        %v1647 = vadd.f32 0.0, %v1646
        %1648 = vmatmul.f32.gmra.mxu0 %v1565
        %v1649 = vpop.f32.mrf.mxu0
        %v1650 = vadd.f32 0.0, %v1649
        %1651 = vmatmul.f32.gmra.mxu0 %v1568
        %v1652 = vpop.f32.mrf.mxu0
        %v1653 = vadd.f32 0.0, %v1652
        %1654 = vmatmul.f32.gmra.mxu0 %v1571
        %v1655 = vpop.f32.mrf.mxu0
        %v1656 = vadd.f32 0.0, %v1655
        %1657 = vmatmul.f32.gmra.mxu0 %v1574
        %v1658 = vpop.f32.mrf.mxu0
        %v1659 = vadd.f32 0.0, %v1658
        %1660 = vmatmul.f32.gmra.mxu0 %v1577
        %v1661 = vpop.f32.mrf.mxu0
        %v1662 = vadd.f32 0.0, %v1661
        %1663 = vmatmul.f32.gmra.mxu0 %v1580
        %v1664 = vpop.f32.mrf.mxu0
        %v1665 = vadd.f32 0.0, %v1664
        %1666 = vmatmul.f32.gmra.mxu0 %v1583
        %v1667 = vpop.f32.mrf.mxu0
        %v1668 = vadd.f32 0.0, %v1667
        %1669 = vmatmul.f32.gmra.mxu0 %v1586
        %v1670 = vpop.f32.mrf.mxu0
        %v1671 = vadd.f32 0.0, %v1670
        %1672 = vmatmul.f32.gmra.mxu0 %v1589
        %v1673 = vpop.f32.mrf.mxu0
        %v1674 = vadd.f32 0.0, %v1673
        %1675 = vdwg.mxu0
        %v1676 = vadd.f32 %v1469, %v1611
        %v1677 = vadd.f32 %v1470, %v1614
        %v1678 = vadd.f32 %v1471, %v1617
        %v1679 = vadd.f32 %v1472, %v1620
        %v1680 = vadd.f32 %v1473, %v1623
        %v1681 = vadd.f32 %v1474, %v1626
        %v1682 = vadd.f32 %v1475, %v1629
        %v1683 = vadd.f32 %v1476, %v1632
        %v1684 = vadd.f32 %v1477, %v1635
        %v1685 = vadd.f32 %v1478, %v1638
        %v1686 = vadd.f32 %v1479, %v1641
        %v1687 = vadd.f32 %v1480, %v1644
        %v1688 = vadd.f32 %v1481, %v1647
        %v1689 = vadd.f32 %v1482, %v1650
        %v1690 = vadd.f32 %v1483, %v1653
        %v1691 = vadd.f32 %v1484, %v1656
        %v1692 = vadd.f32 %v1485, %v1659
        %v1693 = vadd.f32 %v1486, %v1662
        %v1694 = vadd.f32 %v1487, %v1665
        %v1695 = vadd.f32 %v1488, %v1668
        %v1696 = vadd.f32 %v1489, %v1671
        %v1697 = vadd.f32 %v1490, %v1674
        %s1698 = scalar_lea.vmem %s2, 1056
        %v1699 = vld [vmem:[%s1698] sm:$0xff]
        %v1700 = vld [vmem:[%s1698 + $0x8] sm:$0xff]
        %v1701 = vld [vmem:[%s1698 + $0x10] sm:$0xff]
        %v1702 = vld [vmem:[%s1698 + $0x18] sm:$0xff]
        %v1703 = vld [vmem:[%s1698 + $0x20] sm:$0xff]
        %v1704 = vld [vmem:[%s1698 + $0x28] sm:$0xff]
        %v1705 = vld [vmem:[%s1698 + $0x30] sm:$0xff]
        %v1706 = vld [vmem:[%s1698 + $0x38] sm:$0xff]
        %v1707 = vld [vmem:[%s1698 + $0x40] sm:$0xff]
        %v1708 = vld [vmem:[%s1698 + $0x48] sm:$0xff]
        %v1709 = vld [vmem:[%s1698 + $0x50] sm:$0xff]
        %v1710 = vld [vmem:[%s1698 + $0x58] sm:$0xff]
        %v1711 = vld [vmem:[%s1698 + $0x60] sm:$0xff]
        %v1712 = vld [vmem:[%s1698 + $0x68] sm:$0xff]
        %v1713 = vld [vmem:[%s1698 + $0x70] sm:$0xff]
        %v1714 = vld [vmem:[%s1698 + $0x78] sm:$0xff]
        %v1715 = vld [vmem:[%s1698 + $0x80] sm:$0xff]
        %v1716 = vld [vmem:[%s1698 + $0x88] sm:$0xff]
        %v1717 = vld [vmem:[%s1698 + $0x90] sm:$0xff]
        %v1718 = vld [vmem:[%s1698 + $0x98] sm:$0xff]
        %v1719 = vld [vmem:[%s1698 + $0xa0] sm:$0xff]
        %v1720 = vld [vmem:[%s1698 + $0xa8] sm:$0xff]
        %1721 = vrot.lane.b32.xlu0 %v524, 122
        %v1722 = vpop.permute.xlu0 %1721
        %1723 = vrot.lane.b32.xlu0 %v525, 122
        %v1724 = vpop.permute.xlu0 %1723
        %1725 = vrot.lane.b32.xlu0 %v526, 122
        %v1726 = vpop.permute.xlu0 %1725
        %1727 = vrot.lane.b32.xlu0 %v527, 122
        %v1728 = vpop.permute.xlu0 %1727
        %v1733 = vsel %vm566, %v1699, 0
        %v1736 = vsel %vm566, %v1700, 0
        %v1739 = vsel %vm566, %v1701, 0
        %v1742 = vsel %vm566, %v1702, 0
        %v1745 = vsel %vm566, %v1703, 0
        %v1748 = vsel %vm566, %v1704, 0
        %v1751 = vsel %vm566, %v1705, 0
        %v1754 = vsel %vm566, %v1706, 0
        %v1757 = vsel %vm566, %v1707, 0
        %v1760 = vsel %vm566, %v1708, 0
        %v1763 = vsel %vm566, %v1709, 0
        %v1766 = vsel %vm566, %v1710, 0
        %v1769 = vsel %vm566, %v1711, 0
        %v1772 = vsel %vm566, %v1712, 0
        %v1775 = vsel %vm566, %v1713, 0
        %v1778 = vsel %vm566, %v1714, 0
        %v1781 = vsel %vm566, %v1715, 0
        %v1784 = vsel %vm566, %v1716, 0
        %v1787 = vsel %vm566, %v1717, 0
        %v1790 = vsel %vm566, %v1718, 0
        %v1793 = vsel %vm566, %v1719, 0
        %v1796 = vsel %vm566, %v1720, 0
        %v1798 = vsel %vm633, %v1728, 0
        %1800 = vmatpush.msra.mxu0 0.0
        %1801 = vmatpush.msra.mxu0 0.0
        %1802 = vmatpush.msra.mxu0 0.0
        %1803 = vmatpush.msra.mxu0 0.0
        %1804 = vmatpush.msra.mxu0 0.0
        %1805 = vmatpush.msra.mxu0 0.0
        %1806 = vmatpush.msra.mxu0 0.0
        %1807 = vmatpush.msra.mxu0 0.0
        %1808 = vmatpush.msra.mxu0 0.0
        %1809 = vmatpush.msra.mxu0 0.0
        %1810 = vmatpush.msra.mxu0 0.0
        %1811 = vmatpush.msra.mxu0 0.0
        %1812 = vmatpush.msra.mxu0 %v1798
        %1813 = vmatpush.msra.mxu0 %v1726
        %1814 = vmatpush.msra.mxu0 %v1724
        %1815 = vmatpush.msra.mxu0 %v1722
        %1816 = vmatmul.f32.gmra.mxu0 %v1733
        %v1817 = vpop.f32.mrf.mxu0
        %v1818 = vadd.f32 0.0, %v1817
        %1819 = vmatmul.f32.gmra.mxu0 %v1736
        %v1820 = vpop.f32.mrf.mxu0
        %v1821 = vadd.f32 0.0, %v1820
        %1822 = vmatmul.f32.gmra.mxu0 %v1739
        %v1823 = vpop.f32.mrf.mxu0
        %v1824 = vadd.f32 0.0, %v1823
        %1825 = vmatmul.f32.gmra.mxu0 %v1742
        %v1826 = vpop.f32.mrf.mxu0
        %v1827 = vadd.f32 0.0, %v1826
        %1828 = vmatmul.f32.gmra.mxu0 %v1745
        %v1829 = vpop.f32.mrf.mxu0
        %v1830 = vadd.f32 0.0, %v1829
        %1831 = vmatmul.f32.gmra.mxu0 %v1748
        %v1832 = vpop.f32.mrf.mxu0
        %v1833 = vadd.f32 0.0, %v1832
        %1834 = vmatmul.f32.gmra.mxu0 %v1751
        %v1835 = vpop.f32.mrf.mxu0
        %v1836 = vadd.f32 0.0, %v1835
        %1837 = vmatmul.f32.gmra.mxu0 %v1754
        %v1838 = vpop.f32.mrf.mxu0
        %v1839 = vadd.f32 0.0, %v1838
        %1840 = vmatmul.f32.gmra.mxu0 %v1757
        %v1841 = vpop.f32.mrf.mxu0
        %v1842 = vadd.f32 0.0, %v1841
        %1843 = vmatmul.f32.gmra.mxu0 %v1760
        %v1844 = vpop.f32.mrf.mxu0
        %v1845 = vadd.f32 0.0, %v1844
        %1846 = vmatmul.f32.gmra.mxu0 %v1763
        %v1847 = vpop.f32.mrf.mxu0
        %v1848 = vadd.f32 0.0, %v1847
        %1849 = vmatmul.f32.gmra.mxu0 %v1766
        %v1850 = vpop.f32.mrf.mxu0
        %v1851 = vadd.f32 0.0, %v1850
        %1852 = vmatmul.f32.gmra.mxu0 %v1769
        %v1853 = vpop.f32.mrf.mxu0
        %v1854 = vadd.f32 0.0, %v1853
        %1855 = vmatmul.f32.gmra.mxu0 %v1772
        %v1856 = vpop.f32.mrf.mxu0
        %v1857 = vadd.f32 0.0, %v1856
        %1858 = vmatmul.f32.gmra.mxu0 %v1775
        %v1859 = vpop.f32.mrf.mxu0
        %v1860 = vadd.f32 0.0, %v1859
        %1861 = vmatmul.f32.gmra.mxu0 %v1778
        %v1862 = vpop.f32.mrf.mxu0
        %v1863 = vadd.f32 0.0, %v1862
        %1864 = vmatmul.f32.gmra.mxu0 %v1781
        %v1865 = vpop.f32.mrf.mxu0
        %v1866 = vadd.f32 0.0, %v1865
        %1867 = vmatmul.f32.gmra.mxu0 %v1784
        %v1868 = vpop.f32.mrf.mxu0
        %v1869 = vadd.f32 0.0, %v1868
        %1870 = vmatmul.f32.gmra.mxu0 %v1787
        %v1871 = vpop.f32.mrf.mxu0
        %v1872 = vadd.f32 0.0, %v1871
        %1873 = vmatmul.f32.gmra.mxu0 %v1790
        %v1874 = vpop.f32.mrf.mxu0
        %v1875 = vadd.f32 0.0, %v1874
        %1876 = vmatmul.f32.gmra.mxu0 %v1793
        %v1877 = vpop.f32.mrf.mxu0
        %v1878 = vadd.f32 0.0, %v1877
        %1879 = vmatmul.f32.gmra.mxu0 %v1796
        %v1880 = vpop.f32.mrf.mxu0
        %v1881 = vadd.f32 0.0, %v1880
        %1882 = vdwg.mxu0
        %v1883 = vadd.f32 %v1676, %v1818
        %v1884 = vadd.f32 %v1677, %v1821
        %v1885 = vadd.f32 %v1678, %v1824
        %v1886 = vadd.f32 %v1679, %v1827
        %v1887 = vadd.f32 %v1680, %v1830
        %v1888 = vadd.f32 %v1681, %v1833
        %v1889 = vadd.f32 %v1682, %v1836
        %v1890 = vadd.f32 %v1683, %v1839
        %v1891 = vadd.f32 %v1684, %v1842
        %v1892 = vadd.f32 %v1685, %v1845
        %v1893 = vadd.f32 %v1686, %v1848
        %v1894 = vadd.f32 %v1687, %v1851
        %v1895 = vadd.f32 %v1688, %v1854
        %v1896 = vadd.f32 %v1689, %v1857
        %v1897 = vadd.f32 %v1690, %v1860
        %v1898 = vadd.f32 %v1691, %v1863
        %v1899 = vadd.f32 %v1692, %v1866
        %v1900 = vadd.f32 %v1693, %v1869
        %v1901 = vadd.f32 %v1694, %v1872
        %v1902 = vadd.f32 %v1695, %v1875
        %v1903 = vadd.f32 %v1696, %v1878
        %v1904 = vadd.f32 %v1697, %v1881
        %v1905 = vld [vmem:[%s3] sm:$0xff]
        %v1906 = vld [vmem:[%s3 + $0x8] sm:$0xff]
        %v1907 = vld [vmem:[%s3 + $0x10] sm:$0xff]
        %v1908 = vld [vmem:[%s3 + $0x18] sm:$0xff]
        %v1909 = vld [vmem:[%s3 + $0x20] sm:$0xff]
        %v1910 = vld [vmem:[%s3 + $0x28] sm:$0xff]
        %v1911 = vld [vmem:[%s3 + $0x30] sm:$0xff]
        %v1912 = vld [vmem:[%s3 + $0x38] sm:$0xff]
        %v1913 = vld [vmem:[%s3 + $0x40] sm:$0xff]
        %v1914 = vld [vmem:[%s3 + $0x48] sm:$0xff]
        %v1915 = vld [vmem:[%s3 + $0x50] sm:$0xff]
        %v1916 = vld [vmem:[%s3 + $0x58] sm:$0xff]
        %v1917 = vld [vmem:[%s3 + $0x60] sm:$0xff]
        %v1918 = vld [vmem:[%s3 + $0x68] sm:$0xff]
        %v1919 = vld [vmem:[%s3 + $0x70] sm:$0xff]
        %v1920 = vld [vmem:[%s3 + $0x78] sm:$0xff]
        %v1921 = vld [vmem:[%s3 + $0x80] sm:$0xff]
        %v1922 = vld [vmem:[%s3 + $0x88] sm:$0xff]
        %v1923 = vld [vmem:[%s3 + $0x90] sm:$0xff]
        %v1924 = vld [vmem:[%s3 + $0x98] sm:$0xff]
        %v1925 = vld [vmem:[%s3 + $0xa0] sm:$0xff]
        %v1926 = vld [vmem:[%s3 + $0xa8] sm:$0xff]
        %1928 = vset.pattern.permute.xlu0 0
        %1929 = vperm.xlu0 %1928, %v1905
        %v1930 = vpop.permute.xlu0 %1929
        %1933 = vset.pattern.permute.xlu0 0
        %1934 = vperm.xlu0 %1933, %v1906
        %v1935 = vpop.permute.xlu0 %1934
        %1938 = vset.pattern.permute.xlu0 0
        %1939 = vperm.xlu0 %1938, %v1907
        %v1940 = vpop.permute.xlu0 %1939
        %1943 = vset.pattern.permute.xlu0 0
        %1944 = vperm.xlu0 %1943, %v1908
        %v1945 = vpop.permute.xlu0 %1944
        %1948 = vset.pattern.permute.xlu0 0
        %1949 = vperm.xlu0 %1948, %v1909
        %v1950 = vpop.permute.xlu0 %1949
        %1953 = vset.pattern.permute.xlu0 0
        %1954 = vperm.xlu0 %1953, %v1910
        %v1955 = vpop.permute.xlu0 %1954
        %1958 = vset.pattern.permute.xlu0 0
        %1959 = vperm.xlu0 %1958, %v1911
        %v1960 = vpop.permute.xlu0 %1959
        %1963 = vset.pattern.permute.xlu0 0
        %1964 = vperm.xlu0 %1963, %v1912
        %v1965 = vpop.permute.xlu0 %1964
        %1968 = vset.pattern.permute.xlu0 0
        %1969 = vperm.xlu0 %1968, %v1913
        %v1970 = vpop.permute.xlu0 %1969
        %1973 = vset.pattern.permute.xlu0 0
        %1974 = vperm.xlu0 %1973, %v1914
        %v1975 = vpop.permute.xlu0 %1974
        %1978 = vset.pattern.permute.xlu0 0
        %1979 = vperm.xlu0 %1978, %v1915
        %v1980 = vpop.permute.xlu0 %1979
        %1983 = vset.pattern.permute.xlu0 0
        %1984 = vperm.xlu0 %1983, %v1916
        %v1985 = vpop.permute.xlu0 %1984
        %1988 = vset.pattern.permute.xlu0 0
        %1989 = vperm.xlu0 %1988, %v1917
        %v1990 = vpop.permute.xlu0 %1989
        %1993 = vset.pattern.permute.xlu0 0
        %1994 = vperm.xlu0 %1993, %v1918
        %v1995 = vpop.permute.xlu0 %1994
        %1998 = vset.pattern.permute.xlu0 0
        %1999 = vperm.xlu0 %1998, %v1919
        %v2000 = vpop.permute.xlu0 %1999
        %2003 = vset.pattern.permute.xlu0 0
        %2004 = vperm.xlu0 %2003, %v1920
        %v2005 = vpop.permute.xlu0 %2004
        %2008 = vset.pattern.permute.xlu0 0
        %2009 = vperm.xlu0 %2008, %v1921
        %v2010 = vpop.permute.xlu0 %2009
        %2013 = vset.pattern.permute.xlu0 0
        %2014 = vperm.xlu0 %2013, %v1922
        %v2015 = vpop.permute.xlu0 %2014
        %2018 = vset.pattern.permute.xlu0 0
        %2019 = vperm.xlu0 %2018, %v1923
        %v2020 = vpop.permute.xlu0 %2019
        %2023 = vset.pattern.permute.xlu0 0
        %2024 = vperm.xlu0 %2023, %v1924
        %v2025 = vpop.permute.xlu0 %2024
        %2028 = vset.pattern.permute.xlu0 0
        %2029 = vperm.xlu0 %2028, %v1925
        %v2030 = vpop.permute.xlu0 %2029
        %2033 = vset.pattern.permute.xlu0 0
        %2034 = vperm.xlu0 %2033, %v1926
        %v2035 = vpop.permute.xlu0 %2034
        %v2037 = vadd.f32 %v1883, %v1930
        %v2038 = vadd.f32 %v1884, %v1935
        %v2039 = vadd.f32 %v1885, %v1940
        %v2040 = vadd.f32 %v1886, %v1945
        %v2041 = vadd.f32 %v1887, %v1950
        %v2042 = vadd.f32 %v1888, %v1955
        %v2043 = vadd.f32 %v1889, %v1960
        %v2044 = vadd.f32 %v1890, %v1965
        %v2045 = vadd.f32 %v1891, %v1970
        %v2046 = vadd.f32 %v1892, %v1975
        %v2047 = vadd.f32 %v1893, %v1980
        %v2048 = vadd.f32 %v1894, %v1985
        %v2049 = vadd.f32 %v1895, %v1990
        %v2050 = vadd.f32 %v1896, %v1995
        %v2051 = vadd.f32 %v1897, %v2000
        %v2052 = vadd.f32 %v1898, %v2005
        %v2053 = vadd.f32 %v1899, %v2010
        %v2054 = vadd.f32 %v1900, %v2015
        %v2055 = vadd.f32 %v1901, %v2020
        %v2056 = vadd.f32 %v1902, %v2025
        %v2057 = vadd.f32 %v1903, %v2030
        %v2058 = vadd.f32 %v1904, %v2035
        %v2059 = vld [vmem:[%s4] sm:$0xff]
        %v2060 = vld [vmem:[%s4 + $0x8] sm:$0xff]
        %v2061 = vld [vmem:[%s4 + $0x10] sm:$0x3f]
        %vm2062 = vcmask 179200
        %v2064 = vsel %vm2062, %v2037, 0
        %v2067 = vsel %vm2062, %v2038, 0
        %v2070 = vsel %vm2062, %v2039, 0
        %v2073 = vsel %vm2062, %v2040, 0
        %v2076 = vsel %vm2062, %v2041, 0
        %v2079 = vsel %vm2062, %v2042, 0
        %v2082 = vsel %vm2062, %v2043, 0
        %v2085 = vsel %vm2062, %v2044, 0
        %v2088 = vsel %vm2062, %v2045, 0
        %v2091 = vsel %vm2062, %v2046, 0
        %v2094 = vsel %vm2062, %v2047, 0
        %v2097 = vsel %vm2062, %v2048, 0
        %v2100 = vsel %vm2062, %v2049, 0
        %v2103 = vsel %vm2062, %v2050, 0
        %v2106 = vsel %vm2062, %v2051, 0
        %v2109 = vsel %vm2062, %v2052, 0
        %v2112 = vsel %vm2062, %v2053, 0
        %v2115 = vsel %vm2062, %v2054, 0
        %v2118 = vsel %vm2062, %v2055, 0
        %v2121 = vsel %vm2062, %v2056, 0
        %v2124 = vsel %vm2062, %v2057, 0
        %v2127 = vsel %vm2062, %v2058, 0
        %vm2129 = vcmask 1045504
        %v2131 = vsel %vm2129, %v2061, 0
        %2133 = vmatpush.msra.mxu0 0.0
        %2134 = vmatpush.msra.mxu0 0.0
        %2135 = vmatpush.msra.mxu0 0.0
        %2136 = vmatpush.msra.mxu0 0.0
        %2137 = vmatpush.msra.mxu0 0.0
        %2138 = vmatpush.msra.mxu0 0.0
        %2139 = vmatpush.msra.mxu0 0.0
        %2140 = vmatpush.msra.mxu0 0.0
        %2141 = vmatpush.msra.mxu0 0.0
        %2142 = vmatpush.msra.mxu0 0.0
        %2143 = vmatpush.msra.mxu0 0.0
        %2144 = vmatpush.msra.mxu0 0.0
        %2145 = vmatpush.msra.mxu0 0.0
        %2146 = vmatpush.msra.mxu0 %v2131
        %2147 = vmatpush.msra.mxu0 %v2060
        %2148 = vmatpush.msra.mxu0 %v2059
        %2149 = vmatmul.f32.gmra.mxu0 %v2064
        %v2150 = vpop.f32.mrf.mxu0
        %v2151 = vadd.f32 0.0, %v2150
        %2152 = vmatmul.f32.gmra.mxu0 %v2067
        %v2153 = vpop.f32.mrf.mxu0
        %v2154 = vadd.f32 0.0, %v2153
        %2155 = vmatmul.f32.gmra.mxu0 %v2070
        %v2156 = vpop.f32.mrf.mxu0
        %v2157 = vadd.f32 0.0, %v2156
        %2158 = vmatmul.f32.gmra.mxu0 %v2073
        %v2159 = vpop.f32.mrf.mxu0
        %v2160 = vadd.f32 0.0, %v2159
        %2161 = vmatmul.f32.gmra.mxu0 %v2076
        %v2162 = vpop.f32.mrf.mxu0
        %v2163 = vadd.f32 0.0, %v2162
        %2164 = vmatmul.f32.gmra.mxu0 %v2079
        %v2165 = vpop.f32.mrf.mxu0
        %v2166 = vadd.f32 0.0, %v2165
        %2167 = vmatmul.f32.gmra.mxu0 %v2082
        %v2168 = vpop.f32.mrf.mxu0
        %v2169 = vadd.f32 0.0, %v2168
        %2170 = vmatmul.f32.gmra.mxu0 %v2085
        %v2171 = vpop.f32.mrf.mxu0
        %v2172 = vadd.f32 0.0, %v2171
        %2173 = vmatmul.f32.gmra.mxu0 %v2088
        %v2174 = vpop.f32.mrf.mxu0
        %v2175 = vadd.f32 0.0, %v2174
        %2176 = vmatmul.f32.gmra.mxu0 %v2091
        %v2177 = vpop.f32.mrf.mxu0
        %v2178 = vadd.f32 0.0, %v2177
        %2179 = vmatmul.f32.gmra.mxu0 %v2094
        %v2180 = vpop.f32.mrf.mxu0
        %v2181 = vadd.f32 0.0, %v2180
        %2182 = vmatmul.f32.gmra.mxu0 %v2097
        %v2183 = vpop.f32.mrf.mxu0
        %v2184 = vadd.f32 0.0, %v2183
        %2185 = vmatmul.f32.gmra.mxu0 %v2100
        %v2186 = vpop.f32.mrf.mxu0
        %v2187 = vadd.f32 0.0, %v2186
        %2188 = vmatmul.f32.gmra.mxu0 %v2103
        %v2189 = vpop.f32.mrf.mxu0
        %v2190 = vadd.f32 0.0, %v2189
        %2191 = vmatmul.f32.gmra.mxu0 %v2106
        %v2192 = vpop.f32.mrf.mxu0
        %v2193 = vadd.f32 0.0, %v2192
        %2194 = vmatmul.f32.gmra.mxu0 %v2109
        %v2195 = vpop.f32.mrf.mxu0
        %v2196 = vadd.f32 0.0, %v2195
        %2197 = vmatmul.f32.gmra.mxu0 %v2112
        %v2198 = vpop.f32.mrf.mxu0
        %v2199 = vadd.f32 0.0, %v2198
        %2200 = vmatmul.f32.gmra.mxu0 %v2115
        %v2201 = vpop.f32.mrf.mxu0
        %v2202 = vadd.f32 0.0, %v2201
        %2203 = vmatmul.f32.gmra.mxu0 %v2118
        %v2204 = vpop.f32.mrf.mxu0
        %v2205 = vadd.f32 0.0, %v2204
        %2206 = vmatmul.f32.gmra.mxu0 %v2121
        %v2207 = vpop.f32.mrf.mxu0
        %v2208 = vadd.f32 0.0, %v2207
        %2209 = vmatmul.f32.gmra.mxu0 %v2124
        %v2210 = vpop.f32.mrf.mxu0
        %v2211 = vadd.f32 0.0, %v2210
        %2212 = vmatmul.f32.gmra.mxu0 %v2127
        %v2213 = vpop.f32.mrf.mxu0
        %v2214 = vadd.f32 0.0, %v2213
        %2215 = vdwg.mxu0
        %s2216 = scalar_lea.vmem %s4, 24
        %v2217 = vld [vmem:[%s2216] sm:$0xff]
        %v2218 = vld [vmem:[%s2216 + $0x8] sm:$0xff]
        %v2219 = vld [vmem:[%s2216 + $0x10] sm:$0x3f]
        %v2221 = vsel %vm2129, %v2219, 0
        %2223 = vmatpush.msra.mxu0 0.0
        %2224 = vmatpush.msra.mxu0 0.0
        %2225 = vmatpush.msra.mxu0 0.0
        %2226 = vmatpush.msra.mxu0 0.0
        %2227 = vmatpush.msra.mxu0 0.0
        %2228 = vmatpush.msra.mxu0 0.0
        %2229 = vmatpush.msra.mxu0 0.0
        %2230 = vmatpush.msra.mxu0 0.0
        %2231 = vmatpush.msra.mxu0 0.0
        %2232 = vmatpush.msra.mxu0 0.0
        %2233 = vmatpush.msra.mxu0 0.0
        %2234 = vmatpush.msra.mxu0 0.0
        %2235 = vmatpush.msra.mxu0 0.0
        %2236 = vmatpush.msra.mxu0 %v2221
        %2237 = vmatpush.msra.mxu0 %v2218
        %2238 = vmatpush.msra.mxu0 %v2217
        %2239 = vmatmul.f32.gmra.mxu0 %v2064
        %v2240 = vpop.f32.mrf.mxu0
        %v2241 = vadd.f32 0.0, %v2240
        %2242 = vmatmul.f32.gmra.mxu0 %v2067
        %v2243 = vpop.f32.mrf.mxu0
        %v2244 = vadd.f32 0.0, %v2243
        %2245 = vmatmul.f32.gmra.mxu0 %v2070
        %v2246 = vpop.f32.mrf.mxu0
        %v2247 = vadd.f32 0.0, %v2246
        %2248 = vmatmul.f32.gmra.mxu0 %v2073
        %v2249 = vpop.f32.mrf.mxu0
        %v2250 = vadd.f32 0.0, %v2249
        %2251 = vmatmul.f32.gmra.mxu0 %v2076
        %v2252 = vpop.f32.mrf.mxu0
        %v2253 = vadd.f32 0.0, %v2252
        %2254 = vmatmul.f32.gmra.mxu0 %v2079
        %v2255 = vpop.f32.mrf.mxu0
        %v2256 = vadd.f32 0.0, %v2255
        %2257 = vmatmul.f32.gmra.mxu0 %v2082
        %v2258 = vpop.f32.mrf.mxu0
        %v2259 = vadd.f32 0.0, %v2258
        %2260 = vmatmul.f32.gmra.mxu0 %v2085
        %v2261 = vpop.f32.mrf.mxu0
        %v2262 = vadd.f32 0.0, %v2261
        %2263 = vmatmul.f32.gmra.mxu0 %v2088
        %v2264 = vpop.f32.mrf.mxu0
        %v2265 = vadd.f32 0.0, %v2264
        %2266 = vmatmul.f32.gmra.mxu0 %v2091
        %v2267 = vpop.f32.mrf.mxu0
        %v2268 = vadd.f32 0.0, %v2267
        %2269 = vmatmul.f32.gmra.mxu0 %v2094
        %v2270 = vpop.f32.mrf.mxu0
        %v2271 = vadd.f32 0.0, %v2270
        %2272 = vmatmul.f32.gmra.mxu0 %v2097
        %v2273 = vpop.f32.mrf.mxu0
        %v2274 = vadd.f32 0.0, %v2273
        %2275 = vmatmul.f32.gmra.mxu0 %v2100
        %v2276 = vpop.f32.mrf.mxu0
        %v2277 = vadd.f32 0.0, %v2276
        %2278 = vmatmul.f32.gmra.mxu0 %v2103
        %v2279 = vpop.f32.mrf.mxu0
        %v2280 = vadd.f32 0.0, %v2279
        %2281 = vmatmul.f32.gmra.mxu0 %v2106
        %v2282 = vpop.f32.mrf.mxu0
        %v2283 = vadd.f32 0.0, %v2282
        %2284 = vmatmul.f32.gmra.mxu0 %v2109
        %v2285 = vpop.f32.mrf.mxu0
        %v2286 = vadd.f32 0.0, %v2285
        %2287 = vmatmul.f32.gmra.mxu0 %v2112
        %v2288 = vpop.f32.mrf.mxu0
        %v2289 = vadd.f32 0.0, %v2288
        %2290 = vmatmul.f32.gmra.mxu0 %v2115
        %v2291 = vpop.f32.mrf.mxu0
        %v2292 = vadd.f32 0.0, %v2291
        %2293 = vmatmul.f32.gmra.mxu0 %v2118
        %v2294 = vpop.f32.mrf.mxu0
        %v2295 = vadd.f32 0.0, %v2294
        %2296 = vmatmul.f32.gmra.mxu0 %v2121
        %v2297 = vpop.f32.mrf.mxu0
        %v2298 = vadd.f32 0.0, %v2297
        %2299 = vmatmul.f32.gmra.mxu0 %v2124
        %v2300 = vpop.f32.mrf.mxu0
        %v2301 = vadd.f32 0.0, %v2300
        %2302 = vmatmul.f32.gmra.mxu0 %v2127
        %v2303 = vpop.f32.mrf.mxu0
        %v2304 = vadd.f32 0.0, %v2303
        %2305 = vdwg.mxu0
        %v2306 = vld [vmem:[%s5] sm:$0xff]
        %v2307 = vld [vmem:[%s5 + $0x8] sm:$0xff]
        %v2308 = vld [vmem:[%s5 + $0x10] sm:$0xff]
        %v2309 = vld [vmem:[%s5 + $0x18] sm:$0xff]
        %v2310 = vld [vmem:[%s5 + $0x20] sm:$0xff]
        %v2311 = vld [vmem:[%s5 + $0x28] sm:$0xff]
        %v2312 = vld [vmem:[%s5 + $0x30] sm:$0xff]
        %v2313 = vld [vmem:[%s5 + $0x38] sm:$0xff]
        %v2314 = vld [vmem:[%s5 + $0x40] sm:$0xff]
        %v2315 = vld [vmem:[%s5 + $0x48] sm:$0xff]
        %v2316 = vld [vmem:[%s5 + $0x50] sm:$0xff]
        %v2317 = vld [vmem:[%s5 + $0x58] sm:$0xff]
        %v2318 = vld [vmem:[%s5 + $0x60] sm:$0xff]
        %v2319 = vld [vmem:[%s5 + $0x68] sm:$0xff]
        %v2320 = vld [vmem:[%s5 + $0x70] sm:$0xff]
        %v2321 = vld [vmem:[%s5 + $0x78] sm:$0xff]
        %v2322 = vld [vmem:[%s5 + $0x80] sm:$0xff]
        %v2323 = vld [vmem:[%s5 + $0x88] sm:$0xff]
        %v2324 = vld [vmem:[%s5 + $0x90] sm:$0xff]
        %v2325 = vld [vmem:[%s5 + $0x98] sm:$0xff]
        %v2326 = vld [vmem:[%s5 + $0xa0] sm:$0xff]
        %v2327 = vld [vmem:[%s5 + $0xa8] sm:$0xff]
        %vm2328 = vcmask 392192
        %v2330 = vsel %vm2328, %v2307, 0
        %v2333 = vsel %vm2328, %v2309, 0
        %v2336 = vsel %vm2328, %v2311, 0
        %v2339 = vsel %vm2328, %v2313, 0
        %v2342 = vsel %vm2328, %v2315, 0
        %v2345 = vsel %vm2328, %v2317, 0
        %v2348 = vsel %vm2328, %v2319, 0
        %v2351 = vsel %vm2328, %v2321, 0
        %v2354 = vsel %vm2328, %v2323, 0
        %v2357 = vsel %vm2328, %v2325, 0
        %v2360 = vsel %vm2328, %v2327, 0
        %2362 = vmatpush.msra.mxu0 %v2196
        %2363 = vmatpush.msra.mxu0 %v2193
        %2364 = vmatpush.msra.mxu0 %v2190
        %2365 = vmatpush.msra.mxu0 %v2187
        %2366 = vmatpush.msra.mxu0 %v2184
        %2367 = vmatpush.msra.mxu0 %v2181
        %2368 = vmatpush.msra.mxu0 %v2178
        %2369 = vmatpush.msra.mxu0 %v2175
        %2370 = vmatpush.msra.mxu0 %v2172
        %2371 = vmatpush.msra.mxu0 %v2169
        %2372 = vmatpush.msra.mxu0 %v2166
        %2373 = vmatpush.msra.mxu0 %v2163
        %2374 = vmatpush.msra.mxu0 %v2160
        %2375 = vmatpush.msra.mxu0 %v2157
        %2376 = vmatpush.msra.mxu0 %v2154
        %2377 = vmatpush.msra.mxu0 %v2151
        %2378 = vmatmul.f32.gmra.mxu0 %v2306
        %v2379 = vpop.f32.mrf.mxu0
        %v2380 = vadd.f32 0.0, %v2379
        %2381 = vmatmul.f32.gmra.mxu0 %v2308
        %v2382 = vpop.f32.mrf.mxu0
        %v2383 = vadd.f32 0.0, %v2382
        %2384 = vmatmul.f32.gmra.mxu0 %v2310
        %v2385 = vpop.f32.mrf.mxu0
        %v2386 = vadd.f32 0.0, %v2385
        %2387 = vmatmul.f32.gmra.mxu0 %v2312
        %v2388 = vpop.f32.mrf.mxu0
        %v2389 = vadd.f32 0.0, %v2388
        %2390 = vmatmul.f32.gmra.mxu0 %v2314
        %v2391 = vpop.f32.mrf.mxu0
        %v2392 = vadd.f32 0.0, %v2391
        %2393 = vmatmul.f32.gmra.mxu0 %v2316
        %v2394 = vpop.f32.mrf.mxu0
        %v2395 = vadd.f32 0.0, %v2394
        %2396 = vmatmul.f32.gmra.mxu0 %v2318
        %v2397 = vpop.f32.mrf.mxu0
        %v2398 = vadd.f32 0.0, %v2397
        %2399 = vmatmul.f32.gmra.mxu0 %v2320
        %v2400 = vpop.f32.mrf.mxu0
        %v2401 = vadd.f32 0.0, %v2400
        %2402 = vmatmul.f32.gmra.mxu0 %v2322
        %v2403 = vpop.f32.mrf.mxu0
        %v2404 = vadd.f32 0.0, %v2403
        %2405 = vmatmul.f32.gmra.mxu0 %v2324
        %v2406 = vpop.f32.mrf.mxu0
        %v2407 = vadd.f32 0.0, %v2406
        %2408 = vmatmul.f32.gmra.mxu0 %v2326
        %v2409 = vpop.f32.mrf.mxu0
        %v2410 = vadd.f32 0.0, %v2409
        %2411 = vdwg.mxu0
        %2412 = vmatpush.msra.mxu0 0.0
        %2413 = vmatpush.msra.mxu0 0.0
        %2414 = vmatpush.msra.mxu0 0.0
        %2415 = vmatpush.msra.mxu0 0.0
        %2416 = vmatpush.msra.mxu0 0.0
        %2417 = vmatpush.msra.mxu0 0.0
        %2418 = vmatpush.msra.mxu0 0.0
        %2419 = vmatpush.msra.mxu0 0.0
        %2420 = vmatpush.msra.mxu0 0.0
        %2421 = vmatpush.msra.mxu0 0.0
        %2422 = vmatpush.msra.mxu0 %v2214
        %2423 = vmatpush.msra.mxu0 %v2211
        %2424 = vmatpush.msra.mxu0 %v2208
        %2425 = vmatpush.msra.mxu0 %v2205
        %2426 = vmatpush.msra.mxu0 %v2202
        %2427 = vmatpush.msra.mxu0 %v2199
        %2428 = vmatmul.f32.gmra.mxu0 %v2330
        %v2429 = vpop.f32.mrf.mxu0
        %v2430 = vadd.f32 %v2380, %v2429
        %2431 = vmatmul.f32.gmra.mxu0 %v2333
        %v2432 = vpop.f32.mrf.mxu0
        %v2433 = vadd.f32 %v2383, %v2432
        %2434 = vmatmul.f32.gmra.mxu0 %v2336
        %v2435 = vpop.f32.mrf.mxu0
        %v2436 = vadd.f32 %v2386, %v2435
        %2437 = vmatmul.f32.gmra.mxu0 %v2339
        %v2438 = vpop.f32.mrf.mxu0
        %v2439 = vadd.f32 %v2389, %v2438
        %2440 = vmatmul.f32.gmra.mxu0 %v2342
        %v2441 = vpop.f32.mrf.mxu0
        %v2442 = vadd.f32 %v2392, %v2441
        %2443 = vmatmul.f32.gmra.mxu0 %v2345
        %v2444 = vpop.f32.mrf.mxu0
        %v2445 = vadd.f32 %v2395, %v2444
        %2446 = vmatmul.f32.gmra.mxu0 %v2348
        %v2447 = vpop.f32.mrf.mxu0
        %v2448 = vadd.f32 %v2398, %v2447
        %2449 = vmatmul.f32.gmra.mxu0 %v2351
        %v2450 = vpop.f32.mrf.mxu0
        %v2451 = vadd.f32 %v2401, %v2450
        %2452 = vmatmul.f32.gmra.mxu0 %v2354
        %v2453 = vpop.f32.mrf.mxu0
        %v2454 = vadd.f32 %v2404, %v2453
        %2455 = vmatmul.f32.gmra.mxu0 %v2357
        %v2456 = vpop.f32.mrf.mxu0
        %v2457 = vadd.f32 %v2407, %v2456
        %2458 = vmatmul.f32.gmra.mxu0 %v2360
        %v2459 = vpop.f32.mrf.mxu0
        %v2460 = vadd.f32 %v2410, %v2459
        %2461 = vdwg.mxu0
        %2462 = vmatpush.msra.mxu0 %v2286
        %2463 = vmatpush.msra.mxu0 %v2283
        %2464 = vmatpush.msra.mxu0 %v2280
        %2465 = vmatpush.msra.mxu0 %v2277
        %2466 = vmatpush.msra.mxu0 %v2274
        %2467 = vmatpush.msra.mxu0 %v2271
        %2468 = vmatpush.msra.mxu0 %v2268
        %2469 = vmatpush.msra.mxu0 %v2265
        %2470 = vmatpush.msra.mxu0 %v2262
        %2471 = vmatpush.msra.mxu0 %v2259
        %2472 = vmatpush.msra.mxu0 %v2256
        %2473 = vmatpush.msra.mxu0 %v2253
        %2474 = vmatpush.msra.mxu0 %v2250
        %2475 = vmatpush.msra.mxu0 %v2247
        %2476 = vmatpush.msra.mxu0 %v2244
        %2477 = vmatpush.msra.mxu0 %v2241
        %2478 = vmatmul.f32.gmra.mxu0 %v2306
        %v2479 = vpop.f32.mrf.mxu0
        %v2480 = vadd.f32 0.0, %v2479
        %2481 = vmatmul.f32.gmra.mxu0 %v2308
        %v2482 = vpop.f32.mrf.mxu0
        %v2483 = vadd.f32 0.0, %v2482
        %2484 = vmatmul.f32.gmra.mxu0 %v2310
        %v2485 = vpop.f32.mrf.mxu0
        %v2486 = vadd.f32 0.0, %v2485
        %2487 = vmatmul.f32.gmra.mxu0 %v2312
        %v2488 = vpop.f32.mrf.mxu0
        %v2489 = vadd.f32 0.0, %v2488
        %2490 = vmatmul.f32.gmra.mxu0 %v2314
        %v2491 = vpop.f32.mrf.mxu0
        %v2492 = vadd.f32 0.0, %v2491
        %2493 = vmatmul.f32.gmra.mxu0 %v2316
        %v2494 = vpop.f32.mrf.mxu0
        %v2495 = vadd.f32 0.0, %v2494
        %2496 = vmatmul.f32.gmra.mxu0 %v2318
        %v2497 = vpop.f32.mrf.mxu0
        %v2498 = vadd.f32 0.0, %v2497
        %2499 = vmatmul.f32.gmra.mxu0 %v2320
        %v2500 = vpop.f32.mrf.mxu0
        %v2501 = vadd.f32 0.0, %v2500
        %2502 = vmatmul.f32.gmra.mxu0 %v2322
        %v2503 = vpop.f32.mrf.mxu0
        %v2504 = vadd.f32 0.0, %v2503
        %2505 = vmatmul.f32.gmra.mxu0 %v2324
        %v2506 = vpop.f32.mrf.mxu0
        %v2507 = vadd.f32 0.0, %v2506
        %2508 = vmatmul.f32.gmra.mxu0 %v2326
        %v2509 = vpop.f32.mrf.mxu0
        %v2510 = vadd.f32 0.0, %v2509
        %2511 = vdwg.mxu0
        %2512 = vmatpush.msra.mxu0 0.0
        %2513 = vmatpush.msra.mxu0 0.0
        %2514 = vmatpush.msra.mxu0 0.0
        %2515 = vmatpush.msra.mxu0 0.0
        %2516 = vmatpush.msra.mxu0 0.0
        %2517 = vmatpush.msra.mxu0 0.0
        %2518 = vmatpush.msra.mxu0 0.0
        %2519 = vmatpush.msra.mxu0 0.0
        %2520 = vmatpush.msra.mxu0 0.0
        %2521 = vmatpush.msra.mxu0 0.0
        %2522 = vmatpush.msra.mxu0 %v2304
        %2523 = vmatpush.msra.mxu0 %v2301
        %2524 = vmatpush.msra.mxu0 %v2298
        %2525 = vmatpush.msra.mxu0 %v2295
        %2526 = vmatpush.msra.mxu0 %v2292
        %2527 = vmatpush.msra.mxu0 %v2289
        %2528 = vmatmul.f32.gmra.mxu0 %v2330
        %v2529 = vpop.f32.mrf.mxu0
        %v2530 = vadd.f32 %v2480, %v2529
        %2531 = vmatmul.f32.gmra.mxu0 %v2333
        %v2532 = vpop.f32.mrf.mxu0
        %v2533 = vadd.f32 %v2483, %v2532
        %2534 = vmatmul.f32.gmra.mxu0 %v2336
        %v2535 = vpop.f32.mrf.mxu0
        %v2536 = vadd.f32 %v2486, %v2535
        %2537 = vmatmul.f32.gmra.mxu0 %v2339
        %v2538 = vpop.f32.mrf.mxu0
        %v2539 = vadd.f32 %v2489, %v2538
        %2540 = vmatmul.f32.gmra.mxu0 %v2342
        %v2541 = vpop.f32.mrf.mxu0
        %v2542 = vadd.f32 %v2492, %v2541
        %2543 = vmatmul.f32.gmra.mxu0 %v2345
        %v2544 = vpop.f32.mrf.mxu0
        %v2545 = vadd.f32 %v2495, %v2544
        %2546 = vmatmul.f32.gmra.mxu0 %v2348
        %v2547 = vpop.f32.mrf.mxu0
        %v2548 = vadd.f32 %v2498, %v2547
        %2549 = vmatmul.f32.gmra.mxu0 %v2351
        %v2550 = vpop.f32.mrf.mxu0
        %v2551 = vadd.f32 %v2501, %v2550
        %2552 = vmatmul.f32.gmra.mxu0 %v2354
        %v2553 = vpop.f32.mrf.mxu0
        %v2554 = vadd.f32 %v2504, %v2553
        %2555 = vmatmul.f32.gmra.mxu0 %v2357
        %v2556 = vpop.f32.mrf.mxu0
        %v2557 = vadd.f32 %v2507, %v2556
        %2558 = vmatmul.f32.gmra.mxu0 %v2360
        %v2559 = vpop.f32.mrf.mxu0
        %v2560 = vadd.f32 %v2510, %v2559
        %2561 = vdwg.mxu0
        %v2562 = vmax.f32 %v2430, %v2530
        %v2563 = vmax.f32 %v2433, %v2533
        %v2564 = vmax.f32 %v2436, %v2536
        %v2565 = vmax.f32 %v2439, %v2539
        %v2566 = vmax.f32 %v2442, %v2542
        %v2567 = vmax.f32 %v2445, %v2545
        %v2568 = vmax.f32 %v2448, %v2548
        %v2569 = vmax.f32 %v2451, %v2551
        %v2570 = vmax.f32 %v2454, %v2554
        %v2571 = vmax.f32 %v2457, %v2557
        %v2572 = vmax.f32 %v2460, %v2560
        %s2573 = scalar_lea.vmem %s5, 176
        %v2574 = vld [vmem:[%s2573] sm:$0xff]
        %v2575 = vld [vmem:[%s2573 + $0x8] sm:$0xff]
        %v2576 = vld [vmem:[%s2573 + $0x10] sm:$0xff]
        %v2577 = vld [vmem:[%s2573 + $0x18] sm:$0xff]
        %v2578 = vld [vmem:[%s2573 + $0x20] sm:$0xff]
        %v2579 = vld [vmem:[%s2573 + $0x28] sm:$0xff]
        %v2580 = vld [vmem:[%s2573 + $0x30] sm:$0xff]
        %v2581 = vld [vmem:[%s2573 + $0x38] sm:$0xff]
        %v2582 = vld [vmem:[%s2573 + $0x40] sm:$0xff]
        %v2583 = vld [vmem:[%s2573 + $0x48] sm:$0xff]
        %v2584 = vld [vmem:[%s2573 + $0x50] sm:$0xff]
        %v2585 = vld [vmem:[%s2573 + $0x58] sm:$0xff]
        %v2586 = vld [vmem:[%s2573 + $0x60] sm:$0xff]
        %v2587 = vld [vmem:[%s2573 + $0x68] sm:$0xff]
        %v2588 = vld [vmem:[%s2573 + $0x70] sm:$0xff]
        %v2589 = vld [vmem:[%s2573 + $0x78] sm:$0xff]
        %v2590 = vld [vmem:[%s2573 + $0x80] sm:$0xff]
        %v2591 = vld [vmem:[%s2573 + $0x88] sm:$0xff]
        %v2592 = vld [vmem:[%s2573 + $0x90] sm:$0xff]
        %v2593 = vld [vmem:[%s2573 + $0x98] sm:$0xff]
        %v2594 = vld [vmem:[%s2573 + $0xa0] sm:$0xff]
        %v2595 = vld [vmem:[%s2573 + $0xa8] sm:$0xff]
        %v2597 = vsel %vm2328, %v2575, 0
        %v2600 = vsel %vm2328, %v2577, 0
        %v2603 = vsel %vm2328, %v2579, 0
        %v2606 = vsel %vm2328, %v2581, 0
        %v2609 = vsel %vm2328, %v2583, 0
        %v2612 = vsel %vm2328, %v2585, 0
        %v2615 = vsel %vm2328, %v2587, 0
        %v2618 = vsel %vm2328, %v2589, 0
        %v2621 = vsel %vm2328, %v2591, 0
        %v2624 = vsel %vm2328, %v2593, 0
        %v2627 = vsel %vm2328, %v2595, 0
        %2629 = vmatpush.msra.mxu0 %v2196
        %2630 = vmatpush.msra.mxu0 %v2193
        %2631 = vmatpush.msra.mxu0 %v2190
        %2632 = vmatpush.msra.mxu0 %v2187
        %2633 = vmatpush.msra.mxu0 %v2184
        %2634 = vmatpush.msra.mxu0 %v2181
        %2635 = vmatpush.msra.mxu0 %v2178
        %2636 = vmatpush.msra.mxu0 %v2175
        %2637 = vmatpush.msra.mxu0 %v2172
        %2638 = vmatpush.msra.mxu0 %v2169
        %2639 = vmatpush.msra.mxu0 %v2166
        %2640 = vmatpush.msra.mxu0 %v2163
        %2641 = vmatpush.msra.mxu0 %v2160
        %2642 = vmatpush.msra.mxu0 %v2157
        %2643 = vmatpush.msra.mxu0 %v2154
        %2644 = vmatpush.msra.mxu0 %v2151
        %2645 = vmatmul.f32.gmra.mxu0 %v2574
        %v2646 = vpop.f32.mrf.mxu0
        %v2647 = vadd.f32 0.0, %v2646
        %2648 = vmatmul.f32.gmra.mxu0 %v2576
        %v2649 = vpop.f32.mrf.mxu0
        %v2650 = vadd.f32 0.0, %v2649
        %2651 = vmatmul.f32.gmra.mxu0 %v2578
        %v2652 = vpop.f32.mrf.mxu0
        %v2653 = vadd.f32 0.0, %v2652
        %2654 = vmatmul.f32.gmra.mxu0 %v2580
        %v2655 = vpop.f32.mrf.mxu0
        %v2656 = vadd.f32 0.0, %v2655
        %2657 = vmatmul.f32.gmra.mxu0 %v2582
        %v2658 = vpop.f32.mrf.mxu0
        %v2659 = vadd.f32 0.0, %v2658
        %2660 = vmatmul.f32.gmra.mxu0 %v2584
        %v2661 = vpop.f32.mrf.mxu0
        %v2662 = vadd.f32 0.0, %v2661
        %2663 = vmatmul.f32.gmra.mxu0 %v2586
        %v2664 = vpop.f32.mrf.mxu0
        %v2665 = vadd.f32 0.0, %v2664
        %2666 = vmatmul.f32.gmra.mxu0 %v2588
        %v2667 = vpop.f32.mrf.mxu0
        %v2668 = vadd.f32 0.0, %v2667
        %2669 = vmatmul.f32.gmra.mxu0 %v2590
        %v2670 = vpop.f32.mrf.mxu0
        %v2671 = vadd.f32 0.0, %v2670
        %2672 = vmatmul.f32.gmra.mxu0 %v2592
        %v2673 = vpop.f32.mrf.mxu0
        %v2674 = vadd.f32 0.0, %v2673
        %2675 = vmatmul.f32.gmra.mxu0 %v2594
        %v2676 = vpop.f32.mrf.mxu0
        %v2677 = vadd.f32 0.0, %v2676
        %2678 = vdwg.mxu0
        %2679 = vmatpush.msra.mxu0 0.0
        %2680 = vmatpush.msra.mxu0 0.0
        %2681 = vmatpush.msra.mxu0 0.0
        %2682 = vmatpush.msra.mxu0 0.0
        %2683 = vmatpush.msra.mxu0 0.0
        %2684 = vmatpush.msra.mxu0 0.0
        %2685 = vmatpush.msra.mxu0 0.0
        %2686 = vmatpush.msra.mxu0 0.0
        %2687 = vmatpush.msra.mxu0 0.0
        %2688 = vmatpush.msra.mxu0 0.0
        %2689 = vmatpush.msra.mxu0 %v2214
        %2690 = vmatpush.msra.mxu0 %v2211
        %2691 = vmatpush.msra.mxu0 %v2208
        %2692 = vmatpush.msra.mxu0 %v2205
        %2693 = vmatpush.msra.mxu0 %v2202
        %2694 = vmatpush.msra.mxu0 %v2199
        %2695 = vmatmul.f32.gmra.mxu0 %v2597
        %v2696 = vpop.f32.mrf.mxu0
        %v2697 = vadd.f32 %v2647, %v2696
        %2698 = vmatmul.f32.gmra.mxu0 %v2600
        %v2699 = vpop.f32.mrf.mxu0
        %v2700 = vadd.f32 %v2650, %v2699
        %2701 = vmatmul.f32.gmra.mxu0 %v2603
        %v2702 = vpop.f32.mrf.mxu0
        %v2703 = vadd.f32 %v2653, %v2702
        %2704 = vmatmul.f32.gmra.mxu0 %v2606
        %v2705 = vpop.f32.mrf.mxu0
        %v2706 = vadd.f32 %v2656, %v2705
        %2707 = vmatmul.f32.gmra.mxu0 %v2609
        %v2708 = vpop.f32.mrf.mxu0
        %v2709 = vadd.f32 %v2659, %v2708
        %2710 = vmatmul.f32.gmra.mxu0 %v2612
        %v2711 = vpop.f32.mrf.mxu0
        %v2712 = vadd.f32 %v2662, %v2711
        %2713 = vmatmul.f32.gmra.mxu0 %v2615
        %v2714 = vpop.f32.mrf.mxu0
        %v2715 = vadd.f32 %v2665, %v2714
        %2716 = vmatmul.f32.gmra.mxu0 %v2618
        %v2717 = vpop.f32.mrf.mxu0
        %v2718 = vadd.f32 %v2668, %v2717
        %2719 = vmatmul.f32.gmra.mxu0 %v2621
        %v2720 = vpop.f32.mrf.mxu0
        %v2721 = vadd.f32 %v2671, %v2720
        %2722 = vmatmul.f32.gmra.mxu0 %v2624
        %v2723 = vpop.f32.mrf.mxu0
        %v2724 = vadd.f32 %v2674, %v2723
        %2725 = vmatmul.f32.gmra.mxu0 %v2627
        %v2726 = vpop.f32.mrf.mxu0
        %v2727 = vadd.f32 %v2677, %v2726
        %2728 = vdwg.mxu0
        %2729 = vmatpush.msra.mxu0 %v2286
        %2730 = vmatpush.msra.mxu0 %v2283
        %2731 = vmatpush.msra.mxu0 %v2280
        %2732 = vmatpush.msra.mxu0 %v2277
        %2733 = vmatpush.msra.mxu0 %v2274
        %2734 = vmatpush.msra.mxu0 %v2271
        %2735 = vmatpush.msra.mxu0 %v2268
        %2736 = vmatpush.msra.mxu0 %v2265
        %2737 = vmatpush.msra.mxu0 %v2262
        %2738 = vmatpush.msra.mxu0 %v2259
        %2739 = vmatpush.msra.mxu0 %v2256
        %2740 = vmatpush.msra.mxu0 %v2253
        %2741 = vmatpush.msra.mxu0 %v2250
        %2742 = vmatpush.msra.mxu0 %v2247
        %2743 = vmatpush.msra.mxu0 %v2244
        %2744 = vmatpush.msra.mxu0 %v2241
        %2745 = vmatmul.f32.gmra.mxu0 %v2574
        %v2746 = vpop.f32.mrf.mxu0
        %v2747 = vadd.f32 0.0, %v2746
        %2748 = vmatmul.f32.gmra.mxu0 %v2576
        %v2749 = vpop.f32.mrf.mxu0
        %v2750 = vadd.f32 0.0, %v2749
        %2751 = vmatmul.f32.gmra.mxu0 %v2578
        %v2752 = vpop.f32.mrf.mxu0
        %v2753 = vadd.f32 0.0, %v2752
        %2754 = vmatmul.f32.gmra.mxu0 %v2580
        %v2755 = vpop.f32.mrf.mxu0
        %v2756 = vadd.f32 0.0, %v2755
        %2757 = vmatmul.f32.gmra.mxu0 %v2582
        %v2758 = vpop.f32.mrf.mxu0
        %v2759 = vadd.f32 0.0, %v2758
        %2760 = vmatmul.f32.gmra.mxu0 %v2584
        %v2761 = vpop.f32.mrf.mxu0
        %v2762 = vadd.f32 0.0, %v2761
        %2763 = vmatmul.f32.gmra.mxu0 %v2586
        %v2764 = vpop.f32.mrf.mxu0
        %v2765 = vadd.f32 0.0, %v2764
        %2766 = vmatmul.f32.gmra.mxu0 %v2588
        %v2767 = vpop.f32.mrf.mxu0
        %v2768 = vadd.f32 0.0, %v2767
        %2769 = vmatmul.f32.gmra.mxu0 %v2590
        %v2770 = vpop.f32.mrf.mxu0
        %v2771 = vadd.f32 0.0, %v2770
        %2772 = vmatmul.f32.gmra.mxu0 %v2592
        %v2773 = vpop.f32.mrf.mxu0
        %v2774 = vadd.f32 0.0, %v2773
        %2775 = vmatmul.f32.gmra.mxu0 %v2594
        %v2776 = vpop.f32.mrf.mxu0
        %v2777 = vadd.f32 0.0, %v2776
        %2778 = vdwg.mxu0
        %2779 = vmatpush.msra.mxu0 0.0
        %2780 = vmatpush.msra.mxu0 0.0
        %2781 = vmatpush.msra.mxu0 0.0
        %2782 = vmatpush.msra.mxu0 0.0
        %2783 = vmatpush.msra.mxu0 0.0
        %2784 = vmatpush.msra.mxu0 0.0
        %2785 = vmatpush.msra.mxu0 0.0
        %2786 = vmatpush.msra.mxu0 0.0
        %2787 = vmatpush.msra.mxu0 0.0
        %2788 = vmatpush.msra.mxu0 0.0
        %2789 = vmatpush.msra.mxu0 %v2304
        %2790 = vmatpush.msra.mxu0 %v2301
        %2791 = vmatpush.msra.mxu0 %v2298
        %2792 = vmatpush.msra.mxu0 %v2295
        %2793 = vmatpush.msra.mxu0 %v2292
        %2794 = vmatpush.msra.mxu0 %v2289
        %2795 = vmatmul.f32.gmra.mxu0 %v2597
        %v2796 = vpop.f32.mrf.mxu0
        %v2797 = vadd.f32 %v2747, %v2796
        %2798 = vmatmul.f32.gmra.mxu0 %v2600
        %v2799 = vpop.f32.mrf.mxu0
        %v2800 = vadd.f32 %v2750, %v2799
        %2801 = vmatmul.f32.gmra.mxu0 %v2603
        %v2802 = vpop.f32.mrf.mxu0
        %v2803 = vadd.f32 %v2753, %v2802
        %2804 = vmatmul.f32.gmra.mxu0 %v2606
        %v2805 = vpop.f32.mrf.mxu0
        %v2806 = vadd.f32 %v2756, %v2805
        %2807 = vmatmul.f32.gmra.mxu0 %v2609
        %v2808 = vpop.f32.mrf.mxu0
        %v2809 = vadd.f32 %v2759, %v2808
        %2810 = vmatmul.f32.gmra.mxu0 %v2612
        %v2811 = vpop.f32.mrf.mxu0
        %v2812 = vadd.f32 %v2762, %v2811
        %2813 = vmatmul.f32.gmra.mxu0 %v2615
        %v2814 = vpop.f32.mrf.mxu0
        %v2815 = vadd.f32 %v2765, %v2814
        %2816 = vmatmul.f32.gmra.mxu0 %v2618
        %v2817 = vpop.f32.mrf.mxu0
        %v2818 = vadd.f32 %v2768, %v2817
        %2819 = vmatmul.f32.gmra.mxu0 %v2621
        %v2820 = vpop.f32.mrf.mxu0
        %v2821 = vadd.f32 %v2771, %v2820
        %2822 = vmatmul.f32.gmra.mxu0 %v2624
        %v2823 = vpop.f32.mrf.mxu0
        %v2824 = vadd.f32 %v2774, %v2823
        %2825 = vmatmul.f32.gmra.mxu0 %v2627
        %v2826 = vpop.f32.mrf.mxu0
        %v2827 = vadd.f32 %v2777, %v2826
        %2828 = vdwg.mxu0
        %v2829 = vmax.f32 %v2697, %v2797
        %v2830 = vmax.f32 %v2700, %v2800
        %v2831 = vmax.f32 %v2703, %v2803
        %v2832 = vmax.f32 %v2706, %v2806
        %v2833 = vmax.f32 %v2709, %v2809
        %v2834 = vmax.f32 %v2712, %v2812
        %v2835 = vmax.f32 %v2715, %v2815
        %v2836 = vmax.f32 %v2718, %v2818
        %v2837 = vmax.f32 %v2721, %v2821
        %v2838 = vmax.f32 %v2724, %v2824
        %v2839 = vmax.f32 %v2727, %v2827
        %v2840 = vmax.f32 %v2562, %v2829
        %v2841 = vmax.f32 %v2563, %v2830
        %v2842 = vmax.f32 %v2564, %v2831
        %v2843 = vmax.f32 %v2565, %v2832
        %v2844 = vmax.f32 %v2566, %v2833
        %v2845 = vmax.f32 %v2567, %v2834
        %v2846 = vmax.f32 %v2568, %v2835
        %v2847 = vmax.f32 %v2569, %v2836
        %v2848 = vmax.f32 %v2570, %v2837
        %v2849 = vmax.f32 %v2571, %v2838
        %v2850 = vmax.f32 %v2572, %v2839
        %v2851 = vmax.f32 %v2840, 0.0
        %v2852 = vmax.f32 %v2841, 0.0
        %v2853 = vmax.f32 %v2842, 0.0
        %v2854 = vmax.f32 %v2843, 0.0
        %v2855 = vmax.f32 %v2844, 0.0
        %v2856 = vmax.f32 %v2845, 0.0
        %v2857 = vmax.f32 %v2846, 0.0
        %v2858 = vmax.f32 %v2847, 0.0
        %v2859 = vmax.f32 %v2848, 0.0
        %v2860 = vmax.f32 %v2849, 0.0
        %v2861 = vmax.f32 %v2850, 0.0
        %v2862 = vld [vmem:[%s6] sm:$0xff]
        %v2863 = vld [vmem:[%s6 + $0x8] sm:$0xff]
        %v2864 = vld [vmem:[%s6 + $0x10] sm:$0xff]
        %v2865 = vld [vmem:[%s6 + $0x18] sm:$0xff]
        %v2866 = vld [vmem:[%s6 + $0x20] sm:$0xff]
        %v2867 = vld [vmem:[%s6 + $0x28] sm:$0xff]
        %v2868 = vld [vmem:[%s6 + $0x30] sm:$0xff]
        %v2869 = vld [vmem:[%s6 + $0x38] sm:$0xff]
        %v2870 = vld [vmem:[%s6 + $0x40] sm:$0x3f]
        %s2871 = scalar_lea.vmem %s6, 72
        %v2872 = vld [vmem:[%s2871] sm:$0xff]
        %v2873 = vld [vmem:[%s2871 + $0x8] sm:$0xff]
        %v2874 = vld [vmem:[%s2871 + $0x10] sm:$0xff]
        %v2875 = vld [vmem:[%s2871 + $0x18] sm:$0xff]
        %v2876 = vld [vmem:[%s2871 + $0x20] sm:$0xff]
        %v2877 = vld [vmem:[%s2871 + $0x28] sm:$0xff]
        %v2878 = vld [vmem:[%s2871 + $0x30] sm:$0xff]
        %v2879 = vld [vmem:[%s2871 + $0x38] sm:$0xff]
        %v2880 = vld [vmem:[%s2871 + $0x40] sm:$0x3f]
        %2892 = vrot.lane.b32.xlu0 %v2851, 127
        %v2893 = vpop.permute.xlu0 %2892
        %2894 = vrot.lane.b32.xlu0 %v2852, 127
        %v2895 = vpop.permute.xlu0 %2894
        %2896 = vrot.lane.b32.xlu0 %v2853, 127
        %v2897 = vpop.permute.xlu0 %2896
        %2898 = vrot.lane.b32.xlu0 %v2854, 127
        %v2899 = vpop.permute.xlu0 %2898
        %2900 = vrot.lane.b32.xlu0 %v2855, 127
        %v2901 = vpop.permute.xlu0 %2900
        %2902 = vrot.lane.b32.xlu0 %v2856, 127
        %v2903 = vpop.permute.xlu0 %2902
        %2904 = vrot.lane.b32.xlu0 %v2857, 127
        %v2905 = vpop.permute.xlu0 %2904
        %2906 = vrot.lane.b32.xlu0 %v2858, 127
        %v2907 = vpop.permute.xlu0 %2906
        %2908 = vrot.lane.b32.xlu0 %v2859, 127
        %v2909 = vpop.permute.xlu0 %2908
        %2910 = vrot.lane.b32.xlu0 %v2860, 127
        %v2911 = vpop.permute.xlu0 %2910
        %2912 = vrot.lane.b32.xlu0 %v2861, 127
        %v2913 = vpop.permute.xlu0 %2912
        %vm2925 = vcmask 719872
        %v2927 = vsel %vm2925, %v2872, 0
        %v2930 = vsel %vm2925, %v2873, 0
        %v2933 = vsel %vm2925, %v2874, 0
        %v2936 = vsel %vm2925, %v2875, 0
        %v2939 = vsel %vm2925, %v2876, 0
        %v2942 = vsel %vm2925, %v2877, 0
        %v2945 = vsel %vm2925, %v2878, 0
        %v2948 = vsel %vm2925, %v2879, 0
        %v2951 = vsel %vm2925, %v2880, 0
        %2953 = vmatpush.msra.mxu0 0.0
        %2954 = vmatpush.msra.mxu0 0.0
        %2955 = vmatpush.msra.mxu0 0.0
        %2956 = vmatpush.msra.mxu0 0.0
        %2957 = vmatpush.msra.mxu0 0.0
        %2958 = vmatpush.msra.mxu0 %v2913
        %2959 = vmatpush.msra.mxu0 %v2911
        %2960 = vmatpush.msra.mxu0 %v2909
        %2961 = vmatpush.msra.mxu0 %v2907
        %2962 = vmatpush.msra.mxu0 %v2905
        %2963 = vmatpush.msra.mxu0 %v2903
        %2964 = vmatpush.msra.mxu0 %v2901
        %2965 = vmatpush.msra.mxu0 %v2899
        %2966 = vmatpush.msra.mxu0 %v2897
        %2967 = vmatpush.msra.mxu0 %v2895
        %2968 = vmatpush.msra.mxu0 %v2893
        %2969 = vmatmul.f32.gmra.mxu0 %v2927
        %v2970 = vpop.f32.mrf.mxu0
        %v2971 = vadd.f32 0.0, %v2970
        %2972 = vmatmul.f32.gmra.mxu0 %v2930
        %v2973 = vpop.f32.mrf.mxu0
        %v2974 = vadd.f32 0.0, %v2973
        %2975 = vmatmul.f32.gmra.mxu0 %v2933
        %v2976 = vpop.f32.mrf.mxu0
        %v2977 = vadd.f32 0.0, %v2976
        %2978 = vmatmul.f32.gmra.mxu0 %v2936
        %v2979 = vpop.f32.mrf.mxu0
        %v2980 = vadd.f32 0.0, %v2979
        %2981 = vmatmul.f32.gmra.mxu0 %v2939
        %v2982 = vpop.f32.mrf.mxu0
        %v2983 = vadd.f32 0.0, %v2982
        %2984 = vmatmul.f32.gmra.mxu0 %v2942
        %v2985 = vpop.f32.mrf.mxu0
        %v2986 = vadd.f32 0.0, %v2985
        %2987 = vmatmul.f32.gmra.mxu0 %v2945
        %v2988 = vpop.f32.mrf.mxu0
        %v2989 = vadd.f32 0.0, %v2988
        %2990 = vmatmul.f32.gmra.mxu0 %v2948
        %v2991 = vpop.f32.mrf.mxu0
        %v2992 = vadd.f32 0.0, %v2991
        %2993 = vmatmul.f32.gmra.mxu0 %v2951
        %v2994 = vpop.f32.mrf.mxu0
        %v2995 = vadd.f32 0.0, %v2994
        %2996 = vdwg.mxu0
        %v2998 = vsel %vm2925, %v2862, 0
        %v3001 = vsel %vm2925, %v2863, 0
        %v3004 = vsel %vm2925, %v2864, 0
        %v3007 = vsel %vm2925, %v2865, 0
        %v3010 = vsel %vm2925, %v2866, 0
        %v3013 = vsel %vm2925, %v2867, 0
        %v3016 = vsel %vm2925, %v2868, 0
        %v3019 = vsel %vm2925, %v2869, 0
        %v3022 = vsel %vm2925, %v2870, 0
        %3024 = vmatpush.msra.mxu0 0.0
        %3025 = vmatpush.msra.mxu0 0.0
        %3026 = vmatpush.msra.mxu0 0.0
        %3027 = vmatpush.msra.mxu0 0.0
        %3028 = vmatpush.msra.mxu0 0.0
        %3029 = vmatpush.msra.mxu0 %v2861
        %3030 = vmatpush.msra.mxu0 %v2860
        %3031 = vmatpush.msra.mxu0 %v2859
        %3032 = vmatpush.msra.mxu0 %v2858
        %3033 = vmatpush.msra.mxu0 %v2857
        %3034 = vmatpush.msra.mxu0 %v2856
        %3035 = vmatpush.msra.mxu0 %v2855
        %3036 = vmatpush.msra.mxu0 %v2854
        %3037 = vmatpush.msra.mxu0 %v2853
        %3038 = vmatpush.msra.mxu0 %v2852
        %3039 = vmatpush.msra.mxu0 %v2851
        %3040 = vmatmul.f32.gmra.mxu0 %v2998
        %v3041 = vpop.f32.mrf.mxu0
        %v3042 = vadd.f32 %v2971, %v3041
        %3043 = vmatmul.f32.gmra.mxu0 %v3001
        %v3044 = vpop.f32.mrf.mxu0
        %v3045 = vadd.f32 %v2974, %v3044
        %3046 = vmatmul.f32.gmra.mxu0 %v3004
        %v3047 = vpop.f32.mrf.mxu0
        %v3048 = vadd.f32 %v2977, %v3047
        %3049 = vmatmul.f32.gmra.mxu0 %v3007
        %v3050 = vpop.f32.mrf.mxu0
        %v3051 = vadd.f32 %v2980, %v3050
        %3052 = vmatmul.f32.gmra.mxu0 %v3010
        %v3053 = vpop.f32.mrf.mxu0
        %v3054 = vadd.f32 %v2983, %v3053
        %3055 = vmatmul.f32.gmra.mxu0 %v3013
        %v3056 = vpop.f32.mrf.mxu0
        %v3057 = vadd.f32 %v2986, %v3056
        %3058 = vmatmul.f32.gmra.mxu0 %v3016
        %v3059 = vpop.f32.mrf.mxu0
        %v3060 = vadd.f32 %v2989, %v3059
        %3061 = vmatmul.f32.gmra.mxu0 %v3019
        %v3062 = vpop.f32.mrf.mxu0
        %v3063 = vadd.f32 %v2992, %v3062
        %3064 = vmatmul.f32.gmra.mxu0 %v3022
        %v3065 = vpop.f32.mrf.mxu0
        %v3066 = vadd.f32 %v2995, %v3065
        %3067 = vdwg.mxu0
        %s3068 = scalar_lea.vmem %s6, 144
        %v3069 = vld [vmem:[%s3068] sm:$0xff]
        %v3070 = vld [vmem:[%s3068 + $0x8] sm:$0xff]
        %v3071 = vld [vmem:[%s3068 + $0x10] sm:$0xff]
        %v3072 = vld [vmem:[%s3068 + $0x18] sm:$0xff]
        %v3073 = vld [vmem:[%s3068 + $0x20] sm:$0xff]
        %v3074 = vld [vmem:[%s3068 + $0x28] sm:$0xff]
        %v3075 = vld [vmem:[%s3068 + $0x30] sm:$0xff]
        %v3076 = vld [vmem:[%s3068 + $0x38] sm:$0xff]
        %v3077 = vld [vmem:[%s3068 + $0x40] sm:$0x3f]
        %3078 = vrot.lane.b32.xlu0 %v2851, 126
        %v3079 = vpop.permute.xlu0 %3078
        %3080 = vrot.lane.b32.xlu0 %v2852, 126
        %v3081 = vpop.permute.xlu0 %3080
        %3082 = vrot.lane.b32.xlu0 %v2853, 126
        %v3083 = vpop.permute.xlu0 %3082
        %3084 = vrot.lane.b32.xlu0 %v2854, 126
        %v3085 = vpop.permute.xlu0 %3084
        %3086 = vrot.lane.b32.xlu0 %v2855, 126
        %v3087 = vpop.permute.xlu0 %3086
        %3088 = vrot.lane.b32.xlu0 %v2856, 126
        %v3089 = vpop.permute.xlu0 %3088
        %3090 = vrot.lane.b32.xlu0 %v2857, 126
        %v3091 = vpop.permute.xlu0 %3090
        %3092 = vrot.lane.b32.xlu0 %v2858, 126
        %v3093 = vpop.permute.xlu0 %3092
        %3094 = vrot.lane.b32.xlu0 %v2859, 126
        %v3095 = vpop.permute.xlu0 %3094
        %3096 = vrot.lane.b32.xlu0 %v2860, 126
        %v3097 = vpop.permute.xlu0 %3096
        %3098 = vrot.lane.b32.xlu0 %v2861, 126
        %v3099 = vpop.permute.xlu0 %3098
        %v3112 = vsel %vm2925, %v3069, 0
        %v3115 = vsel %vm2925, %v3070, 0
        %v3118 = vsel %vm2925, %v3071, 0
        %v3121 = vsel %vm2925, %v3072, 0
        %v3124 = vsel %vm2925, %v3073, 0
        %v3127 = vsel %vm2925, %v3074, 0
        %v3130 = vsel %vm2925, %v3075, 0
        %v3133 = vsel %vm2925, %v3076, 0
        %v3136 = vsel %vm2925, %v3077, 0
        %3138 = vmatpush.msra.mxu0 0.0
        %3139 = vmatpush.msra.mxu0 0.0
        %3140 = vmatpush.msra.mxu0 0.0
        %3141 = vmatpush.msra.mxu0 0.0
        %3142 = vmatpush.msra.mxu0 0.0
        %3143 = vmatpush.msra.mxu0 %v3099
        %3144 = vmatpush.msra.mxu0 %v3097
        %3145 = vmatpush.msra.mxu0 %v3095
        %3146 = vmatpush.msra.mxu0 %v3093
        %3147 = vmatpush.msra.mxu0 %v3091
        %3148 = vmatpush.msra.mxu0 %v3089
        %3149 = vmatpush.msra.mxu0 %v3087
        %3150 = vmatpush.msra.mxu0 %v3085
        %3151 = vmatpush.msra.mxu0 %v3083
        %3152 = vmatpush.msra.mxu0 %v3081
        %3153 = vmatpush.msra.mxu0 %v3079
        %3154 = vmatmul.f32.gmra.mxu0 %v3112
        %v3155 = vpop.f32.mrf.mxu0
        %v3156 = vadd.f32 0.0, %v3155
        %3157 = vmatmul.f32.gmra.mxu0 %v3115
        %v3158 = vpop.f32.mrf.mxu0
        %v3159 = vadd.f32 0.0, %v3158
        %3160 = vmatmul.f32.gmra.mxu0 %v3118
        %v3161 = vpop.f32.mrf.mxu0
        %v3162 = vadd.f32 0.0, %v3161
        %3163 = vmatmul.f32.gmra.mxu0 %v3121
        %v3164 = vpop.f32.mrf.mxu0
        %v3165 = vadd.f32 0.0, %v3164
        %3166 = vmatmul.f32.gmra.mxu0 %v3124
        %v3167 = vpop.f32.mrf.mxu0
        %v3168 = vadd.f32 0.0, %v3167
        %3169 = vmatmul.f32.gmra.mxu0 %v3127
        %v3170 = vpop.f32.mrf.mxu0
        %v3171 = vadd.f32 0.0, %v3170
        %3172 = vmatmul.f32.gmra.mxu0 %v3130
        %v3173 = vpop.f32.mrf.mxu0
        %v3174 = vadd.f32 0.0, %v3173
        %3175 = vmatmul.f32.gmra.mxu0 %v3133
        %v3176 = vpop.f32.mrf.mxu0
        %v3177 = vadd.f32 0.0, %v3176
        %3178 = vmatmul.f32.gmra.mxu0 %v3136
        %v3179 = vpop.f32.mrf.mxu0
        %v3180 = vadd.f32 0.0, %v3179
        %3181 = vdwg.mxu0
        %v3182 = vadd.f32 %v3042, %v3156
        %v3183 = vadd.f32 %v3045, %v3159
        %v3184 = vadd.f32 %v3048, %v3162
        %v3185 = vadd.f32 %v3051, %v3165
        %v3186 = vadd.f32 %v3054, %v3168
        %v3187 = vadd.f32 %v3057, %v3171
        %v3188 = vadd.f32 %v3060, %v3174
        %v3189 = vadd.f32 %v3063, %v3177
        %v3190 = vadd.f32 %v3066, %v3180
        %s3191 = scalar_lea.vmem %s6, 216
        %v3192 = vld [vmem:[%s3191] sm:$0xff]
        %v3193 = vld [vmem:[%s3191 + $0x8] sm:$0xff]
        %v3194 = vld [vmem:[%s3191 + $0x10] sm:$0xff]
        %v3195 = vld [vmem:[%s3191 + $0x18] sm:$0xff]
        %v3196 = vld [vmem:[%s3191 + $0x20] sm:$0xff]
        %v3197 = vld [vmem:[%s3191 + $0x28] sm:$0xff]
        %v3198 = vld [vmem:[%s3191 + $0x30] sm:$0xff]
        %v3199 = vld [vmem:[%s3191 + $0x38] sm:$0xff]
        %v3200 = vld [vmem:[%s3191 + $0x40] sm:$0x3f]
        %3201 = vrot.lane.b32.xlu0 %v2851, 125
        %v3202 = vpop.permute.xlu0 %3201
        %3203 = vrot.lane.b32.xlu0 %v2852, 125
        %v3204 = vpop.permute.xlu0 %3203
        %3205 = vrot.lane.b32.xlu0 %v2853, 125
        %v3206 = vpop.permute.xlu0 %3205
        %3207 = vrot.lane.b32.xlu0 %v2854, 125
        %v3208 = vpop.permute.xlu0 %3207
        %3209 = vrot.lane.b32.xlu0 %v2855, 125
        %v3210 = vpop.permute.xlu0 %3209
        %3211 = vrot.lane.b32.xlu0 %v2856, 125
        %v3212 = vpop.permute.xlu0 %3211
        %3213 = vrot.lane.b32.xlu0 %v2857, 125
        %v3214 = vpop.permute.xlu0 %3213
        %3215 = vrot.lane.b32.xlu0 %v2858, 125
        %v3216 = vpop.permute.xlu0 %3215
        %3217 = vrot.lane.b32.xlu0 %v2859, 125
        %v3218 = vpop.permute.xlu0 %3217
        %3219 = vrot.lane.b32.xlu0 %v2860, 125
        %v3220 = vpop.permute.xlu0 %3219
        %3221 = vrot.lane.b32.xlu0 %v2861, 125
        %v3222 = vpop.permute.xlu0 %3221
        %v3235 = vsel %vm2925, %v3192, 0
        %v3238 = vsel %vm2925, %v3193, 0
        %v3241 = vsel %vm2925, %v3194, 0
        %v3244 = vsel %vm2925, %v3195, 0
        %v3247 = vsel %vm2925, %v3196, 0
        %v3250 = vsel %vm2925, %v3197, 0
        %v3253 = vsel %vm2925, %v3198, 0
        %v3256 = vsel %vm2925, %v3199, 0
        %v3259 = vsel %vm2925, %v3200, 0
        %3261 = vmatpush.msra.mxu0 0.0
        %3262 = vmatpush.msra.mxu0 0.0
        %3263 = vmatpush.msra.mxu0 0.0
        %3264 = vmatpush.msra.mxu0 0.0
        %3265 = vmatpush.msra.mxu0 0.0
        %3266 = vmatpush.msra.mxu0 %v3222
        %3267 = vmatpush.msra.mxu0 %v3220
        %3268 = vmatpush.msra.mxu0 %v3218
        %3269 = vmatpush.msra.mxu0 %v3216
        %3270 = vmatpush.msra.mxu0 %v3214
        %3271 = vmatpush.msra.mxu0 %v3212
        %3272 = vmatpush.msra.mxu0 %v3210
        %3273 = vmatpush.msra.mxu0 %v3208
        %3274 = vmatpush.msra.mxu0 %v3206
        %3275 = vmatpush.msra.mxu0 %v3204
        %3276 = vmatpush.msra.mxu0 %v3202
        %3277 = vmatmul.f32.gmra.mxu0 %v3235
        %v3278 = vpop.f32.mrf.mxu0
        %v3279 = vadd.f32 0.0, %v3278
        %3280 = vmatmul.f32.gmra.mxu0 %v3238
        %v3281 = vpop.f32.mrf.mxu0
        %v3282 = vadd.f32 0.0, %v3281
        %3283 = vmatmul.f32.gmra.mxu0 %v3241
        %v3284 = vpop.f32.mrf.mxu0
        %v3285 = vadd.f32 0.0, %v3284
        %3286 = vmatmul.f32.gmra.mxu0 %v3244
        %v3287 = vpop.f32.mrf.mxu0
        %v3288 = vadd.f32 0.0, %v3287
        %3289 = vmatmul.f32.gmra.mxu0 %v3247
        %v3290 = vpop.f32.mrf.mxu0
        %v3291 = vadd.f32 0.0, %v3290
        %3292 = vmatmul.f32.gmra.mxu0 %v3250
        %v3293 = vpop.f32.mrf.mxu0
        %v3294 = vadd.f32 0.0, %v3293
        %3295 = vmatmul.f32.gmra.mxu0 %v3253
        %v3296 = vpop.f32.mrf.mxu0
        %v3297 = vadd.f32 0.0, %v3296
        %3298 = vmatmul.f32.gmra.mxu0 %v3256
        %v3299 = vpop.f32.mrf.mxu0
        %v3300 = vadd.f32 0.0, %v3299
        %3301 = vmatmul.f32.gmra.mxu0 %v3259
        %v3302 = vpop.f32.mrf.mxu0
        %v3303 = vadd.f32 0.0, %v3302
        %3304 = vdwg.mxu0
        %v3305 = vadd.f32 %v3182, %v3279
        %v3306 = vadd.f32 %v3183, %v3282
        %v3307 = vadd.f32 %v3184, %v3285
        %v3308 = vadd.f32 %v3185, %v3288
        %v3309 = vadd.f32 %v3186, %v3291
        %v3310 = vadd.f32 %v3187, %v3294
        %v3311 = vadd.f32 %v3188, %v3297
        %v3312 = vadd.f32 %v3189, %v3300
        %v3313 = vadd.f32 %v3190, %v3303
        %s3314 = scalar_lea.vmem %s6, 288
        %v3315 = vld [vmem:[%s3314] sm:$0xff]
        %v3316 = vld [vmem:[%s3314 + $0x8] sm:$0xff]
        %v3317 = vld [vmem:[%s3314 + $0x10] sm:$0xff]
        %v3318 = vld [vmem:[%s3314 + $0x18] sm:$0xff]
        %v3319 = vld [vmem:[%s3314 + $0x20] sm:$0xff]
        %v3320 = vld [vmem:[%s3314 + $0x28] sm:$0xff]
        %v3321 = vld [vmem:[%s3314 + $0x30] sm:$0xff]
        %v3322 = vld [vmem:[%s3314 + $0x38] sm:$0xff]
        %v3323 = vld [vmem:[%s3314 + $0x40] sm:$0x3f]
        %3324 = vrot.lane.b32.xlu0 %v2851, 124
        %v3325 = vpop.permute.xlu0 %3324
        %3326 = vrot.lane.b32.xlu0 %v2852, 124
        %v3327 = vpop.permute.xlu0 %3326
        %3328 = vrot.lane.b32.xlu0 %v2853, 124
        %v3329 = vpop.permute.xlu0 %3328
        %3330 = vrot.lane.b32.xlu0 %v2854, 124
        %v3331 = vpop.permute.xlu0 %3330
        %3332 = vrot.lane.b32.xlu0 %v2855, 124
        %v3333 = vpop.permute.xlu0 %3332
        %3334 = vrot.lane.b32.xlu0 %v2856, 124
        %v3335 = vpop.permute.xlu0 %3334
        %3336 = vrot.lane.b32.xlu0 %v2857, 124
        %v3337 = vpop.permute.xlu0 %3336
        %3338 = vrot.lane.b32.xlu0 %v2858, 124
        %v3339 = vpop.permute.xlu0 %3338
        %3340 = vrot.lane.b32.xlu0 %v2859, 124
        %v3341 = vpop.permute.xlu0 %3340
        %3342 = vrot.lane.b32.xlu0 %v2860, 124
        %v3343 = vpop.permute.xlu0 %3342
        %3344 = vrot.lane.b32.xlu0 %v2861, 124
        %v3345 = vpop.permute.xlu0 %3344
        %v3358 = vsel %vm2925, %v3315, 0
        %v3361 = vsel %vm2925, %v3316, 0
        %v3364 = vsel %vm2925, %v3317, 0
        %v3367 = vsel %vm2925, %v3318, 0
        %v3370 = vsel %vm2925, %v3319, 0
        %v3373 = vsel %vm2925, %v3320, 0
        %v3376 = vsel %vm2925, %v3321, 0
        %v3379 = vsel %vm2925, %v3322, 0
        %v3382 = vsel %vm2925, %v3323, 0
        %3384 = vmatpush.msra.mxu0 0.0
        %3385 = vmatpush.msra.mxu0 0.0
        %3386 = vmatpush.msra.mxu0 0.0
        %3387 = vmatpush.msra.mxu0 0.0
        %3388 = vmatpush.msra.mxu0 0.0
        %3389 = vmatpush.msra.mxu0 %v3345
        %3390 = vmatpush.msra.mxu0 %v3343
        %3391 = vmatpush.msra.mxu0 %v3341
        %3392 = vmatpush.msra.mxu0 %v3339
        %3393 = vmatpush.msra.mxu0 %v3337
        %3394 = vmatpush.msra.mxu0 %v3335
        %3395 = vmatpush.msra.mxu0 %v3333
        %3396 = vmatpush.msra.mxu0 %v3331
        %3397 = vmatpush.msra.mxu0 %v3329
        %3398 = vmatpush.msra.mxu0 %v3327
        %3399 = vmatpush.msra.mxu0 %v3325
        %3400 = vmatmul.f32.gmra.mxu0 %v3358
        %v3401 = vpop.f32.mrf.mxu0
        %v3402 = vadd.f32 0.0, %v3401
        %3403 = vmatmul.f32.gmra.mxu0 %v3361
        %v3404 = vpop.f32.mrf.mxu0
        %v3405 = vadd.f32 0.0, %v3404
        %3406 = vmatmul.f32.gmra.mxu0 %v3364
        %v3407 = vpop.f32.mrf.mxu0
        %v3408 = vadd.f32 0.0, %v3407
        %3409 = vmatmul.f32.gmra.mxu0 %v3367
        %v3410 = vpop.f32.mrf.mxu0
        %v3411 = vadd.f32 0.0, %v3410
        %3412 = vmatmul.f32.gmra.mxu0 %v3370
        %v3413 = vpop.f32.mrf.mxu0
        %v3414 = vadd.f32 0.0, %v3413
        %3415 = vmatmul.f32.gmra.mxu0 %v3373
        %v3416 = vpop.f32.mrf.mxu0
        %v3417 = vadd.f32 0.0, %v3416
        %3418 = vmatmul.f32.gmra.mxu0 %v3376
        %v3419 = vpop.f32.mrf.mxu0
        %v3420 = vadd.f32 0.0, %v3419
        %3421 = vmatmul.f32.gmra.mxu0 %v3379
        %v3422 = vpop.f32.mrf.mxu0
        %v3423 = vadd.f32 0.0, %v3422
        %3424 = vmatmul.f32.gmra.mxu0 %v3382
        %v3425 = vpop.f32.mrf.mxu0
        %v3426 = vadd.f32 0.0, %v3425
        %3427 = vdwg.mxu0
        %v3428 = vadd.f32 %v3305, %v3402
        %v3429 = vadd.f32 %v3306, %v3405
        %v3430 = vadd.f32 %v3307, %v3408
        %v3431 = vadd.f32 %v3308, %v3411
        %v3432 = vadd.f32 %v3309, %v3414
        %v3433 = vadd.f32 %v3310, %v3417
        %v3434 = vadd.f32 %v3311, %v3420
        %v3435 = vadd.f32 %v3312, %v3423
        %v3436 = vadd.f32 %v3313, %v3426
        %v3437 = vld [vmem:[%s7] sm:$0xff]
        %v3438 = vld [vmem:[%s7 + $0x8] sm:$0xff]
        %v3439 = vld [vmem:[%s7 + $0x10] sm:$0xff]
        %v3440 = vld [vmem:[%s7 + $0x18] sm:$0xff]
        %v3441 = vld [vmem:[%s7 + $0x20] sm:$0xff]
        %v3442 = vld [vmem:[%s7 + $0x28] sm:$0xff]
        %v3443 = vld [vmem:[%s7 + $0x30] sm:$0xff]
        %v3444 = vld [vmem:[%s7 + $0x38] sm:$0xff]
        %v3445 = vld [vmem:[%s7 + $0x40] sm:$0x3f]
        %3447 = vset.pattern.permute.xlu0 0
        %3448 = vperm.xlu0 %3447, %v3437
        %v3449 = vpop.permute.xlu0 %3448
        %3452 = vset.pattern.permute.xlu0 0
        %3453 = vperm.xlu0 %3452, %v3438
        %v3454 = vpop.permute.xlu0 %3453
        %3457 = vset.pattern.permute.xlu0 0
        %3458 = vperm.xlu0 %3457, %v3439
        %v3459 = vpop.permute.xlu0 %3458
        %3462 = vset.pattern.permute.xlu0 0
        %3463 = vperm.xlu0 %3462, %v3440
        %v3464 = vpop.permute.xlu0 %3463
        %3467 = vset.pattern.permute.xlu0 0
        %3468 = vperm.xlu0 %3467, %v3441
        %v3469 = vpop.permute.xlu0 %3468
        %3472 = vset.pattern.permute.xlu0 0
        %3473 = vperm.xlu0 %3472, %v3442
        %v3474 = vpop.permute.xlu0 %3473
        %3477 = vset.pattern.permute.xlu0 0
        %3478 = vperm.xlu0 %3477, %v3443
        %v3479 = vpop.permute.xlu0 %3478
        %3482 = vset.pattern.permute.xlu0 0
        %3483 = vperm.xlu0 %3482, %v3444
        %v3484 = vpop.permute.xlu0 %3483
        %3487 = vset.pattern.permute.xlu0 0
        %3488 = vperm.xlu0 %3487, %v3445
        %v3489 = vpop.permute.xlu0 %3488
        %v3491 = vadd.f32 %v3428, %v3449
        %v3492 = vadd.f32 %v3429, %v3454
        %v3493 = vadd.f32 %v3430, %v3459
        %v3494 = vadd.f32 %v3431, %v3464
        %v3495 = vadd.f32 %v3432, %v3469
        %v3496 = vadd.f32 %v3433, %v3474
        %v3497 = vadd.f32 %v3434, %v3479
        %v3498 = vadd.f32 %v3435, %v3484
        %v3499 = vadd.f32 %v3436, %v3489
        %v3500 = vld [vmem:[%s8] sm:$0x7f]
        %vm3501 = vcmask 56320
        %v3503 = vsel %vm3501, %v3491, 0
        %v3506 = vsel %vm3501, %v3492, 0
        %v3509 = vsel %vm3501, %v3493, 0
        %v3512 = vsel %vm3501, %v3494, 0
        %v3515 = vsel %vm3501, %v3495, 0
        %v3518 = vsel %vm3501, %v3496, 0
        %v3521 = vsel %vm3501, %v3497, 0
        %v3524 = vsel %vm3501, %v3498, 0
        %v3527 = vsel %vm3501, %v3499, 0
        %vm3529 = vcmask 1046528
        %v3531 = vsel %vm3529, %v3500, 0
        %3533 = vmatpush.msra.mxu0 0.0
        %3534 = vmatpush.msra.mxu0 0.0
        %3535 = vmatpush.msra.mxu0 0.0
        %3536 = vmatpush.msra.mxu0 0.0
        %3537 = vmatpush.msra.mxu0 0.0
        %3538 = vmatpush.msra.mxu0 0.0
        %3539 = vmatpush.msra.mxu0 0.0
        %3540 = vmatpush.msra.mxu0 0.0
        %3541 = vmatpush.msra.mxu0 0.0
        %3542 = vmatpush.msra.mxu0 0.0
        %3543 = vmatpush.msra.mxu0 0.0
        %3544 = vmatpush.msra.mxu0 0.0
        %3545 = vmatpush.msra.mxu0 0.0
        %3546 = vmatpush.msra.mxu0 0.0
        %3547 = vmatpush.msra.mxu0 0.0
        %3548 = vmatpush.msra.mxu0 %v3531
        %3549 = vmatmul.f32.gmra.mxu0 %v3503
        %v3550 = vpop.f32.mrf.mxu0
        %v3551 = vadd.f32 0.0, %v3550
        %3552 = vmatmul.f32.gmra.mxu0 %v3506
        %v3553 = vpop.f32.mrf.mxu0
        %v3554 = vadd.f32 0.0, %v3553
        %3555 = vmatmul.f32.gmra.mxu0 %v3509
        %v3556 = vpop.f32.mrf.mxu0
        %v3557 = vadd.f32 0.0, %v3556
        %3558 = vmatmul.f32.gmra.mxu0 %v3512
        %v3559 = vpop.f32.mrf.mxu0
        %v3560 = vadd.f32 0.0, %v3559
        %3561 = vmatmul.f32.gmra.mxu0 %v3515
        %v3562 = vpop.f32.mrf.mxu0
        %v3563 = vadd.f32 0.0, %v3562
        %3564 = vmatmul.f32.gmra.mxu0 %v3518
        %v3565 = vpop.f32.mrf.mxu0
        %v3566 = vadd.f32 0.0, %v3565
        %3567 = vmatmul.f32.gmra.mxu0 %v3521
        %v3568 = vpop.f32.mrf.mxu0
        %v3569 = vadd.f32 0.0, %v3568
        %3570 = vmatmul.f32.gmra.mxu0 %v3524
        %v3571 = vpop.f32.mrf.mxu0
        %v3572 = vadd.f32 0.0, %v3571
        %3573 = vmatmul.f32.gmra.mxu0 %v3527
        %v3574 = vpop.f32.mrf.mxu0
        %v3575 = vadd.f32 0.0, %v3574
        %3576 = vdwg.mxu0
        %s3577 = scalar_lea.vmem %s8, 8
        %v3578 = vld [vmem:[%s3577] sm:$0x7f]
        %v3580 = vsel %vm3529, %v3578, 0
        %3582 = vmatpush.msra.mxu0 0.0
        %3583 = vmatpush.msra.mxu0 0.0
        %3584 = vmatpush.msra.mxu0 0.0
        %3585 = vmatpush.msra.mxu0 0.0
        %3586 = vmatpush.msra.mxu0 0.0
        %3587 = vmatpush.msra.mxu0 0.0
        %3588 = vmatpush.msra.mxu0 0.0
        %3589 = vmatpush.msra.mxu0 0.0
        %3590 = vmatpush.msra.mxu0 0.0
        %3591 = vmatpush.msra.mxu0 0.0
        %3592 = vmatpush.msra.mxu0 0.0
        %3593 = vmatpush.msra.mxu0 0.0
        %3594 = vmatpush.msra.mxu0 0.0
        %3595 = vmatpush.msra.mxu0 0.0
        %3596 = vmatpush.msra.mxu0 0.0
        %3597 = vmatpush.msra.mxu0 %v3580
        %3598 = vmatmul.f32.gmra.mxu0 %v3503
        %v3599 = vpop.f32.mrf.mxu0
        %v3600 = vadd.f32 0.0, %v3599
        %3601 = vmatmul.f32.gmra.mxu0 %v3506
        %v3602 = vpop.f32.mrf.mxu0
        %v3603 = vadd.f32 0.0, %v3602
        %3604 = vmatmul.f32.gmra.mxu0 %v3509
        %v3605 = vpop.f32.mrf.mxu0
        %v3606 = vadd.f32 0.0, %v3605
        %3607 = vmatmul.f32.gmra.mxu0 %v3512
        %v3608 = vpop.f32.mrf.mxu0
        %v3609 = vadd.f32 0.0, %v3608
        %3610 = vmatmul.f32.gmra.mxu0 %v3515
        %v3611 = vpop.f32.mrf.mxu0
        %v3612 = vadd.f32 0.0, %v3611
        %3613 = vmatmul.f32.gmra.mxu0 %v3518
        %v3614 = vpop.f32.mrf.mxu0
        %v3615 = vadd.f32 0.0, %v3614
        %3616 = vmatmul.f32.gmra.mxu0 %v3521
        %v3617 = vpop.f32.mrf.mxu0
        %v3618 = vadd.f32 0.0, %v3617
        %3619 = vmatmul.f32.gmra.mxu0 %v3524
        %v3620 = vpop.f32.mrf.mxu0
        %v3621 = vadd.f32 0.0, %v3620
        %3622 = vmatmul.f32.gmra.mxu0 %v3527
        %v3623 = vpop.f32.mrf.mxu0
        %v3624 = vadd.f32 0.0, %v3623
        %3625 = vdwg.mxu0
        %v3626 = vld [vmem:[%s9] sm:$0xff]
        %v3627 = vld [vmem:[%s9 + $0x8] sm:$0xff]
        %v3628 = vld [vmem:[%s9 + $0x10] sm:$0xff]
        %v3629 = vld [vmem:[%s9 + $0x18] sm:$0x3f]
        %vm3630 = vcmask 572416
        %v3632 = vsel %vm3630, %v3626, 0
        %v3635 = vsel %vm3630, %v3627, 0
        %v3638 = vsel %vm3630, %v3628, 0
        %v3641 = vsel %vm3630, %v3629, 0
        %v3644 = vsel %vm2129, %v3575, 0
        %3646 = vmatpush.msra.mxu0 0.0
        %3647 = vmatpush.msra.mxu0 0.0
        %3648 = vmatpush.msra.mxu0 0.0
        %3649 = vmatpush.msra.mxu0 0.0
        %3650 = vmatpush.msra.mxu0 0.0
        %3651 = vmatpush.msra.mxu0 0.0
        %3652 = vmatpush.msra.mxu0 0.0
        %3653 = vmatpush.msra.mxu0 %v3644
        %3654 = vmatpush.msra.mxu0 %v3572
        %3655 = vmatpush.msra.mxu0 %v3569
        %3656 = vmatpush.msra.mxu0 %v3566
        %3657 = vmatpush.msra.mxu0 %v3563
        %3658 = vmatpush.msra.mxu0 %v3560
        %3659 = vmatpush.msra.mxu0 %v3557
        %3660 = vmatpush.msra.mxu0 %v3554
        %3661 = vmatpush.msra.mxu0 %v3551
        %3662 = vmatmul.f32.gmra.mxu0 %v3632
        %v3663 = vpop.f32.mrf.mxu0
        %v3664 = vadd.f32 0.0, %v3663
        %3665 = vmatmul.f32.gmra.mxu0 %v3635
        %v3666 = vpop.f32.mrf.mxu0
        %v3667 = vadd.f32 0.0, %v3666
        %3668 = vmatmul.f32.gmra.mxu0 %v3638
        %v3669 = vpop.f32.mrf.mxu0
        %v3670 = vadd.f32 0.0, %v3669
        %3671 = vmatmul.f32.gmra.mxu0 %v3641
        %v3672 = vpop.f32.mrf.mxu0
        %v3673 = vadd.f32 0.0, %v3672
        %3674 = vdwg.mxu0
        %v3676 = vsel %vm2129, %v3624, 0
        %3678 = vmatpush.msra.mxu0 0.0
        %3679 = vmatpush.msra.mxu0 0.0
        %3680 = vmatpush.msra.mxu0 0.0
        %3681 = vmatpush.msra.mxu0 0.0
        %3682 = vmatpush.msra.mxu0 0.0
        %3683 = vmatpush.msra.mxu0 0.0
        %3684 = vmatpush.msra.mxu0 0.0
        %3685 = vmatpush.msra.mxu0 %v3676
        %3686 = vmatpush.msra.mxu0 %v3621
        %3687 = vmatpush.msra.mxu0 %v3618
        %3688 = vmatpush.msra.mxu0 %v3615
        %3689 = vmatpush.msra.mxu0 %v3612
        %3690 = vmatpush.msra.mxu0 %v3609
        %3691 = vmatpush.msra.mxu0 %v3606
        %3692 = vmatpush.msra.mxu0 %v3603
        %3693 = vmatpush.msra.mxu0 %v3600
        %3694 = vmatmul.f32.gmra.mxu0 %v3632
        %v3695 = vpop.f32.mrf.mxu0
        %v3696 = vadd.f32 0.0, %v3695
        %3697 = vmatmul.f32.gmra.mxu0 %v3635
        %v3698 = vpop.f32.mrf.mxu0
        %v3699 = vadd.f32 0.0, %v3698
        %3700 = vmatmul.f32.gmra.mxu0 %v3638
        %v3701 = vpop.f32.mrf.mxu0
        %v3702 = vadd.f32 0.0, %v3701
        %3703 = vmatmul.f32.gmra.mxu0 %v3641
        %v3704 = vpop.f32.mrf.mxu0
        %v3705 = vadd.f32 0.0, %v3704
        %3706 = vdwg.mxu0
        %v3707 = vmax.f32 %v3664, %v3696
        %v3708 = vmax.f32 %v3667, %v3699
        %v3709 = vmax.f32 %v3670, %v3702
        %v3710 = vmax.f32 %v3673, %v3705
        %s3711 = scalar_lea.vmem %s9, 32
        %v3712 = vld [vmem:[%s3711] sm:$0xff]
        %v3713 = vld [vmem:[%s3711 + $0x8] sm:$0xff]
        %v3714 = vld [vmem:[%s3711 + $0x10] sm:$0xff]
        %v3715 = vld [vmem:[%s3711 + $0x18] sm:$0x3f]
        %v3717 = vsel %vm3630, %v3712, 0
        %v3720 = vsel %vm3630, %v3713, 0
        %v3723 = vsel %vm3630, %v3714, 0
        %v3726 = vsel %vm3630, %v3715, 0
        %3728 = vmatpush.msra.mxu0 0.0
        %3729 = vmatpush.msra.mxu0 0.0
        %3730 = vmatpush.msra.mxu0 0.0
        %3731 = vmatpush.msra.mxu0 0.0
        %3732 = vmatpush.msra.mxu0 0.0
        %3733 = vmatpush.msra.mxu0 0.0
        %3734 = vmatpush.msra.mxu0 0.0
        %3735 = vmatpush.msra.mxu0 %v3644
        %3736 = vmatpush.msra.mxu0 %v3572
        %3737 = vmatpush.msra.mxu0 %v3569
        %3738 = vmatpush.msra.mxu0 %v3566
        %3739 = vmatpush.msra.mxu0 %v3563
        %3740 = vmatpush.msra.mxu0 %v3560
        %3741 = vmatpush.msra.mxu0 %v3557
        %3742 = vmatpush.msra.mxu0 %v3554
        %3743 = vmatpush.msra.mxu0 %v3551
        %3744 = vmatmul.f32.gmra.mxu0 %v3717
        %v3745 = vpop.f32.mrf.mxu0
        %v3746 = vadd.f32 0.0, %v3745
        %3747 = vmatmul.f32.gmra.mxu0 %v3720
        %v3748 = vpop.f32.mrf.mxu0
        %v3749 = vadd.f32 0.0, %v3748
        %3750 = vmatmul.f32.gmra.mxu0 %v3723
        %v3751 = vpop.f32.mrf.mxu0
        %v3752 = vadd.f32 0.0, %v3751
        %3753 = vmatmul.f32.gmra.mxu0 %v3726
        %v3754 = vpop.f32.mrf.mxu0
        %v3755 = vadd.f32 0.0, %v3754
        %3756 = vdwg.mxu0
        %3757 = vmatpush.msra.mxu0 0.0
        %3758 = vmatpush.msra.mxu0 0.0
        %3759 = vmatpush.msra.mxu0 0.0
        %3760 = vmatpush.msra.mxu0 0.0
        %3761 = vmatpush.msra.mxu0 0.0
        %3762 = vmatpush.msra.mxu0 0.0
        %3763 = vmatpush.msra.mxu0 0.0
        %3764 = vmatpush.msra.mxu0 %v3676
        %3765 = vmatpush.msra.mxu0 %v3621
        %3766 = vmatpush.msra.mxu0 %v3618
        %3767 = vmatpush.msra.mxu0 %v3615
        %3768 = vmatpush.msra.mxu0 %v3612
        %3769 = vmatpush.msra.mxu0 %v3609
        %3770 = vmatpush.msra.mxu0 %v3606
        %3771 = vmatpush.msra.mxu0 %v3603
        %3772 = vmatpush.msra.mxu0 %v3600
        %3773 = vmatmul.f32.gmra.mxu0 %v3717
        %v3774 = vpop.f32.mrf.mxu0
        %v3775 = vadd.f32 0.0, %v3774
        %3776 = vmatmul.f32.gmra.mxu0 %v3720
        %v3777 = vpop.f32.mrf.mxu0
        %v3778 = vadd.f32 0.0, %v3777
        %3779 = vmatmul.f32.gmra.mxu0 %v3723
        %v3780 = vpop.f32.mrf.mxu0
        %v3781 = vadd.f32 0.0, %v3780
        %3782 = vmatmul.f32.gmra.mxu0 %v3726
        %v3783 = vpop.f32.mrf.mxu0
        %v3784 = vadd.f32 0.0, %v3783
        %3785 = vdwg.mxu0
        %v3786 = vmax.f32 %v3746, %v3775
        %v3787 = vmax.f32 %v3749, %v3778
        %v3788 = vmax.f32 %v3752, %v3781
        %v3789 = vmax.f32 %v3755, %v3784
        %v3790 = vmax.f32 %v3707, %v3786
        %v3791 = vmax.f32 %v3708, %v3787
        %v3792 = vmax.f32 %v3709, %v3788
        %v3793 = vmax.f32 %v3710, %v3789
        %v3794 = vmax.f32 %v3790, 0.0
        %v3795 = vmax.f32 %v3791, 0.0
        %v3796 = vmax.f32 %v3792, 0.0
        %v3797 = vmax.f32 %v3793, 0.0
        %v3798 = vld [vmem:[%s11] sm:$0xff]
        %v3799 = vld [vmem:[%s11 + $0x8] sm:$0xff]
        %v3800 = vld [vmem:[%s11 + $0x10] sm:$0xff]
        %v3801 = vld [vmem:[%s11 + $0x18] sm:$0xff]
        %v3802 = vld [vmem:[%s10] sm:$0xff]
        %v3803 = vld [vmem:[%s10 + $0x8] sm:$0xff]
        %v3804 = vld [vmem:[%s10 + $0x10] sm:$0xff]
        %v3805 = vld [vmem:[%s10 + $0x18] sm:$0xff]
        %vm3806 = vcmask 244736
        %v3808 = vsel %vm3806, %v3802, 0
        %v3811 = vsel %vm3806, %v3803, 0
        %v3814 = vsel %vm3806, %v3804, 0
        %v3817 = vsel %vm3806, %v3805, 0
        %v3820 = vsel %vm2129, %v3797, 0
        %3822 = vmatpush.msra.mxu0 0.0
        %3823 = vmatpush.msra.mxu0 0.0
        %3824 = vmatpush.msra.mxu0 0.0
        %3825 = vmatpush.msra.mxu0 0.0
        %3826 = vmatpush.msra.mxu0 0.0
        %3827 = vmatpush.msra.mxu0 0.0
        %3828 = vmatpush.msra.mxu0 0.0
        %3829 = vmatpush.msra.mxu0 0.0
        %3830 = vmatpush.msra.mxu0 0.0
        %3831 = vmatpush.msra.mxu0 0.0
        %3832 = vmatpush.msra.mxu0 0.0
        %3833 = vmatpush.msra.mxu0 0.0
        %3834 = vmatpush.msra.mxu0 %v3820
        %3835 = vmatpush.msra.mxu0 %v3796
        %3836 = vmatpush.msra.mxu0 %v3795
        %3837 = vmatpush.msra.mxu0 %v3794
        %3838 = vmatmul.f32.gmra.mxu0 %v3808
        %v3839 = vpop.f32.mrf.mxu0
        %v3840 = vadd.f32 0.0, %v3839
        %3841 = vmatmul.f32.gmra.mxu0 %v3811
        %v3842 = vpop.f32.mrf.mxu0
        %v3843 = vadd.f32 0.0, %v3842
        %3844 = vmatmul.f32.gmra.mxu0 %v3814
        %v3845 = vpop.f32.mrf.mxu0
        %v3846 = vadd.f32 0.0, %v3845
        %3847 = vmatmul.f32.gmra.mxu0 %v3817
        %v3848 = vpop.f32.mrf.mxu0
        %v3849 = vadd.f32 0.0, %v3848
        %3850 = vdwg.mxu0
        %v3851 = vadd.f32 %v3798, %v3840
        %v3852 = vadd.f32 %v3799, %v3843
        %v3853 = vadd.f32 %v3800, %v3846
        %v3854 = vadd.f32 %v3801, %v3849
        %s3855 = scalar_lea.vmem %s10, 32
        %v3856 = vld [vmem:[%s3855] sm:$0xff]
        %v3857 = vld [vmem:[%s3855 + $0x8] sm:$0xff]
        %v3858 = vld [vmem:[%s3855 + $0x10] sm:$0xff]
        %v3859 = vld [vmem:[%s3855 + $0x18] sm:$0xff]
        %3863 = vrot.lane.b32.xlu0 %v3794, 127
        %v3864 = vpop.permute.xlu0 %3863
        %3865 = vrot.lane.b32.xlu0 %v3795, 127
        %v3866 = vpop.permute.xlu0 %3865
        %3867 = vrot.lane.b32.xlu0 %v3796, 127
        %v3868 = vpop.permute.xlu0 %3867
        %3869 = vrot.lane.b32.xlu0 %v3797, 127
        %v3870 = vpop.permute.xlu0 %3869
        %v3875 = vsel %vm3806, %v3856, 0
        %v3878 = vsel %vm3806, %v3857, 0
        %v3881 = vsel %vm3806, %v3858, 0
        %v3884 = vsel %vm3806, %v3859, 0
        %v3886 = vsel %vm2129, %v3870, 0
        %3888 = vmatpush.msra.mxu0 0.0
        %3889 = vmatpush.msra.mxu0 0.0
        %3890 = vmatpush.msra.mxu0 0.0
        %3891 = vmatpush.msra.mxu0 0.0
        %3892 = vmatpush.msra.mxu0 0.0
        %3893 = vmatpush.msra.mxu0 0.0
        %3894 = vmatpush.msra.mxu0 0.0
        %3895 = vmatpush.msra.mxu0 0.0
        %3896 = vmatpush.msra.mxu0 0.0
        %3897 = vmatpush.msra.mxu0 0.0
        %3898 = vmatpush.msra.mxu0 0.0
        %3899 = vmatpush.msra.mxu0 0.0
        %3900 = vmatpush.msra.mxu0 %v3886
        %3901 = vmatpush.msra.mxu0 %v3868
        %3902 = vmatpush.msra.mxu0 %v3866
        %3903 = vmatpush.msra.mxu0 %v3864
        %3904 = vmatmul.f32.gmra.mxu0 %v3875
        %v3905 = vpop.f32.mrf.mxu0
        %v3906 = vadd.f32 0.0, %v3905
        %3907 = vmatmul.f32.gmra.mxu0 %v3878
        %v3908 = vpop.f32.mrf.mxu0
        %v3909 = vadd.f32 0.0, %v3908
        %3910 = vmatmul.f32.gmra.mxu0 %v3881
        %v3911 = vpop.f32.mrf.mxu0
        %v3912 = vadd.f32 0.0, %v3911
        %3913 = vmatmul.f32.gmra.mxu0 %v3884
        %v3914 = vpop.f32.mrf.mxu0
        %v3915 = vadd.f32 0.0, %v3914
        %3916 = vdwg.mxu0
        %v3917 = vadd.f32 %v3851, %v3906
        %v3918 = vadd.f32 %v3852, %v3909
        %v3919 = vadd.f32 %v3853, %v3912
        %v3920 = vadd.f32 %v3854, %v3915
        %s3921 = scalar_lea.vmem %s10, 64
        %v3922 = vld [vmem:[%s3921] sm:$0xff]
        %v3923 = vld [vmem:[%s3921 + $0x8] sm:$0xff]
        %v3924 = vld [vmem:[%s3921 + $0x10] sm:$0xff]
        %v3925 = vld [vmem:[%s3921 + $0x18] sm:$0xff]
        %3926 = vrot.lane.b32.xlu0 %v3794, 126
        %v3927 = vpop.permute.xlu0 %3926
        %3928 = vrot.lane.b32.xlu0 %v3795, 126
        %v3929 = vpop.permute.xlu0 %3928
        %3930 = vrot.lane.b32.xlu0 %v3796, 126
        %v3931 = vpop.permute.xlu0 %3930
        %3932 = vrot.lane.b32.xlu0 %v3797, 126
        %v3933 = vpop.permute.xlu0 %3932
        %v3938 = vsel %vm3806, %v3922, 0
        %v3941 = vsel %vm3806, %v3923, 0
        %v3944 = vsel %vm3806, %v3924, 0
        %v3947 = vsel %vm3806, %v3925, 0
        %v3949 = vsel %vm2129, %v3933, 0
        %3951 = vmatpush.msra.mxu0 0.0
        %3952 = vmatpush.msra.mxu0 0.0
        %3953 = vmatpush.msra.mxu0 0.0
        %3954 = vmatpush.msra.mxu0 0.0
        %3955 = vmatpush.msra.mxu0 0.0
        %3956 = vmatpush.msra.mxu0 0.0
        %3957 = vmatpush.msra.mxu0 0.0
        %3958 = vmatpush.msra.mxu0 0.0
        %3959 = vmatpush.msra.mxu0 0.0
        %3960 = vmatpush.msra.mxu0 0.0
        %3961 = vmatpush.msra.mxu0 0.0
        %3962 = vmatpush.msra.mxu0 0.0
        %3963 = vmatpush.msra.mxu0 %v3949
        %3964 = vmatpush.msra.mxu0 %v3931
        %3965 = vmatpush.msra.mxu0 %v3929
        %3966 = vmatpush.msra.mxu0 %v3927
        %3967 = vmatmul.f32.gmra.mxu0 %v3938
        %v3968 = vpop.f32.mrf.mxu0
        %v3969 = vadd.f32 0.0, %v3968
        %3970 = vmatmul.f32.gmra.mxu0 %v3941
        %v3971 = vpop.f32.mrf.mxu0
        %v3972 = vadd.f32 0.0, %v3971
        %3973 = vmatmul.f32.gmra.mxu0 %v3944
        %v3974 = vpop.f32.mrf.mxu0
        %v3975 = vadd.f32 0.0, %v3974
        %3976 = vmatmul.f32.gmra.mxu0 %v3947
        %v3977 = vpop.f32.mrf.mxu0
        %v3978 = vadd.f32 0.0, %v3977
        %3979 = vdwg.mxu0
        %v3980 = vadd.f32 %v3917, %v3969
        %v3981 = vadd.f32 %v3918, %v3972
        %v3982 = vadd.f32 %v3919, %v3975
        %v3983 = vadd.f32 %v3920, %v3978
        %v3984 = vmax.f32 %v3980, 0.0
        %v3985 = vmax.f32 %v3981, 0.0
        %v3986 = vmax.f32 %v3982, 0.0
        %v3987 = vmax.f32 %v3983, 0.0
        %v3988 = vld [vmem:[%s12] sm:$0x3]
        %v3989 = vld [vmem:[%s13] sm:$0x3]
        %vm3990 = vcmask 261120
        %v3992 = vsel %vm3990, %v3988, 0
        %3994 = vmatpush.msra.mxu0 0.0
        %3995 = vmatpush.msra.mxu0 0.0
        %3996 = vmatpush.msra.mxu0 0.0
        %3997 = vmatpush.msra.mxu0 0.0
        %3998 = vmatpush.msra.mxu0 0.0
        %3999 = vmatpush.msra.mxu0 0.0
        %4000 = vmatpush.msra.mxu0 0.0
        %4001 = vmatpush.msra.mxu0 0.0
        %4002 = vmatpush.msra.mxu0 0.0
        %4003 = vmatpush.msra.mxu0 0.0
        %4004 = vmatpush.msra.mxu0 0.0
        %4005 = vmatpush.msra.mxu0 0.0
        %4006 = vmatpush.msra.mxu0 %v3987
        %4007 = vmatpush.msra.mxu0 %v3986
        %4008 = vmatpush.msra.mxu0 %v3985
        %4009 = vmatpush.msra.mxu0 %v3984
        %4010 = vmatmul.f32.gmra.mxu0 %v3992
        %v4011 = vpop.f32.mrf.mxu0
        %v4012 = vadd.f32 %v3989, %v4011
        %4013 = vdwg.mxu0
        %vm4014 = vcmask 1024
        %4015 = vst.msk [vmem:[%s493] sm:$0x3] %vm4014, %v4012
        %s4016 = scalar_lea.vmem %s12, 2
        %v4017 = vld [vmem:[%s4016] sm:$0x3]
        %v4018 = vld [vmem:[%s13] sm:$0x3]
        %4020 = vrot.lane.b32.xlu0 %v4018, 127
        %v4021 = vpop.permute.xlu0 %4020
        %v4024 = vsel %vm3990, %v4017, 0
        %4026 = vmatpush.msra.mxu0 0.0
        %4027 = vmatpush.msra.mxu0 0.0
        %4028 = vmatpush.msra.mxu0 0.0
        %4029 = vmatpush.msra.mxu0 0.0
        %4030 = vmatpush.msra.mxu0 0.0
        %4031 = vmatpush.msra.mxu0 0.0
        %4032 = vmatpush.msra.mxu0 0.0
        %4033 = vmatpush.msra.mxu0 0.0
        %4034 = vmatpush.msra.mxu0 0.0
        %4035 = vmatpush.msra.mxu0 0.0
        %4036 = vmatpush.msra.mxu0 0.0
        %4037 = vmatpush.msra.mxu0 0.0
        %4038 = vmatpush.msra.mxu0 %v3987
        %4039 = vmatpush.msra.mxu0 %v3986
        %4040 = vmatpush.msra.mxu0 %v3985
        %4041 = vmatpush.msra.mxu0 %v3984
        %4042 = vmatmul.f32.gmra.mxu0 %v4024
        %v4043 = vpop.f32.mrf.mxu0
        %v4044 = vadd.f32 %v4021, %v4043
        %4045 = vdwg.mxu0
        %4047 = vrot.lane.b32.xlu0 %v4044, 1
        %v4048 = vpop.permute.xlu0 %4047
        %vm4050 = vcmask 9224
        %4051 = vst.msk [vmem:[%s493] sm:$0x3] %vm4050, %v4048
        %s4052 = scalar_lea.vmem %s12, 4
        %v4053 = vld [vmem:[%s4052] sm:$0x3]
        %v4054 = vld [vmem:[%s13] sm:$0x3]
        %4056 = vrot.lane.b32.xlu0 %v4054, 126
        %v4057 = vpop.permute.xlu0 %4056
        %v4060 = vsel %vm3990, %v4053, 0
        %4062 = vmatpush.msra.mxu0 0.0
        %4063 = vmatpush.msra.mxu0 0.0
        %4064 = vmatpush.msra.mxu0 0.0
        %4065 = vmatpush.msra.mxu0 0.0
        %4066 = vmatpush.msra.mxu0 0.0
        %4067 = vmatpush.msra.mxu0 0.0
        %4068 = vmatpush.msra.mxu0 0.0
        %4069 = vmatpush.msra.mxu0 0.0
        %4070 = vmatpush.msra.mxu0 0.0
        %4071 = vmatpush.msra.mxu0 0.0
        %4072 = vmatpush.msra.mxu0 0.0
        %4073 = vmatpush.msra.mxu0 0.0
        %4074 = vmatpush.msra.mxu0 %v3987
        %4075 = vmatpush.msra.mxu0 %v3986
        %4076 = vmatpush.msra.mxu0 %v3985
        %4077 = vmatpush.msra.mxu0 %v3984
        %4078 = vmatmul.f32.gmra.mxu0 %v4060
        %v4079 = vpop.f32.mrf.mxu0
        %v4080 = vadd.f32 %v4057, %v4079
        %4081 = vdwg.mxu0
        %4083 = vrot.lane.b32.xlu0 %v4080, 2
        %v4084 = vpop.permute.xlu0 %4083
        %vm4086 = vcmask 17424
        %4087 = vst.msk [vmem:[%s493] sm:$0x3] %vm4086, %v4084
        %v4088 = vld [vmem:[%s1] sm:$0x1]
        %v4089 = vld [vmem:[%s1 + $0x1] sm:$0x1]
        %4091 = vset.pattern.permute.xlu0 0
        %4092 = vperm.xlu0 %4091, %v4012
        %v4093 = vpop.permute.xlu0 %4092
        %v4095 = vmul.f32 %v4093, %v4088
        %4096 = vset.pattern.permute.xlu0 0
        %4097 = vperm.xlu0 %4096, %v4044
        %v4098 = vpop.permute.xlu0 %4097
        %v4100 = vmul.f32 %v4098, %v4089
        %v4101 = vadd.f32 %v4095, %v4100
        %4102 = vset.pattern.permute.xlu0 0
        %4103 = vperm.xlu0 %4102, %v4080
        %v4104 = vpop.permute.xlu0 %4103
        %v4106 = vadd.f32 %v4101, %v4104
        %v4108 = vrot.slane %v4088, 7
        %v4110 = vmul.f32 %v4093, %v4108
        %v4112 = vrot.slane %v4089, 7
        %v4114 = vmul.f32 %v4098, %v4112
        %v4115 = vadd.f32 %v4110, %v4114
        %v4116 = vadd.f32 %v4115, %v4104
        %v4117 = vadd.f32 %v4106, 1.0
        %v4118 = vmul.f32 %v4117, 28.0
        %v4119 = vsub.f32 %v4118, 1.0
        %v4120 = vmul.f32 %v4119, 0.5
        %v4121 = vadd.f32 %v4116, 1.0
        %v4122 = vmul.f32 %v4121, 28.0
        %v4123 = vsub.f32 %v4122, 1.0
        %v4124 = vmul.f32 %v4123, 0.5
        %v4125 = vlaneseq
        %v4126 = vshrl.u32 %v4125, 7
        %v4127 = vadd.s32 %v4126, 8
        %v4128 = vadd.s32 %v4126, 16
        %v4129 = vadd.s32 %v4126, 24
        %v4130 = vcvt.s32.f32 %v4126
        %v4131 = vcvt.s32.f32 %v4127
        %v4132 = vcvt.s32.f32 %v4128
        %v4133 = vcvt.s32.f32 %v4129
        %v4134 = vperm.slane %v4120, 0
        %v4135 = vsub.f32 %v4130, %v4134
        %v4136 = vsub.f32 %v4131, %v4134
        %v4137 = vsub.f32 %v4132, %v4134
        %v4138 = vsub.f32 %v4133, %v4134
        %v4139 = vand.u32 2147483647, %v4135
        %v4140 = vand.u32 2147483647, %v4136
        %v4141 = vand.u32 2147483647, %v4137
        %v4142 = vand.u32 2147483647, %v4138
        %v4143 = vsub.f32 1.0, %v4139
        %v4144 = vsub.f32 1.0, %v4140
        %v4145 = vsub.f32 1.0, %v4141
        %v4146 = vsub.f32 1.0, %v4142
        %v4147 = vmax.f32 %v4143, 0.0
        %v4148 = vmax.f32 %v4144, 0.0
        %v4149 = vmax.f32 %v4145, 0.0
        %v4150 = vmax.f32 %v4146, 0.0
        %v4151 = vperm.slane %v4124, 1
        %v4152 = vsub.f32 %v4130, %v4151
        %v4153 = vsub.f32 %v4131, %v4151
        %v4154 = vsub.f32 %v4132, %v4151
        %v4155 = vsub.f32 %v4133, %v4151
        %v4156 = vand.u32 2147483647, %v4152
        %v4157 = vand.u32 2147483647, %v4153
        %v4158 = vand.u32 2147483647, %v4154
        %v4159 = vand.u32 2147483647, %v4155
        %v4160 = vsub.f32 1.0, %v4156
        %v4161 = vsub.f32 1.0, %v4157
        %v4162 = vsub.f32 1.0, %v4158
        %v4163 = vsub.f32 1.0, %v4159
        %v4164 = vmax.f32 %v4160, 0.0
        %v4165 = vmax.f32 %v4161, 0.0
        %v4166 = vmax.f32 %v4162, 0.0
        %v4167 = vmax.f32 %v4163, 0.0
        %v4168 = vld [vmem:[%s498] sm:$0xff]
        %v4169 = vld [vmem:[%s498 + $0x8] sm:$0xff]
        %v4170 = vld [vmem:[%s498 + $0x10] sm:$0xff]
        %v4171 = vld [vmem:[%s498 + $0x18] sm:$0xf]
        %v4173 = vsel %vm566, %v4168, 0
        %v4176 = vsel %vm566, %v4169, 0
        %v4179 = vsel %vm566, %v4170, 0
        %v4182 = vsel %vm566, %v4171, 0
        %v4185 = vsel %vm633, %v4150, 0
        %4187 = vmatpush.msra.mxu0 0.0
        %4188 = vmatpush.msra.mxu0 0.0
        %4189 = vmatpush.msra.mxu0 0.0
        %4190 = vmatpush.msra.mxu0 0.0
        %4191 = vmatpush.msra.mxu0 0.0
        %4192 = vmatpush.msra.mxu0 0.0
        %4193 = vmatpush.msra.mxu0 0.0
        %4194 = vmatpush.msra.mxu0 0.0
        %4195 = vmatpush.msra.mxu0 0.0
        %4196 = vmatpush.msra.mxu0 0.0
        %4197 = vmatpush.msra.mxu0 0.0
        %4198 = vmatpush.msra.mxu0 0.0
        %4199 = vmatpush.msra.mxu0 %v4185
        %4200 = vmatpush.msra.mxu0 %v4149
        %4201 = vmatpush.msra.mxu0 %v4148
        %4202 = vmatpush.msra.mxu0 %v4147
        %4203 = vmatmul.f32.gmra.mxu0 %v4173
        %v4204 = vpop.f32.mrf.mxu0
        %v4205 = vadd.f32 0.0, %v4204
        %4206 = vmatmul.f32.gmra.mxu0 %v4176
        %v4207 = vpop.f32.mrf.mxu0
        %v4208 = vadd.f32 0.0, %v4207
        %4209 = vmatmul.f32.gmra.mxu0 %v4179
        %v4210 = vpop.f32.mrf.mxu0
        %v4211 = vadd.f32 0.0, %v4210
        %4212 = vmatmul.f32.gmra.mxu0 %v4182
        %v4213 = vpop.f32.mrf.mxu0
        %v4214 = vadd.f32 0.0, %v4213
        %4215 = vdwg.mxu0
        %v4216 = vmul.f32 %v4205, %v4164
        %v4217 = vmul.f32 %v4208, %v4165
        %v4218 = vmul.f32 %v4211, %v4166
        %v4219 = vmul.f32 %v4214, %v4167
        %vm4220 = vcmask 72704
        %v4221 = vsel %vm4220, %v4216, 0.0
        %v4222 = vsel %vm4220, %v4217, 0.0
        %v4223 = vadd.f32 %v4221, %v4222
        %v4224 = vsel %vm4220, %v4218, 0.0
        %v4225 = vadd.f32 %v4223, %v4224
        %vm4226 = vcmask 68608
        %v4227 = vsel %vm4226, %v4219, 0.0
        %v4228 = vadd.f32 %v4225, %v4227
        %v4229 = vrot.slane %v4228, 4
        %v4230 = vadd.f32 %v4228, %v4229
        %v4231 = vrot.slane %v4230, 2
        %v4232 = vadd.f32 %v4230, %v4231
        %v4233 = vrot.slane %v4232, 1
        %v4234 = vadd.f32 %v4232, %v4233
        %vm4235 = vcmask 65536
        %4236 = vst.msk [vmem:[%s501] sm:$0x1] %vm4235, %v4234
        %p4237 = scmp.lt.s32.totalorder %s30, 1
        %s4238 = scalar_select %p4237, %s30, 1
        %s4239 = scalar_lea.vmem %s14, %s4238
        %s4240 = sand.u32 %s363, 1
        %s4241 = scalar_lea.sflag [#allocation3], %s4240
        %s4242 = sand.u32 %s363, 1
        %s4243 = smul.addr %s4242, 2
        %s4244 = scalar_lea.vmem [#allocation2], %s4243
        // Predicated region
        $region77: #{_lambda_.1} parent=75 // pred_check
          %p4245 = pneg %p347
        $region78: #{_lambda_.1} parent=75 // pred_check_branch
          %4247 = sbr.rel (%p4245) target = $region80
        $region79: #{_lambda_.1} parent=75 // pred_region
          _
        $region80: #{_lambda_.1} parent=75 // pred_fallthru
          _
        // Predicated region
        $region81: #{_lambda_.1} parent=75 // pred_check
          %p4248 = pneg %p373
        $region82: #{_lambda_.1} parent=75 // pred_check_branch
          %4250 = sbr.rel (%p4248) target = $region84
        $region83: #{_lambda_.1} parent=75 // pred_region
          %4252 = vsyncadd %s4241, 0
          %s4253 = smul.addr %s30, 2
          %s4254 = scalar_lea.hbm %s15, %s4253
          %s4256 = sshll.u32 %s4244, 4
          %s4257 = int_to_ptr.vmem [resolvable:$true] %s4256
          %s4258 = sshll.u32 %s4254, 4
          %s4259 = int_to_ptr.hbm [resolvable:$true] %s4258
          %4261 = dma.vmem_to_hbm [thread:$0]  %s4257, 32, %s4259, %s4241
        $region84: #{_lambda_.1} parent=75 // pred_fallthru
          _
      $region76: #{_lambda_.1} parent=5 // pred_fallthru
        _
      %p4262 = scmp.le.s32.totalorder 2, %s25
      // Predicated region
      $region85: #{_lambda_.1} parent=5 // pred_check
        %p4263 = pneg %p4262
      $region86: #{_lambda_.1} parent=5 // pred_check_branch
        %4265 = sbr.rel (%p4263) target = $region88
      $region87: #{_lambda_.1} parent=5 // pred_region
        %s4266 = ssub.s32 %s25, 2
        // Predicated region
        $region89: #{_lambda_.1} parent=87 // pred_check
          %p4267 = pneg %p353
        $region90: #{_lambda_.1} parent=87 // pred_check_branch
          %4269 = sbr.rel (%p4267) target = $region92
        $region91: #{_lambda_.1} parent=87 // pred_region
          %p4270 = scmp.lt.s32.totalorder %s31, 1
          %s4271 = scalar_select %p4270, %s31, 1
          %s4272 = scalar_lea.vmem %s14, %s4271
        $region92: #{_lambda_.1} parent=87 // pred_fallthru
          _
        // Predicated region
        $region93: #{_lambda_.1} parent=87 // pred_check
          %p4273 = pneg %p379
        $region94: #{_lambda_.1} parent=87 // pred_check_branch
          %4275 = sbr.rel (%p4273) target = $region96
        $region95: #{_lambda_.1} parent=87 // pred_region
          %s4276 = sand.u32 %s364, 1
          %s4277 = scalar_lea.sflag [#allocation3], %s4276
          %s4278 = sand.u32 %s364, 1
          %s4279 = smul.addr %s4278, 2
          %s4280 = scalar_lea.vmem [#allocation2], %s4279
          %4282 = dma.done %s4277, 32
        $region96: #{_lambda_.1} parent=87 // pred_fallthru
          _
      $region88: #{_lambda_.1} parent=5 // pred_fallthru
        _
    $region6: #{_lambda_.1} parent=1 // loop_footer
      %s29 = sadd.s32 1, %s25
    $region7: #{_lambda_.1} parent=1 // loop_footer_branch
      %24 = sbr.rel target = $region3
    $region8: #{_lambda_.1} parent=1 // loop_exit
      _
    %4283 = vsyncpa [#allocation3], 1
    %s4284 = scalar_lea.sflag [#allocation3], 1
    %4285 = vsyncpa %s4284, 1

</llo_original>
